<compile_context>
chip_gen: v6e
topology: v6e:2x2x1
jax: 0.10.0
libtpu: 0.0.40
codegen_flags: <defaults>
</compile_context>

<pallas_src>
import functools

import jax
import jax.numpy as jnp
from jax import lax
from jax.experimental import pallas as pl
from jax.experimental.pallas import tpu as pltpu


def _lstm_module_kernel(x_ref, w_ih1_ref, w_hh1_ref, b1_ref,
                        w_ih2_ref, w_hh2_ref, b2_ref,
                        gamma_ref, beta_ref,
                        out_ref,
                        seq_scr,
                        *, B, T, F, H):
    """Fused 2-layer LSTM + SiLU + LayerNorm, everything resident in VMEM.

    seq_scr: (B, T, H) scratch that holds the per-step outputs of the current
             layer (layer-1 SiLU outputs, later overwritten by layer-2 outputs).
    """
    f32 = jnp.float32

    # Lane mask selecting the 'g' (cell-candidate) gate block -> tanh there,
    # sigmoid elsewhere.  Lets us activate the whole (B, 4H) vreg with two EUP
    # passes + one select instead of four lane-subrange activations.
    lane = lax.broadcasted_iota(jnp.int32, (B, 4 * H), 1)
    g_blk = (lane >= 2 * H) & (lane < 3 * H)

    def run_layer(proj, w_hh_ref, apply_silu):
        """Serial recurrence for one layer.  proj: (B, T, 4H) = x@W_ih + b."""
        w_hh = w_hh_ref[...]                              # (H, 4H), loaded once
        h = jnp.zeros((B, H), f32)
        c = jnp.zeros((B, H), f32)
        for t in range(T):                                # static, fully unrolled
            gates = proj[:, t, :] + jnp.dot(h, w_hh, preferred_element_type=f32)
            act = jnp.where(g_blk, jnp.tanh(gates), jax.nn.sigmoid(gates))
            i_g = act[:, 0:H]
            f_g = act[:, H:2 * H]
            g_g = act[:, 2 * H:3 * H]
            o_g = act[:, 3 * H:4 * H]
            c = f_g * c + i_g * g_g
            h = o_g * jnp.tanh(c)
            y = h * jax.nn.sigmoid(h) if apply_silu else h
            seq_scr[:, t, :] = y                          # static store, no DMA

    # ---- layer 1: batched input projection (one MXU matmul for all T) -------
    x2d = x_ref[...].reshape(B * T, F)                    # (B*T, F), tile-aligned merge
    proj1 = (jnp.dot(x2d, w_ih1_ref[...], preferred_element_type=f32)
             + b1_ref[...]).reshape(B, T, 4 * H)
    run_layer(proj1, w_hh1_ref, apply_silu=True)          # SiLU fused into layer 1

    # ---- layer 2: batched input projection from layer-1 outputs -------------
    h1_2d = seq_scr[...].reshape(B * T, H)
    proj2 = (jnp.dot(h1_2d, w_ih2_ref[...], preferred_element_type=f32)
             + b2_ref[...]).reshape(B, T, 4 * H)
    run_layer(proj2, w_hh2_ref, apply_silu=False)         # overwrites seq_scr

    # ---- LayerNorm over H + affine; single full-block output store ----------
    y = seq_scr[...]                                      # (B, T, H)
    mean = jnp.mean(y, axis=-1, keepdims=True)
    var = jnp.mean((y - mean) ** 2, axis=-1, keepdims=True)
    yn = (y - mean) * lax.rsqrt(var + 1e-5)
    out_ref[...] = yn * gamma_ref[...] + beta_ref[...]
    # dropout(p=0.05): identity in eval mode


def lstm_module_forward(x, params):
    """x: (B, T, F) float32 -> (B, T, H) float32 (batch_first, like PyTorch)."""
    B, T, F = x.shape
    H = params["w_hh1"].shape[0]
    assert params["w_ih1"].shape == (F, 4 * H)
    assert params["w_ih2"].shape == (H, 4 * H)

    kernel = functools.partial(_lstm_module_kernel, B=B, T=T, F=F, H=H)

    return pl.pallas_call(
        kernel,
        out_shape=jax.ShapeDtypeStruct((B, T, H), jnp.float32),
        grid_spec=pltpu.PrefetchScalarGridSpec(
            num_scalar_prefetch=0,
            grid=(1,),                                   # whole problem in one step
            in_specs=[
                pl.BlockSpec((B, T, F), lambda i: (0, 0, 0)),     # x
                pl.BlockSpec((F, 4 * H), lambda i: (0, 0)),       # W_ih1
                pl.BlockSpec((H, 4 * H), lambda i: (0, 0)),       # W_hh1
                pl.BlockSpec((1, 4 * H), lambda i: (0, 0)),       # b1 (= b_ih1+b_hh1)
                pl.BlockSpec((H, 4 * H), lambda i: (0, 0)),       # W_ih2
                pl.BlockSpec((H, 4 * H), lambda i: (0, 0)),       # W_hh2
                pl.BlockSpec((1, 4 * H), lambda i: (0, 0)),       # b2 (= b_ih2+b_hh2)
                pl.BlockSpec((1, H), lambda i: (0, 0)),           # layernorm gamma
                pl.BlockSpec((1, H), lambda i: (0, 0)),           # layernorm beta
            ],
            out_specs=pl.BlockSpec((B, T, H), lambda i: (0, 0, 0)),
            scratch_shapes=[
                pltpu.VMEM((B, T, H), jnp.float32),               # per-layer sequence
            ],
        ),
        compiler_params=pltpu.CompilerParams(
            dimension_semantics=("arbitrary",)),
    )(x, params["w_ih1"], params["w_hh1"], params["b1"],
      params["w_ih2"], params["w_hh2"], params["b2"],
      params["gamma"], params["beta"])


# ------------------------- pure-JAX reference ---------------------------------
def _lstm_ref(x, w_ih, w_hh, b, H):
    B, T, F = x.shape

    def step(carry, x_t):
        h, c = carry
        g = x_t @ w_ih + h @ w_hh + b[0]
        i = jax.nn.sigmoid(g[:, 0:H])
        f = jax.nn.sigmoid(g[:, H:2 * H])
        gg = jnp.tanh(g[:, 2 * H:3 * H])
        o = jax.nn.sigmoid(g[:, 3 * H:4 * H])
        c = f * c + i * gg
        h = o * jnp.tanh(c)
        return (h, c), h

    init = (jnp.zeros((B, H), jnp.float32), jnp.zeros((B, H), jnp.float32))
    _, hs = jax.lax.scan(step, init, jnp.transpose(x, (1, 0, 2)))
    return jnp.transpose(hs, (1, 0, 2))


def _ref_forward(x, p, H):
    y = _lstm_ref(x, p["w_ih1"], p["w_hh1"], p["b1"], H)
    y = y * jax.nn.sigmoid(y)
    y = _lstm_ref(y, p["w_ih2"], p["w_hh2"], p["b2"], H)
    mean = jnp.mean(y, axis=-1, keepdims=True)
    var = jnp.mean((y - mean) ** 2, axis=-1, keepdims=True)
    y = (y - mean) * jax.lax.rsqrt(var + 1e-5)
    return y * p["gamma"][0] + p["beta"][0]


# ------------------------------ main -------------------------------------------
if __name__ == "__main__":
    B, T, F, H = 2, 8, 16, 32      # batch, seq, num_input, num_hidden

    key = jax.random.PRNGKey(0)
    ks = jax.random.split(key, 11)
    s = 1.0 / jnp.sqrt(H)          # PyTorch LSTM init scale

    # PyTorch has separate b_ih / b_hh; fold them (b = b_ih + b_hh) as the
    # kernel expects a single combined bias per layer.
    b_ih1 = jax.random.uniform(ks[2], (1, 4 * H), jnp.float32, -s, s)
    b_hh1 = jax.random.uniform(ks[7], (1, 4 * H), jnp.float32, -s, s)
    b_ih2 = jax.random.uniform(ks[5], (1, 4 * H), jnp.float32, -s, s)
    b_hh2 = jax.random.uniform(ks[8], (1, 4 * H), jnp.float32, -s, s)

    params = {
        "w_ih1": jax.random.uniform(ks[0], (F, 4 * H), jnp.float32, -s, s),
        "w_hh1": jax.random.uniform(ks[1], (H, 4 * H), jnp.float32, -s, s),
        "b1":    b_ih1 + b_hh1,
        "w_ih2": jax.random.uniform(ks[3], (H, 4 * H), jnp.float32, -s, s),
        "w_hh2": jax.random.uniform(ks[4], (H, 4 * H), jnp.float32, -s, s),
        "b2":    b_ih2 + b_hh2,
        "gamma": jnp.ones((1, H), jnp.float32),
        "beta":  jnp.zeros((1, H), jnp.float32),
    }
    x = jax.random.normal(ks[6], (B, T, F), jnp.float32)

    out = jax.block_until_ready(lstm_module_forward(x, params))
    ref = jax.block_until_ready(_ref_forward(x, params, H))

    assert out.shape == (B, T, H), out.shape
    err = float(jnp.max(jnp.abs(out - ref)))
    assert err < 1e-4, err
    print("KERNEL_OK")
</pallas_src>

<mosaic_0001>
module attributes {stable_mosaic.version = 11 : i64} {
  func.func @_lstm_module_kernel(%arg0: i32, %arg1: memref<2x8x16xf32, #tpu.memory_space<vmem>>, %arg2: memref<16x128xf32, #tpu.memory_space<vmem>>, %arg3: memref<32x128xf32, #tpu.memory_space<vmem>>, %arg4: memref<1x128xf32, #tpu.memory_space<vmem>>, %arg5: memref<32x128xf32, #tpu.memory_space<vmem>>, %arg6: memref<32x128xf32, #tpu.memory_space<vmem>>, %arg7: memref<1x128xf32, #tpu.memory_space<vmem>>, %arg8: memref<1x32xf32, #tpu.memory_space<vmem>>, %arg9: memref<1x32xf32, #tpu.memory_space<vmem>>, %arg10: memref<2x8x32xf32, #tpu.memory_space<vmem>>, %arg11: memref<2x8x32xf32, #tpu.memory_space<vmem>>) attributes {dimension_semantics = [#tpu.dimension_semantics<arbitrary>], iteration_bounds = array<i64: 1>, scalar_prefetch = 0 : i64, scratch_operands = 1 : i64, tpu.core_type = #tpu.core_type<tc>, window_params = [{pipeline_mode = #tpu.pipeline_mode<synchronous>, transform_indices = @transform_0, window_bounds = array<i64: 2, 8, 16>}, {pipeline_mode = #tpu.pipeline_mode<synchronous>, transform_indices = @transform_1, window_bounds = array<i64: 16, 128>}, {pipeline_mode = #tpu.pipeline_mode<synchronous>, transform_indices = @transform_2, window_bounds = array<i64: 32, 128>}, {pipeline_mode = #tpu.pipeline_mode<synchronous>, transform_indices = @transform_3, window_bounds = array<i64: 1, 128>}, {pipeline_mode = #tpu.pipeline_mode<synchronous>, transform_indices = @transform_4, window_bounds = array<i64: 32, 128>}, {pipeline_mode = #tpu.pipeline_mode<synchronous>, transform_indices = @transform_5, window_bounds = array<i64: 32, 128>}, {pipeline_mode = #tpu.pipeline_mode<synchronous>, transform_indices = @transform_6, window_bounds = array<i64: 1, 128>}, {pipeline_mode = #tpu.pipeline_mode<synchronous>, transform_indices = @transform_7, window_bounds = array<i64: 1, 32>}, {pipeline_mode = #tpu.pipeline_mode<synchronous>, transform_indices = @transform_8, window_bounds = array<i64: 1, 32>}, {pipeline_mode = #tpu.pipeline_mode<synchronous>, transform_indices = @transform_9, window_bounds = array<i64: 2, 8, 32>}]} {
    %0 = tpu.iota {dimensions = array<i32: 1>} : vector<2x128xi32>
    %c64_i32 = arith.constant 64 : i32
    %1 = vector.broadcast %c64_i32 : i32 to vector<2x128xi32>
    %2 = arith.cmpi sge, %0, %1 : vector<2x128xi32>
    %c96_i32 = arith.constant 96 : i32
    %3 = vector.broadcast %c96_i32 : i32 to vector<2x128xi32>
    %4 = arith.cmpi slt, %0, %3 : vector<2x128xi32>
    %5 = arith.andi %2, %4 : vector<2x128xi1>
    %c0 = arith.constant 0 : index
    %c0_0 = arith.constant 0 : index
    %c0_1 = arith.constant 0 : index
    %6 = vector.load %arg1[%c0, %c0_0, %c0_1] : memref<2x8x16xf32, #tpu.memory_space<vmem>>, vector<2x8x16xf32>
    %7 = vector.shape_cast %6 : vector<2x8x16xf32> to vector<16x16xf32>
    %c0_2 = arith.constant 0 : index
    %c0_3 = arith.constant 0 : index
    %8 = vector.load %arg2[%c0_2, %c0_3] : memref<16x128xf32, #tpu.memory_space<vmem>>, vector<16x128xf32>
    %cst = arith.constant dense<0.000000e+00> : vector<16x128xf32>
    %9 = tpu.matmul %7, %8, %cst {dimension_numbers = #tpu.dot_dimension_numbers<[1], [0], [0], [1], [0, 0, 1, 1], [], []>} : vector<16x16xf32>, vector<16x128xf32>, vector<16x128xf32> -> vector<16x128xf32>
    %c0_4 = arith.constant 0 : index
    %c0_5 = arith.constant 0 : index
    %10 = vector.load %arg4[%c0_4, %c0_5] : memref<1x128xf32, #tpu.memory_space<vmem>>, vector<1x128xf32>
    %11 = vector.broadcast %10 : vector<1x128xf32> to vector<16x128xf32>
    %12 = arith.addf %9, %11 : vector<16x128xf32>
    %13 = vector.shape_cast %12 : vector<16x128xf32> to vector<2x8x128xf32>
    %c0_6 = arith.constant 0 : index
    %c0_7 = arith.constant 0 : index
    %14 = vector.load %arg3[%c0_6, %c0_7] : memref<32x128xf32, #tpu.memory_space<vmem>>, vector<32x128xf32>
    %cst_8 = arith.constant 0.000000e+00 : f32
    %15 = vector.broadcast %cst_8 : f32 to vector<2x32xf32>
    %cst_9 = arith.constant 0.000000e+00 : f32
    %16 = vector.broadcast %cst_9 : f32 to vector<2x32xf32>
    %17 = vector.extract_strided_slice %13 {offsets = [0, 0, 0], sizes = [2, 1, 128], strides = [1, 1, 1]} : vector<2x8x128xf32> to vector<2x1x128xf32>
    %18 = vector.shape_cast %17 : vector<2x1x128xf32> to vector<2x128xf32>
    %cst_10 = arith.constant dense<0.000000e+00> : vector<2x128xf32>
    %19 = tpu.matmul %15, %14, %cst_10 {dimension_numbers = #tpu.dot_dimension_numbers<[1], [0], [0], [1], [0, 0, 1, 1], [], []>} : vector<2x32xf32>, vector<32x128xf32>, vector<2x128xf32> -> vector<2x128xf32>
    %20 = arith.addf %18, %19 : vector<2x128xf32>
    %21 = math.tanh %20 : vector<2x128xf32>
    %22 = arith.negf %20 : vector<2x128xf32>
    %23 = math.exp %22 : vector<2x128xf32>
    %cst_11 = arith.constant 1.000000e+00 : f32
    %24 = vector.broadcast %cst_11 : f32 to vector<2x128xf32>
    %25 = arith.addf %24, %23 : vector<2x128xf32>
    %26 = arith.divf %24, %25 : vector<2x128xf32>
    %27 = arith.select %5, %21, %26 : vector<2x128xi1>, vector<2x128xf32>
    %28 = vector.extract_strided_slice %27 {offsets = [0, 0], sizes = [2, 32], strides = [1, 1]} : vector<2x128xf32> to vector<2x32xf32>
    %29 = vector.extract_strided_slice %27 {offsets = [0, 32], sizes = [2, 32], strides = [1, 1]} : vector<2x128xf32> to vector<2x32xf32>
    %30 = vector.extract_strided_slice %27 {offsets = [0, 64], sizes = [2, 32], strides = [1, 1]} : vector<2x128xf32> to vector<2x32xf32>
    %31 = vector.extract_strided_slice %27 {offsets = [0, 96], sizes = [2, 32], strides = [1, 1]} : vector<2x128xf32> to vector<2x32xf32>
    %32 = arith.mulf %29, %16 : vector<2x32xf32>
    %33 = arith.mulf %28, %30 : vector<2x32xf32>
    %34 = arith.addf %32, %33 : vector<2x32xf32>
    %35 = math.tanh %34 : vector<2x32xf32>
    %36 = arith.mulf %31, %35 : vector<2x32xf32>
    %37 = arith.negf %36 : vector<2x32xf32>
    %38 = math.exp %37 : vector<2x32xf32>
    %cst_12 = arith.constant 1.000000e+00 : f32
    %39 = vector.broadcast %cst_12 : f32 to vector<2x32xf32>
    %40 = arith.addf %39, %38 : vector<2x32xf32>
    %41 = arith.divf %39, %40 : vector<2x32xf32>
    %42 = arith.mulf %36, %41 : vector<2x32xf32>
    %c0_13 = arith.constant 0 : index
    %c0_14 = arith.constant 0 : index
    %c0_15 = arith.constant 0 : index
    %43 = vector.load %arg11[%c0_13, %c0_14, %c0_15] : memref<2x8x32xf32, #tpu.memory_space<vmem>>, vector<2x1x32xf32>
    %44 = vector.shape_cast %43 : vector<2x1x32xf32> to vector<2x32xf32>
    %45 = vector.shape_cast %42 : vector<2x32xf32> to vector<2x1x32xf32>
    tpu.vector_store %arg11[%c0_13, %c0_14, %c0_15], %45 {strides = array<i32>} : memref<2x8x32xf32, #tpu.memory_space<vmem>>, vector<2x1x32xf32>,
    %46 = vector.extract_strided_slice %13 {offsets = [0, 1, 0], sizes = [2, 1, 128], strides = [1, 1, 1]} : vector<2x8x128xf32> to vector<2x1x128xf32>
    %47 = vector.shape_cast %46 : vector<2x1x128xf32> to vector<2x128xf32>
    %cst_16 = arith.constant dense<0.000000e+00> : vector<2x128xf32>
    %48 = tpu.matmul %36, %14, %cst_16 {dimension_numbers = #tpu.dot_dimension_numbers<[1], [0], [0], [1], [0, 0, 1, 1], [], []>} : vector<2x32xf32>, vector<32x128xf32>, vector<2x128xf32> -> vector<2x128xf32>
    %49 = arith.addf %47, %48 : vector<2x128xf32>
    %50 = math.tanh %49 : vector<2x128xf32>
    %51 = arith.negf %49 : vector<2x128xf32>
    %52 = math.exp %51 : vector<2x128xf32>
    %cst_17 = arith.constant 1.000000e+00 : f32
    %53 = vector.broadcast %cst_17 : f32 to vector<2x128xf32>
    %54 = arith.addf %53, %52 : vector<2x128xf32>
    %55 = arith.divf %53, %54 : vector<2x128xf32>
    %56 = arith.select %5, %50, %55 : vector<2x128xi1>, vector<2x128xf32>
    %57 = vector.extract_strided_slice %56 {offsets = [0, 0], sizes = [2, 32], strides = [1, 1]} : vector<2x128xf32> to vector<2x32xf32>
    %58 = vector.extract_strided_slice %56 {offsets = [0, 32], sizes = [2, 32], strides = [1, 1]} : vector<2x128xf32> to vector<2x32xf32>
    %59 = vector.extract_strided_slice %56 {offsets = [0, 64], sizes = [2, 32], strides = [1, 1]} : vector<2x128xf32> to vector<2x32xf32>
    %60 = vector.extract_strided_slice %56 {offsets = [0, 96], sizes = [2, 32], strides = [1, 1]} : vector<2x128xf32> to vector<2x32xf32>
    %61 = arith.mulf %58, %34 : vector<2x32xf32>
    %62 = arith.mulf %57, %59 : vector<2x32xf32>
    %63 = arith.addf %61, %62 : vector<2x32xf32>
    %64 = math.tanh %63 : vector<2x32xf32>
    %65 = arith.mulf %60, %64 : vector<2x32xf32>
    %66 = arith.negf %65 : vector<2x32xf32>
    %67 = math.exp %66 : vector<2x32xf32>
    %cst_18 = arith.constant 1.000000e+00 : f32
    %68 = vector.broadcast %cst_18 : f32 to vector<2x32xf32>
    %69 = arith.addf %68, %67 : vector<2x32xf32>
    %70 = arith.divf %68, %69 : vector<2x32xf32>
    %71 = arith.mulf %65, %70 : vector<2x32xf32>
    %c0_19 = arith.constant 0 : index
    %c1 = arith.constant 1 : index
    %c0_20 = arith.constant 0 : index
    %72 = vector.load %arg11[%c0_19, %c1, %c0_20] : memref<2x8x32xf32, #tpu.memory_space<vmem>>, vector<2x1x32xf32>
    %73 = vector.shape_cast %72 : vector<2x1x32xf32> to vector<2x32xf32>
    %74 = vector.shape_cast %71 : vector<2x32xf32> to vector<2x1x32xf32>
    tpu.vector_store %arg11[%c0_19, %c1, %c0_20], %74 {strides = array<i32>} : memref<2x8x32xf32, #tpu.memory_space<vmem>>, vector<2x1x32xf32>,
    %75 = vector.extract_strided_slice %13 {offsets = [0, 2, 0], sizes = [2, 1, 128], strides = [1, 1, 1]} : vector<2x8x128xf32> to vector<2x1x128xf32>
    %76 = vector.shape_cast %75 : vector<2x1x128xf32> to vector<2x128xf32>
    %cst_21 = arith.constant dense<0.000000e+00> : vector<2x128xf32>
    %77 = tpu.matmul %65, %14, %cst_21 {dimension_numbers = #tpu.dot_dimension_numbers<[1], [0], [0], [1], [0, 0, 1, 1], [], []>} : vector<2x32xf32>, vector<32x128xf32>, vector<2x128xf32> -> vector<2x128xf32>
    %78 = arith.addf %76, %77 : vector<2x128xf32>
    %79 = math.tanh %78 : vector<2x128xf32>
    %80 = arith.negf %78 : vector<2x128xf32>
    %81 = math.exp %80 : vector<2x128xf32>
    %cst_22 = arith.constant 1.000000e+00 : f32
    %82 = vector.broadcast %cst_22 : f32 to vector<2x128xf32>
    %83 = arith.addf %82, %81 : vector<2x128xf32>
    %84 = arith.divf %82, %83 : vector<2x128xf32>
    %85 = arith.select %5, %79, %84 : vector<2x128xi1>, vector<2x128xf32>
    %86 = vector.extract_strided_slice %85 {offsets = [0, 0], sizes = [2, 32], strides = [1, 1]} : vector<2x128xf32> to vector<2x32xf32>
    %87 = vector.extract_strided_slice %85 {offsets = [0, 32], sizes = [2, 32], strides = [1, 1]} : vector<2x128xf32> to vector<2x32xf32>
    %88 = vector.extract_strided_slice %85 {offsets = [0, 64], sizes = [2, 32], strides = [1, 1]} : vector<2x128xf32> to vector<2x32xf32>
    %89 = vector.extract_strided_slice %85 {offsets = [0, 96], sizes = [2, 32], strides = [1, 1]} : vector<2x128xf32> to vector<2x32xf32>
    %90 = arith.mulf %87, %63 : vector<2x32xf32>
    %91 = arith.mulf %86, %88 : vector<2x32xf32>
    %92 = arith.addf %90, %91 : vector<2x32xf32>
    %93 = math.tanh %92 : vector<2x32xf32>
    %94 = arith.mulf %89, %93 : vector<2x32xf32>
    %95 = arith.negf %94 : vector<2x32xf32>
    %96 = math.exp %95 : vector<2x32xf32>
    %cst_23 = arith.constant 1.000000e+00 : f32
    %97 = vector.broadcast %cst_23 : f32 to vector<2x32xf32>
    %98 = arith.addf %97, %96 : vector<2x32xf32>
    %99 = arith.divf %97, %98 : vector<2x32xf32>
    %100 = arith.mulf %94, %99 : vector<2x32xf32>
    %c0_24 = arith.constant 0 : index
    %c2 = arith.constant 2 : index
    %c0_25 = arith.constant 0 : index
    %101 = vector.load %arg11[%c0_24, %c2, %c0_25] : memref<2x8x32xf32, #tpu.memory_space<vmem>>, vector<2x1x32xf32>
    %102 = vector.shape_cast %101 : vector<2x1x32xf32> to vector<2x32xf32>
    %103 = vector.shape_cast %100 : vector<2x32xf32> to vector<2x1x32xf32>
    tpu.vector_store %arg11[%c0_24, %c2, %c0_25], %103 {strides = array<i32>} : memref<2x8x32xf32, #tpu.memory_space<vmem>>, vector<2x1x32xf32>,
    %104 = vector.extract_strided_slice %13 {offsets = [0, 3, 0], sizes = [2, 1, 128], strides = [1, 1, 1]} : vector<2x8x128xf32> to vector<2x1x128xf32>
    %105 = vector.shape_cast %104 : vector<2x1x128xf32> to vector<2x128xf32>
    %cst_26 = arith.constant dense<0.000000e+00> : vector<2x128xf32>
    %106 = tpu.matmul %94, %14, %cst_26 {dimension_numbers = #tpu.dot_dimension_numbers<[1], [0], [0], [1], [0, 0, 1, 1], [], []>} : vector<2x32xf32>, vector<32x128xf32>, vector<2x128xf32> -> vector<2x128xf32>
    %107 = arith.addf %105, %106 : vector<2x128xf32>
    %108 = math.tanh %107 : vector<2x128xf32>
    %109 = arith.negf %107 : vector<2x128xf32>
    %110 = math.exp %109 : vector<2x128xf32>
    %cst_27 = arith.constant 1.000000e+00 : f32
    %111 = vector.broadcast %cst_27 : f32 to vector<2x128xf32>
    %112 = arith.addf %111, %110 : vector<2x128xf32>
    %113 = arith.divf %111, %112 : vector<2x128xf32>
    %114 = arith.select %5, %108, %113 : vector<2x128xi1>, vector<2x128xf32>
    %115 = vector.extract_strided_slice %114 {offsets = [0, 0], sizes = [2, 32], strides = [1, 1]} : vector<2x128xf32> to vector<2x32xf32>
    %116 = vector.extract_strided_slice %114 {offsets = [0, 32], sizes = [2, 32], strides = [1, 1]} : vector<2x128xf32> to vector<2x32xf32>
    %117 = vector.extract_strided_slice %114 {offsets = [0, 64], sizes = [2, 32], strides = [1, 1]} : vector<2x128xf32> to vector<2x32xf32>
    %118 = vector.extract_strided_slice %114 {offsets = [0, 96], sizes = [2, 32], strides = [1, 1]} : vector<2x128xf32> to vector<2x32xf32>
    %119 = arith.mulf %116, %92 : vector<2x32xf32>
    %120 = arith.mulf %115, %117 : vector<2x32xf32>
    %121 = arith.addf %119, %120 : vector<2x32xf32>
    %122 = math.tanh %121 : vector<2x32xf32>
    %123 = arith.mulf %118, %122 : vector<2x32xf32>
    %124 = arith.negf %123 : vector<2x32xf32>
    %125 = math.exp %124 : vector<2x32xf32>
    %cst_28 = arith.constant 1.000000e+00 : f32
    %126 = vector.broadcast %cst_28 : f32 to vector<2x32xf32>
    %127 = arith.addf %126, %125 : vector<2x32xf32>
    %128 = arith.divf %126, %127 : vector<2x32xf32>
    %129 = arith.mulf %123, %128 : vector<2x32xf32>
    %c0_29 = arith.constant 0 : index
    %c3 = arith.constant 3 : index
    %c0_30 = arith.constant 0 : index
    %130 = vector.load %arg11[%c0_29, %c3, %c0_30] : memref<2x8x32xf32, #tpu.memory_space<vmem>>, vector<2x1x32xf32>
    %131 = vector.shape_cast %130 : vector<2x1x32xf32> to vector<2x32xf32>
    %132 = vector.shape_cast %129 : vector<2x32xf32> to vector<2x1x32xf32>
    tpu.vector_store %arg11[%c0_29, %c3, %c0_30], %132 {strides = array<i32>} : memref<2x8x32xf32, #tpu.memory_space<vmem>>, vector<2x1x32xf32>,
    %133 = vector.extract_strided_slice %13 {offsets = [0, 4, 0], sizes = [2, 1, 128], strides = [1, 1, 1]} : vector<2x8x128xf32> to vector<2x1x128xf32>
    %134 = vector.shape_cast %133 : vector<2x1x128xf32> to vector<2x128xf32>
    %cst_31 = arith.constant dense<0.000000e+00> : vector<2x128xf32>
    %135 = tpu.matmul %123, %14, %cst_31 {dimension_numbers = #tpu.dot_dimension_numbers<[1], [0], [0], [1], [0, 0, 1, 1], [], []>} : vector<2x32xf32>, vector<32x128xf32>, vector<2x128xf32> -> vector<2x128xf32>
    %136 = arith.addf %134, %135 : vector<2x128xf32>
    %137 = math.tanh %136 : vector<2x128xf32>
    %138 = arith.negf %136 : vector<2x128xf32>
    %139 = math.exp %138 : vector<2x128xf32>
    %cst_32 = arith.constant 1.000000e+00 : f32
    %140 = vector.broadcast %cst_32 : f32 to vector<2x128xf32>
    %141 = arith.addf %140, %139 : vector<2x128xf32>
    %142 = arith.divf %140, %141 : vector<2x128xf32>
    %143 = arith.select %5, %137, %142 : vector<2x128xi1>, vector<2x128xf32>
    %144 = vector.extract_strided_slice %143 {offsets = [0, 0], sizes = [2, 32], strides = [1, 1]} : vector<2x128xf32> to vector<2x32xf32>
    %145 = vector.extract_strided_slice %143 {offsets = [0, 32], sizes = [2, 32], strides = [1, 1]} : vector<2x128xf32> to vector<2x32xf32>
    %146 = vector.extract_strided_slice %143 {offsets = [0, 64], sizes = [2, 32], strides = [1, 1]} : vector<2x128xf32> to vector<2x32xf32>
    %147 = vector.extract_strided_slice %143 {offsets = [0, 96], sizes = [2, 32], strides = [1, 1]} : vector<2x128xf32> to vector<2x32xf32>
    %148 = arith.mulf %145, %121 : vector<2x32xf32>
    %149 = arith.mulf %144, %146 : vector<2x32xf32>
    %150 = arith.addf %148, %149 : vector<2x32xf32>
    %151 = math.tanh %150 : vector<2x32xf32>
    %152 = arith.mulf %147, %151 : vector<2x32xf32>
    %153 = arith.negf %152 : vector<2x32xf32>
    %154 = math.exp %153 : vector<2x32xf32>
    %cst_33 = arith.constant 1.000000e+00 : f32
    %155 = vector.broadcast %cst_33 : f32 to vector<2x32xf32>
    %156 = arith.addf %155, %154 : vector<2x32xf32>
    %157 = arith.divf %155, %156 : vector<2x32xf32>
    %158 = arith.mulf %152, %157 : vector<2x32xf32>
    %c0_34 = arith.constant 0 : index
    %c4 = arith.constant 4 : index
    %c0_35 = arith.constant 0 : index
    %159 = vector.load %arg11[%c0_34, %c4, %c0_35] : memref<2x8x32xf32, #tpu.memory_space<vmem>>, vector<2x1x32xf32>
    %160 = vector.shape_cast %159 : vector<2x1x32xf32> to vector<2x32xf32>
    %161 = vector.shape_cast %158 : vector<2x32xf32> to vector<2x1x32xf32>
    tpu.vector_store %arg11[%c0_34, %c4, %c0_35], %161 {strides = array<i32>} : memref<2x8x32xf32, #tpu.memory_space<vmem>>, vector<2x1x32xf32>,
    %162 = vector.extract_strided_slice %13 {offsets = [0, 5, 0], sizes = [2, 1, 128], strides = [1, 1, 1]} : vector<2x8x128xf32> to vector<2x1x128xf32>
    %163 = vector.shape_cast %162 : vector<2x1x128xf32> to vector<2x128xf32>
    %cst_36 = arith.constant dense<0.000000e+00> : vector<2x128xf32>
    %164 = tpu.matmul %152, %14, %cst_36 {dimension_numbers = #tpu.dot_dimension_numbers<[1], [0], [0], [1], [0, 0, 1, 1], [], []>} : vector<2x32xf32>, vector<32x128xf32>, vector<2x128xf32> -> vector<2x128xf32>
    %165 = arith.addf %163, %164 : vector<2x128xf32>
    %166 = math.tanh %165 : vector<2x128xf32>
    %167 = arith.negf %165 : vector<2x128xf32>
    %168 = math.exp %167 : vector<2x128xf32>
    %cst_37 = arith.constant 1.000000e+00 : f32
    %169 = vector.broadcast %cst_37 : f32 to vector<2x128xf32>
    %170 = arith.addf %169, %168 : vector<2x128xf32>
    %171 = arith.divf %169, %170 : vector<2x128xf32>
    %172 = arith.select %5, %166, %171 : vector<2x128xi1>, vector<2x128xf32>
    %173 = vector.extract_strided_slice %172 {offsets = [0, 0], sizes = [2, 32], strides = [1, 1]} : vector<2x128xf32> to vector<2x32xf32>
    %174 = vector.extract_strided_slice %172 {offsets = [0, 32], sizes = [2, 32], strides = [1, 1]} : vector<2x128xf32> to vector<2x32xf32>
    %175 = vector.extract_strided_slice %172 {offsets = [0, 64], sizes = [2, 32], strides = [1, 1]} : vector<2x128xf32> to vector<2x32xf32>
    %176 = vector.extract_strided_slice %172 {offsets = [0, 96], sizes = [2, 32], strides = [1, 1]} : vector<2x128xf32> to vector<2x32xf32>
    %177 = arith.mulf %174, %150 : vector<2x32xf32>
    %178 = arith.mulf %173, %175 : vector<2x32xf32>
    %179 = arith.addf %177, %178 : vector<2x32xf32>
    %180 = math.tanh %179 : vector<2x32xf32>
    %181 = arith.mulf %176, %180 : vector<2x32xf32>
    %182 = arith.negf %181 : vector<2x32xf32>
    %183 = math.exp %182 : vector<2x32xf32>
    %cst_38 = arith.constant 1.000000e+00 : f32
    %184 = vector.broadcast %cst_38 : f32 to vector<2x32xf32>
    %185 = arith.addf %184, %183 : vector<2x32xf32>
    %186 = arith.divf %184, %185 : vector<2x32xf32>
    %187 = arith.mulf %181, %186 : vector<2x32xf32>
    %c0_39 = arith.constant 0 : index
    %c5 = arith.constant 5 : index
    %c0_40 = arith.constant 0 : index
    %188 = vector.load %arg11[%c0_39, %c5, %c0_40] : memref<2x8x32xf32, #tpu.memory_space<vmem>>, vector<2x1x32xf32>
    %189 = vector.shape_cast %188 : vector<2x1x32xf32> to vector<2x32xf32>
    %190 = vector.shape_cast %187 : vector<2x32xf32> to vector<2x1x32xf32>
    tpu.vector_store %arg11[%c0_39, %c5, %c0_40], %190 {strides = array<i32>} : memref<2x8x32xf32, #tpu.memory_space<vmem>>, vector<2x1x32xf32>,
    %191 = vector.extract_strided_slice %13 {offsets = [0, 6, 0], sizes = [2, 1, 128], strides = [1, 1, 1]} : vector<2x8x128xf32> to vector<2x1x128xf32>
    %192 = vector.shape_cast %191 : vector<2x1x128xf32> to vector<2x128xf32>
    %cst_41 = arith.constant dense<0.000000e+00> : vector<2x128xf32>
    %193 = tpu.matmul %181, %14, %cst_41 {dimension_numbers = #tpu.dot_dimension_numbers<[1], [0], [0], [1], [0, 0, 1, 1], [], []>} : vector<2x32xf32>, vector<32x128xf32>, vector<2x128xf32> -> vector<2x128xf32>
    %194 = arith.addf %192, %193 : vector<2x128xf32>
    %195 = math.tanh %194 : vector<2x128xf32>
    %196 = arith.negf %194 : vector<2x128xf32>
    %197 = math.exp %196 : vector<2x128xf32>
    %cst_42 = arith.constant 1.000000e+00 : f32
    %198 = vector.broadcast %cst_42 : f32 to vector<2x128xf32>
    %199 = arith.addf %198, %197 : vector<2x128xf32>
    %200 = arith.divf %198, %199 : vector<2x128xf32>
    %201 = arith.select %5, %195, %200 : vector<2x128xi1>, vector<2x128xf32>
    %202 = vector.extract_strided_slice %201 {offsets = [0, 0], sizes = [2, 32], strides = [1, 1]} : vector<2x128xf32> to vector<2x32xf32>
    %203 = vector.extract_strided_slice %201 {offsets = [0, 32], sizes = [2, 32], strides = [1, 1]} : vector<2x128xf32> to vector<2x32xf32>
    %204 = vector.extract_strided_slice %201 {offsets = [0, 64], sizes = [2, 32], strides = [1, 1]} : vector<2x128xf32> to vector<2x32xf32>
    %205 = vector.extract_strided_slice %201 {offsets = [0, 96], sizes = [2, 32], strides = [1, 1]} : vector<2x128xf32> to vector<2x32xf32>
    %206 = arith.mulf %203, %179 : vector<2x32xf32>
    %207 = arith.mulf %202, %204 : vector<2x32xf32>
    %208 = arith.addf %206, %207 : vector<2x32xf32>
    %209 = math.tanh %208 : vector<2x32xf32>
    %210 = arith.mulf %205, %209 : vector<2x32xf32>
    %211 = arith.negf %210 : vector<2x32xf32>
    %212 = math.exp %211 : vector<2x32xf32>
    %cst_43 = arith.constant 1.000000e+00 : f32
    %213 = vector.broadcast %cst_43 : f32 to vector<2x32xf32>
    %214 = arith.addf %213, %212 : vector<2x32xf32>
    %215 = arith.divf %213, %214 : vector<2x32xf32>
    %216 = arith.mulf %210, %215 : vector<2x32xf32>
    %c0_44 = arith.constant 0 : index
    %c6 = arith.constant 6 : index
    %c0_45 = arith.constant 0 : index
    %217 = vector.load %arg11[%c0_44, %c6, %c0_45] : memref<2x8x32xf32, #tpu.memory_space<vmem>>, vector<2x1x32xf32>
    %218 = vector.shape_cast %217 : vector<2x1x32xf32> to vector<2x32xf32>
    %219 = vector.shape_cast %216 : vector<2x32xf32> to vector<2x1x32xf32>
    tpu.vector_store %arg11[%c0_44, %c6, %c0_45], %219 {strides = array<i32>} : memref<2x8x32xf32, #tpu.memory_space<vmem>>, vector<2x1x32xf32>,
    %220 = vector.extract_strided_slice %13 {offsets = [0, 7, 0], sizes = [2, 1, 128], strides = [1, 1, 1]} : vector<2x8x128xf32> to vector<2x1x128xf32>
    %221 = vector.shape_cast %220 : vector<2x1x128xf32> to vector<2x128xf32>
    %cst_46 = arith.constant dense<0.000000e+00> : vector<2x128xf32>
    %222 = tpu.matmul %210, %14, %cst_46 {dimension_numbers = #tpu.dot_dimension_numbers<[1], [0], [0], [1], [0, 0, 1, 1], [], []>} : vector<2x32xf32>, vector<32x128xf32>, vector<2x128xf32> -> vector<2x128xf32>
    %223 = arith.addf %221, %222 : vector<2x128xf32>
    %224 = math.tanh %223 : vector<2x128xf32>
    %225 = arith.negf %223 : vector<2x128xf32>
    %226 = math.exp %225 : vector<2x128xf32>
    %cst_47 = arith.constant 1.000000e+00 : f32
    %227 = vector.broadcast %cst_47 : f32 to vector<2x128xf32>
    %228 = arith.addf %227, %226 : vector<2x128xf32>
    %229 = arith.divf %227, %228 : vector<2x128xf32>
    %230 = arith.select %5, %224, %229 : vector<2x128xi1>, vector<2x128xf32>
    %231 = vector.extract_strided_slice %230 {offsets = [0, 0], sizes = [2, 32], strides = [1, 1]} : vector<2x128xf32> to vector<2x32xf32>
    %232 = vector.extract_strided_slice %230 {offsets = [0, 32], sizes = [2, 32], strides = [1, 1]} : vector<2x128xf32> to vector<2x32xf32>
    %233 = vector.extract_strided_slice %230 {offsets = [0, 64], sizes = [2, 32], strides = [1, 1]} : vector<2x128xf32> to vector<2x32xf32>
    %234 = vector.extract_strided_slice %230 {offsets = [0, 96], sizes = [2, 32], strides = [1, 1]} : vector<2x128xf32> to vector<2x32xf32>
    %235 = arith.mulf %232, %208 : vector<2x32xf32>
    %236 = arith.mulf %231, %233 : vector<2x32xf32>
    %237 = arith.addf %235, %236 : vector<2x32xf32>
    %238 = math.tanh %237 : vector<2x32xf32>
    %239 = arith.mulf %234, %238 : vector<2x32xf32>
    %240 = arith.negf %239 : vector<2x32xf32>
    %241 = math.exp %240 : vector<2x32xf32>
    %cst_48 = arith.constant 1.000000e+00 : f32
    %242 = vector.broadcast %cst_48 : f32 to vector<2x32xf32>
    %243 = arith.addf %242, %241 : vector<2x32xf32>
    %244 = arith.divf %242, %243 : vector<2x32xf32>
    %245 = arith.mulf %239, %244 : vector<2x32xf32>
    %c0_49 = arith.constant 0 : index
    %c7 = arith.constant 7 : index
    %c0_50 = arith.constant 0 : index
    %246 = vector.load %arg11[%c0_49, %c7, %c0_50] : memref<2x8x32xf32, #tpu.memory_space<vmem>>, vector<2x1x32xf32>
    %247 = vector.shape_cast %246 : vector<2x1x32xf32> to vector<2x32xf32>
    %248 = vector.shape_cast %245 : vector<2x32xf32> to vector<2x1x32xf32>
    tpu.vector_store %arg11[%c0_49, %c7, %c0_50], %248 {strides = array<i32>} : memref<2x8x32xf32, #tpu.memory_space<vmem>>, vector<2x1x32xf32>,
    %c0_51 = arith.constant 0 : index
    %c0_52 = arith.constant 0 : index
    %c0_53 = arith.constant 0 : index
    %249 = vector.load %arg11[%c0_51, %c0_52, %c0_53] : memref<2x8x32xf32, #tpu.memory_space<vmem>>, vector<2x8x32xf32>
    %250 = vector.shape_cast %249 : vector<2x8x32xf32> to vector<16x32xf32>
    %c0_54 = arith.constant 0 : index
    %c0_55 = arith.constant 0 : index
    %251 = vector.load %arg5[%c0_54, %c0_55] : memref<32x128xf32, #tpu.memory_space<vmem>>, vector<32x128xf32>
    %cst_56 = arith.constant dense<0.000000e+00> : vector<16x128xf32>
    %252 = tpu.matmul %250, %251, %cst_56 {dimension_numbers = #tpu.dot_dimension_numbers<[1], [0], [0], [1], [0, 0, 1, 1], [], []>} : vector<16x32xf32>, vector<32x128xf32>, vector<16x128xf32> -> vector<16x128xf32>
    %c0_57 = arith.constant 0 : index
    %c0_58 = arith.constant 0 : index
    %253 = vector.load %arg7[%c0_57, %c0_58] : memref<1x128xf32, #tpu.memory_space<vmem>>, vector<1x128xf32>
    %254 = vector.broadcast %253 : vector<1x128xf32> to vector<16x128xf32>
    %255 = arith.addf %252, %254 : vector<16x128xf32>
    %256 = vector.shape_cast %255 : vector<16x128xf32> to vector<2x8x128xf32>
    %c0_59 = arith.constant 0 : index
    %c0_60 = arith.constant 0 : index
    %257 = vector.load %arg6[%c0_59, %c0_60] : memref<32x128xf32, #tpu.memory_space<vmem>>, vector<32x128xf32>
    %cst_61 = arith.constant 0.000000e+00 : f32
    %258 = vector.broadcast %cst_61 : f32 to vector<2x32xf32>
    %cst_62 = arith.constant 0.000000e+00 : f32
    %259 = vector.broadcast %cst_62 : f32 to vector<2x32xf32>
    %260 = vector.extract_strided_slice %256 {offsets = [0, 0, 0], sizes = [2, 1, 128], strides = [1, 1, 1]} : vector<2x8x128xf32> to vector<2x1x128xf32>
    %261 = vector.shape_cast %260 : vector<2x1x128xf32> to vector<2x128xf32>
    %cst_63 = arith.constant dense<0.000000e+00> : vector<2x128xf32>
    %262 = tpu.matmul %258, %257, %cst_63 {dimension_numbers = #tpu.dot_dimension_numbers<[1], [0], [0], [1], [0, 0, 1, 1], [], []>} : vector<2x32xf32>, vector<32x128xf32>, vector<2x128xf32> -> vector<2x128xf32>
    %263 = arith.addf %261, %262 : vector<2x128xf32>
    %264 = math.tanh %263 : vector<2x128xf32>
    %265 = arith.negf %263 : vector<2x128xf32>
    %266 = math.exp %265 : vector<2x128xf32>
    %cst_64 = arith.constant 1.000000e+00 : f32
    %267 = vector.broadcast %cst_64 : f32 to vector<2x128xf32>
    %268 = arith.addf %267, %266 : vector<2x128xf32>
    %269 = arith.divf %267, %268 : vector<2x128xf32>
    %270 = arith.select %5, %264, %269 : vector<2x128xi1>, vector<2x128xf32>
    %271 = vector.extract_strided_slice %270 {offsets = [0, 0], sizes = [2, 32], strides = [1, 1]} : vector<2x128xf32> to vector<2x32xf32>
    %272 = vector.extract_strided_slice %270 {offsets = [0, 32], sizes = [2, 32], strides = [1, 1]} : vector<2x128xf32> to vector<2x32xf32>
    %273 = vector.extract_strided_slice %270 {offsets = [0, 64], sizes = [2, 32], strides = [1, 1]} : vector<2x128xf32> to vector<2x32xf32>
    %274 = vector.extract_strided_slice %270 {offsets = [0, 96], sizes = [2, 32], strides = [1, 1]} : vector<2x128xf32> to vector<2x32xf32>
    %275 = arith.mulf %272, %259 : vector<2x32xf32>
    %276 = arith.mulf %271, %273 : vector<2x32xf32>
    %277 = arith.addf %275, %276 : vector<2x32xf32>
    %278 = math.tanh %277 : vector<2x32xf32>
    %279 = arith.mulf %274, %278 : vector<2x32xf32>
    %c0_65 = arith.constant 0 : index
    %c0_66 = arith.constant 0 : index
    %c0_67 = arith.constant 0 : index
    %280 = vector.load %arg11[%c0_65, %c0_66, %c0_67] : memref<2x8x32xf32, #tpu.memory_space<vmem>>, vector<2x1x32xf32>
    %281 = vector.shape_cast %280 : vector<2x1x32xf32> to vector<2x32xf32>
    %282 = vector.shape_cast %279 : vector<2x32xf32> to vector<2x1x32xf32>
    tpu.vector_store %arg11[%c0_65, %c0_66, %c0_67], %282 {strides = array<i32>} : memref<2x8x32xf32, #tpu.memory_space<vmem>>, vector<2x1x32xf32>,
    %283 = vector.extract_strided_slice %256 {offsets = [0, 1, 0], sizes = [2, 1, 128], strides = [1, 1, 1]} : vector<2x8x128xf32> to vector<2x1x128xf32>
    %284 = vector.shape_cast %283 : vector<2x1x128xf32> to vector<2x128xf32>
    %cst_68 = arith.constant dense<0.000000e+00> : vector<2x128xf32>
    %285 = tpu.matmul %279, %257, %cst_68 {dimension_numbers = #tpu.dot_dimension_numbers<[1], [0], [0], [1], [0, 0, 1, 1], [], []>} : vector<2x32xf32>, vector<32x128xf32>, vector<2x128xf32> -> vector<2x128xf32>
    %286 = arith.addf %284, %285 : vector<2x128xf32>
    %287 = math.tanh %286 : vector<2x128xf32>
    %288 = arith.negf %286 : vector<2x128xf32>
    %289 = math.exp %288 : vector<2x128xf32>
    %cst_69 = arith.constant 1.000000e+00 : f32
    %290 = vector.broadcast %cst_69 : f32 to vector<2x128xf32>
    %291 = arith.addf %290, %289 : vector<2x128xf32>
    %292 = arith.divf %290, %291 : vector<2x128xf32>
    %293 = arith.select %5, %287, %292 : vector<2x128xi1>, vector<2x128xf32>
    %294 = vector.extract_strided_slice %293 {offsets = [0, 0], sizes = [2, 32], strides = [1, 1]} : vector<2x128xf32> to vector<2x32xf32>
    %295 = vector.extract_strided_slice %293 {offsets = [0, 32], sizes = [2, 32], strides = [1, 1]} : vector<2x128xf32> to vector<2x32xf32>
    %296 = vector.extract_strided_slice %293 {offsets = [0, 64], sizes = [2, 32], strides = [1, 1]} : vector<2x128xf32> to vector<2x32xf32>
    %297 = vector.extract_strided_slice %293 {offsets = [0, 96], sizes = [2, 32], strides = [1, 1]} : vector<2x128xf32> to vector<2x32xf32>
    %298 = arith.mulf %295, %277 : vector<2x32xf32>
    %299 = arith.mulf %294, %296 : vector<2x32xf32>
    %300 = arith.addf %298, %299 : vector<2x32xf32>
    %301 = math.tanh %300 : vector<2x32xf32>
    %302 = arith.mulf %297, %301 : vector<2x32xf32>
    %c0_70 = arith.constant 0 : index
    %c1_71 = arith.constant 1 : index
    %c0_72 = arith.constant 0 : index
    %303 = vector.load %arg11[%c0_70, %c1_71, %c0_72] : memref<2x8x32xf32, #tpu.memory_space<vmem>>, vector<2x1x32xf32>
    %304 = vector.shape_cast %303 : vector<2x1x32xf32> to vector<2x32xf32>
    %305 = vector.shape_cast %302 : vector<2x32xf32> to vector<2x1x32xf32>
    tpu.vector_store %arg11[%c0_70, %c1_71, %c0_72], %305 {strides = array<i32>} : memref<2x8x32xf32, #tpu.memory_space<vmem>>, vector<2x1x32xf32>,
    %306 = vector.extract_strided_slice %256 {offsets = [0, 2, 0], sizes = [2, 1, 128], strides = [1, 1, 1]} : vector<2x8x128xf32> to vector<2x1x128xf32>
    %307 = vector.shape_cast %306 : vector<2x1x128xf32> to vector<2x128xf32>
    %cst_73 = arith.constant dense<0.000000e+00> : vector<2x128xf32>
    %308 = tpu.matmul %302, %257, %cst_73 {dimension_numbers = #tpu.dot_dimension_numbers<[1], [0], [0], [1], [0, 0, 1, 1], [], []>} : vector<2x32xf32>, vector<32x128xf32>, vector<2x128xf32> -> vector<2x128xf32>
    %309 = arith.addf %307, %308 : vector<2x128xf32>
    %310 = math.tanh %309 : vector<2x128xf32>
    %311 = arith.negf %309 : vector<2x128xf32>
    %312 = math.exp %311 : vector<2x128xf32>
    %cst_74 = arith.constant 1.000000e+00 : f32
    %313 = vector.broadcast %cst_74 : f32 to vector<2x128xf32>
    %314 = arith.addf %313, %312 : vector<2x128xf32>
    %315 = arith.divf %313, %314 : vector<2x128xf32>
    %316 = arith.select %5, %310, %315 : vector<2x128xi1>, vector<2x128xf32>
    %317 = vector.extract_strided_slice %316 {offsets = [0, 0], sizes = [2, 32], strides = [1, 1]} : vector<2x128xf32> to vector<2x32xf32>
    %318 = vector.extract_strided_slice %316 {offsets = [0, 32], sizes = [2, 32], strides = [1, 1]} : vector<2x128xf32> to vector<2x32xf32>
    %319 = vector.extract_strided_slice %316 {offsets = [0, 64], sizes = [2, 32], strides = [1, 1]} : vector<2x128xf32> to vector<2x32xf32>
    %320 = vector.extract_strided_slice %316 {offsets = [0, 96], sizes = [2, 32], strides = [1, 1]} : vector<2x128xf32> to vector<2x32xf32>
    %321 = arith.mulf %318, %300 : vector<2x32xf32>
    %322 = arith.mulf %317, %319 : vector<2x32xf32>
    %323 = arith.addf %321, %322 : vector<2x32xf32>
    %324 = math.tanh %323 : vector<2x32xf32>
    %325 = arith.mulf %320, %324 : vector<2x32xf32>
    %c0_75 = arith.constant 0 : index
    %c2_76 = arith.constant 2 : index
    %c0_77 = arith.constant 0 : index
    %326 = vector.load %arg11[%c0_75, %c2_76, %c0_77] : memref<2x8x32xf32, #tpu.memory_space<vmem>>, vector<2x1x32xf32>
    %327 = vector.shape_cast %326 : vector<2x1x32xf32> to vector<2x32xf32>
    %328 = vector.shape_cast %325 : vector<2x32xf32> to vector<2x1x32xf32>
    tpu.vector_store %arg11[%c0_75, %c2_76, %c0_77], %328 {strides = array<i32>} : memref<2x8x32xf32, #tpu.memory_space<vmem>>, vector<2x1x32xf32>,
    %329 = vector.extract_strided_slice %256 {offsets = [0, 3, 0], sizes = [2, 1, 128], strides = [1, 1, 1]} : vector<2x8x128xf32> to vector<2x1x128xf32>
    %330 = vector.shape_cast %329 : vector<2x1x128xf32> to vector<2x128xf32>
    %cst_78 = arith.constant dense<0.000000e+00> : vector<2x128xf32>
    %331 = tpu.matmul %325, %257, %cst_78 {dimension_numbers = #tpu.dot_dimension_numbers<[1], [0], [0], [1], [0, 0, 1, 1], [], []>} : vector<2x32xf32>, vector<32x128xf32>, vector<2x128xf32> -> vector<2x128xf32>
    %332 = arith.addf %330, %331 : vector<2x128xf32>
    %333 = math.tanh %332 : vector<2x128xf32>
    %334 = arith.negf %332 : vector<2x128xf32>
    %335 = math.exp %334 : vector<2x128xf32>
    %cst_79 = arith.constant 1.000000e+00 : f32
    %336 = vector.broadcast %cst_79 : f32 to vector<2x128xf32>
    %337 = arith.addf %336, %335 : vector<2x128xf32>
    %338 = arith.divf %336, %337 : vector<2x128xf32>
    %339 = arith.select %5, %333, %338 : vector<2x128xi1>, vector<2x128xf32>
    %340 = vector.extract_strided_slice %339 {offsets = [0, 0], sizes = [2, 32], strides = [1, 1]} : vector<2x128xf32> to vector<2x32xf32>
    %341 = vector.extract_strided_slice %339 {offsets = [0, 32], sizes = [2, 32], strides = [1, 1]} : vector<2x128xf32> to vector<2x32xf32>
    %342 = vector.extract_strided_slice %339 {offsets = [0, 64], sizes = [2, 32], strides = [1, 1]} : vector<2x128xf32> to vector<2x32xf32>
    %343 = vector.extract_strided_slice %339 {offsets = [0, 96], sizes = [2, 32], strides = [1, 1]} : vector<2x128xf32> to vector<2x32xf32>
    %344 = arith.mulf %341, %323 : vector<2x32xf32>
    %345 = arith.mulf %340, %342 : vector<2x32xf32>
    %346 = arith.addf %344, %345 : vector<2x32xf32>
    %347 = math.tanh %346 : vector<2x32xf32>
    %348 = arith.mulf %343, %347 : vector<2x32xf32>
    %c0_80 = arith.constant 0 : index
    %c3_81 = arith.constant 3 : index
    %c0_82 = arith.constant 0 : index
    %349 = vector.load %arg11[%c0_80, %c3_81, %c0_82] : memref<2x8x32xf32, #tpu.memory_space<vmem>>, vector<2x1x32xf32>
    %350 = vector.shape_cast %349 : vector<2x1x32xf32> to vector<2x32xf32>
    %351 = vector.shape_cast %348 : vector<2x32xf32> to vector<2x1x32xf32>
    tpu.vector_store %arg11[%c0_80, %c3_81, %c0_82], %351 {strides = array<i32>} : memref<2x8x32xf32, #tpu.memory_space<vmem>>, vector<2x1x32xf32>,
    %352 = vector.extract_strided_slice %256 {offsets = [0, 4, 0], sizes = [2, 1, 128], strides = [1, 1, 1]} : vector<2x8x128xf32> to vector<2x1x128xf32>
    %353 = vector.shape_cast %352 : vector<2x1x128xf32> to vector<2x128xf32>
    %cst_83 = arith.constant dense<0.000000e+00> : vector<2x128xf32>
    %354 = tpu.matmul %348, %257, %cst_83 {dimension_numbers = #tpu.dot_dimension_numbers<[1], [0], [0], [1], [0, 0, 1, 1], [], []>} : vector<2x32xf32>, vector<32x128xf32>, vector<2x128xf32> -> vector<2x128xf32>
    %355 = arith.addf %353, %354 : vector<2x128xf32>
    %356 = math.tanh %355 : vector<2x128xf32>
    %357 = arith.negf %355 : vector<2x128xf32>
    %358 = math.exp %357 : vector<2x128xf32>
    %cst_84 = arith.constant 1.000000e+00 : f32
    %359 = vector.broadcast %cst_84 : f32 to vector<2x128xf32>
    %360 = arith.addf %359, %358 : vector<2x128xf32>
    %361 = arith.divf %359, %360 : vector<2x128xf32>
    %362 = arith.select %5, %356, %361 : vector<2x128xi1>, vector<2x128xf32>
    %363 = vector.extract_strided_slice %362 {offsets = [0, 0], sizes = [2, 32], strides = [1, 1]} : vector<2x128xf32> to vector<2x32xf32>
    %364 = vector.extract_strided_slice %362 {offsets = [0, 32], sizes = [2, 32], strides = [1, 1]} : vector<2x128xf32> to vector<2x32xf32>
    %365 = vector.extract_strided_slice %362 {offsets = [0, 64], sizes = [2, 32], strides = [1, 1]} : vector<2x128xf32> to vector<2x32xf32>
    %366 = vector.extract_strided_slice %362 {offsets = [0, 96], sizes = [2, 32], strides = [1, 1]} : vector<2x128xf32> to vector<2x32xf32>
    %367 = arith.mulf %364, %346 : vector<2x32xf32>
    %368 = arith.mulf %363, %365 : vector<2x32xf32>
    %369 = arith.addf %367, %368 : vector<2x32xf32>
    %370 = math.tanh %369 : vector<2x32xf32>
    %371 = arith.mulf %366, %370 : vector<2x32xf32>
    %c0_85 = arith.constant 0 : index
    %c4_86 = arith.constant 4 : index
    %c0_87 = arith.constant 0 : index
    %372 = vector.load %arg11[%c0_85, %c4_86, %c0_87] : memref<2x8x32xf32, #tpu.memory_space<vmem>>, vector<2x1x32xf32>
    %373 = vector.shape_cast %372 : vector<2x1x32xf32> to vector<2x32xf32>
    %374 = vector.shape_cast %371 : vector<2x32xf32> to vector<2x1x32xf32>
    tpu.vector_store %arg11[%c0_85, %c4_86, %c0_87], %374 {strides = array<i32>} : memref<2x8x32xf32, #tpu.memory_space<vmem>>, vector<2x1x32xf32>,
    %375 = vector.extract_strided_slice %256 {offsets = [0, 5, 0], sizes = [2, 1, 128], strides = [1, 1, 1]} : vector<2x8x128xf32> to vector<2x1x128xf32>
    %376 = vector.shape_cast %375 : vector<2x1x128xf32> to vector<2x128xf32>
    %cst_88 = arith.constant dense<0.000000e+00> : vector<2x128xf32>
    %377 = tpu.matmul %371, %257, %cst_88 {dimension_numbers = #tpu.dot_dimension_numbers<[1], [0], [0], [1], [0, 0, 1, 1], [], []>} : vector<2x32xf32>, vector<32x128xf32>, vector<2x128xf32> -> vector<2x128xf32>
    %378 = arith.addf %376, %377 : vector<2x128xf32>
    %379 = math.tanh %378 : vector<2x128xf32>
    %380 = arith.negf %378 : vector<2x128xf32>
    %381 = math.exp %380 : vector<2x128xf32>
    %cst_89 = arith.constant 1.000000e+00 : f32
    %382 = vector.broadcast %cst_89 : f32 to vector<2x128xf32>
    %383 = arith.addf %382, %381 : vector<2x128xf32>
    %384 = arith.divf %382, %383 : vector<2x128xf32>
    %385 = arith.select %5, %379, %384 : vector<2x128xi1>, vector<2x128xf32>
    %386 = vector.extract_strided_slice %385 {offsets = [0, 0], sizes = [2, 32], strides = [1, 1]} : vector<2x128xf32> to vector<2x32xf32>
    %387 = vector.extract_strided_slice %385 {offsets = [0, 32], sizes = [2, 32], strides = [1, 1]} : vector<2x128xf32> to vector<2x32xf32>
    %388 = vector.extract_strided_slice %385 {offsets = [0, 64], sizes = [2, 32], strides = [1, 1]} : vector<2x128xf32> to vector<2x32xf32>
    %389 = vector.extract_strided_slice %385 {offsets = [0, 96], sizes = [2, 32], strides = [1, 1]} : vector<2x128xf32> to vector<2x32xf32>
    %390 = arith.mulf %387, %369 : vector<2x32xf32>
    %391 = arith.mulf %386, %388 : vector<2x32xf32>
    %392 = arith.addf %390, %391 : vector<2x32xf32>
    %393 = math.tanh %392 : vector<2x32xf32>
    %394 = arith.mulf %389, %393 : vector<2x32xf32>
    %c0_90 = arith.constant 0 : index
    %c5_91 = arith.constant 5 : index
    %c0_92 = arith.constant 0 : index
    %395 = vector.load %arg11[%c0_90, %c5_91, %c0_92] : memref<2x8x32xf32, #tpu.memory_space<vmem>>, vector<2x1x32xf32>
    %396 = vector.shape_cast %395 : vector<2x1x32xf32> to vector<2x32xf32>
    %397 = vector.shape_cast %394 : vector<2x32xf32> to vector<2x1x32xf32>
    tpu.vector_store %arg11[%c0_90, %c5_91, %c0_92], %397 {strides = array<i32>} : memref<2x8x32xf32, #tpu.memory_space<vmem>>, vector<2x1x32xf32>,
    %398 = vector.extract_strided_slice %256 {offsets = [0, 6, 0], sizes = [2, 1, 128], strides = [1, 1, 1]} : vector<2x8x128xf32> to vector<2x1x128xf32>
    %399 = vector.shape_cast %398 : vector<2x1x128xf32> to vector<2x128xf32>
    %cst_93 = arith.constant dense<0.000000e+00> : vector<2x128xf32>
    %400 = tpu.matmul %394, %257, %cst_93 {dimension_numbers = #tpu.dot_dimension_numbers<[1], [0], [0], [1], [0, 0, 1, 1], [], []>} : vector<2x32xf32>, vector<32x128xf32>, vector<2x128xf32> -> vector<2x128xf32>
    %401 = arith.addf %399, %400 : vector<2x128xf32>
    %402 = math.tanh %401 : vector<2x128xf32>
    %403 = arith.negf %401 : vector<2x128xf32>
    %404 = math.exp %403 : vector<2x128xf32>
    %cst_94 = arith.constant 1.000000e+00 : f32
    %405 = vector.broadcast %cst_94 : f32 to vector<2x128xf32>
    %406 = arith.addf %405, %404 : vector<2x128xf32>
    %407 = arith.divf %405, %406 : vector<2x128xf32>
    %408 = arith.select %5, %402, %407 : vector<2x128xi1>, vector<2x128xf32>
    %409 = vector.extract_strided_slice %408 {offsets = [0, 0], sizes = [2, 32], strides = [1, 1]} : vector<2x128xf32> to vector<2x32xf32>
    %410 = vector.extract_strided_slice %408 {offsets = [0, 32], sizes = [2, 32], strides = [1, 1]} : vector<2x128xf32> to vector<2x32xf32>
    %411 = vector.extract_strided_slice %408 {offsets = [0, 64], sizes = [2, 32], strides = [1, 1]} : vector<2x128xf32> to vector<2x32xf32>
    %412 = vector.extract_strided_slice %408 {offsets = [0, 96], sizes = [2, 32], strides = [1, 1]} : vector<2x128xf32> to vector<2x32xf32>
    %413 = arith.mulf %410, %392 : vector<2x32xf32>
    %414 = arith.mulf %409, %411 : vector<2x32xf32>
    %415 = arith.addf %413, %414 : vector<2x32xf32>
    %416 = math.tanh %415 : vector<2x32xf32>
    %417 = arith.mulf %412, %416 : vector<2x32xf32>
    %c0_95 = arith.constant 0 : index
    %c6_96 = arith.constant 6 : index
    %c0_97 = arith.constant 0 : index
    %418 = vector.load %arg11[%c0_95, %c6_96, %c0_97] : memref<2x8x32xf32, #tpu.memory_space<vmem>>, vector<2x1x32xf32>
    %419 = vector.shape_cast %418 : vector<2x1x32xf32> to vector<2x32xf32>
    %420 = vector.shape_cast %417 : vector<2x32xf32> to vector<2x1x32xf32>
    tpu.vector_store %arg11[%c0_95, %c6_96, %c0_97], %420 {strides = array<i32>} : memref<2x8x32xf32, #tpu.memory_space<vmem>>, vector<2x1x32xf32>,
    %421 = vector.extract_strided_slice %256 {offsets = [0, 7, 0], sizes = [2, 1, 128], strides = [1, 1, 1]} : vector<2x8x128xf32> to vector<2x1x128xf32>
    %422 = vector.shape_cast %421 : vector<2x1x128xf32> to vector<2x128xf32>
    %cst_98 = arith.constant dense<0.000000e+00> : vector<2x128xf32>
    %423 = tpu.matmul %417, %257, %cst_98 {dimension_numbers = #tpu.dot_dimension_numbers<[1], [0], [0], [1], [0, 0, 1, 1], [], []>} : vector<2x32xf32>, vector<32x128xf32>, vector<2x128xf32> -> vector<2x128xf32>
    %424 = arith.addf %422, %423 : vector<2x128xf32>
    %425 = math.tanh %424 : vector<2x128xf32>
    %426 = arith.negf %424 : vector<2x128xf32>
    %427 = math.exp %426 : vector<2x128xf32>
    %cst_99 = arith.constant 1.000000e+00 : f32
    %428 = vector.broadcast %cst_99 : f32 to vector<2x128xf32>
    %429 = arith.addf %428, %427 : vector<2x128xf32>
    %430 = arith.divf %428, %429 : vector<2x128xf32>
    %431 = arith.select %5, %425, %430 : vector<2x128xi1>, vector<2x128xf32>
    %432 = vector.extract_strided_slice %431 {offsets = [0, 0], sizes = [2, 32], strides = [1, 1]} : vector<2x128xf32> to vector<2x32xf32>
    %433 = vector.extract_strided_slice %431 {offsets = [0, 32], sizes = [2, 32], strides = [1, 1]} : vector<2x128xf32> to vector<2x32xf32>
    %434 = vector.extract_strided_slice %431 {offsets = [0, 64], sizes = [2, 32], strides = [1, 1]} : vector<2x128xf32> to vector<2x32xf32>
    %435 = vector.extract_strided_slice %431 {offsets = [0, 96], sizes = [2, 32], strides = [1, 1]} : vector<2x128xf32> to vector<2x32xf32>
    %436 = arith.mulf %433, %415 : vector<2x32xf32>
    %437 = arith.mulf %432, %434 : vector<2x32xf32>
    %438 = arith.addf %436, %437 : vector<2x32xf32>
    %439 = math.tanh %438 : vector<2x32xf32>
    %440 = arith.mulf %435, %439 : vector<2x32xf32>
    %c0_100 = arith.constant 0 : index
    %c7_101 = arith.constant 7 : index
    %c0_102 = arith.constant 0 : index
    %441 = vector.load %arg11[%c0_100, %c7_101, %c0_102] : memref<2x8x32xf32, #tpu.memory_space<vmem>>, vector<2x1x32xf32>
    %442 = vector.shape_cast %441 : vector<2x1x32xf32> to vector<2x32xf32>
    %443 = vector.shape_cast %440 : vector<2x32xf32> to vector<2x1x32xf32>
    tpu.vector_store %arg11[%c0_100, %c7_101, %c0_102], %443 {strides = array<i32>} : memref<2x8x32xf32, #tpu.memory_space<vmem>>, vector<2x1x32xf32>,
    %c0_103 = arith.constant 0 : index
    %c0_104 = arith.constant 0 : index
    %c0_105 = arith.constant 0 : index
    %444 = vector.load %arg11[%c0_103, %c0_104, %c0_105] : memref<2x8x32xf32, #tpu.memory_space<vmem>>, vector<2x8x32xf32>
    %cst_106 = arith.constant dense<0.000000e+00> : vector<2x8xf32>
    %445 = vector.multi_reduction <add>, %444, %cst_106 [2] : vector<2x8x32xf32> to vector<2x8xf32>
    %446 = vector.shape_cast %445 : vector<2x8xf32> to vector<2x8x1xf32>
    %cst_107 = arith.constant 3.200000e+01 : f32
    %447 = vector.broadcast %cst_107 : f32 to vector<2x8x1xf32>
    %448 = arith.divf %446, %447 : vector<2x8x1xf32>
    %449 = vector.broadcast %448 : vector<2x8x1xf32> to vector<2x8x32xf32>
    %450 = arith.subf %444, %449 : vector<2x8x32xf32>
    %451 = arith.mulf %450, %450 : vector<2x8x32xf32>
    %cst_108 = arith.constant dense<0.000000e+00> : vector<2x8xf32>
    %452 = vector.multi_reduction <add>, %451, %cst_108 [2] : vector<2x8x32xf32> to vector<2x8xf32>
    %453 = vector.shape_cast %452 : vector<2x8xf32> to vector<2x8x1xf32>
    %cst_109 = arith.constant 3.200000e+01 : f32
    %454 = vector.broadcast %cst_109 : f32 to vector<2x8x1xf32>
    %455 = arith.divf %453, %454 : vector<2x8x1xf32>
    %456 = vector.broadcast %448 : vector<2x8x1xf32> to vector<2x8x32xf32>
    %457 = arith.subf %444, %456 : vector<2x8x32xf32>
    %cst_110 = arith.constant 9.99999974E-6 : f32
    %458 = vector.broadcast %cst_110 : f32 to vector<2x8x1xf32>
    %459 = arith.addf %455, %458 : vector<2x8x1xf32>
    %460 = math.rsqrt %459 : vector<2x8x1xf32>
    %461 = vector.broadcast %460 : vector<2x8x1xf32> to vector<2x8x32xf32>
    %462 = arith.mulf %457, %461 : vector<2x8x32xf32>
    %c0_111 = arith.constant 0 : index
    %c0_112 = arith.constant 0 : index
    %463 = vector.load %arg8[%c0_111, %c0_112] : memref<1x32xf32, #tpu.memory_space<vmem>>, vector<1x32xf32>
    %464 = vector.shape_cast %463 : vector<1x32xf32> to vector<1x1x32xf32>
    %465 = vector.broadcast %464 : vector<1x1x32xf32> to vector<2x8x32xf32>
    %466 = arith.mulf %462, %465 : vector<2x8x32xf32>
    %c0_113 = arith.constant 0 : index
    %c0_114 = arith.constant 0 : index
    %467 = vector.load %arg9[%c0_113, %c0_114] : memref<1x32xf32, #tpu.memory_space<vmem>>, vector<1x32xf32>
    %468 = vector.shape_cast %467 : vector<1x32xf32> to vector<1x1x32xf32>
    %469 = vector.broadcast %468 : vector<1x1x32xf32> to vector<2x8x32xf32>
    %470 = arith.addf %466, %469 : vector<2x8x32xf32>
    %c0_115 = arith.constant 0 : index
    %c0_116 = arith.constant 0 : index
    %c0_117 = arith.constant 0 : index
    %471 = vector.load %arg10[%c0_115, %c0_116, %c0_117] : memref<2x8x32xf32, #tpu.memory_space<vmem>>, vector<2x8x32xf32>
    tpu.vector_store %arg10[%c0_115, %c0_116, %c0_117], %470 {strides = array<i32>} : memref<2x8x32xf32, #tpu.memory_space<vmem>>, vector<2x8x32xf32>,
    return
  }
  func.func @transform_0(%arg0: i32) -> (i32, i32, i32) {
    %c0_i32 = arith.constant 0 : i32
    %c0_i32_0 = arith.constant 0 : i32
    %c0_i32_1 = arith.constant 0 : i32
    %c0_i32_2 = arith.constant 0 : i32
    return %c0_i32, %c0_i32_0, %c0_i32_1 : i32, i32, i32
  }
  func.func @transform_1(%arg0: i32) -> (i32, i32) {
    %c0_i32 = arith.constant 0 : i32
    %c0_i32_0 = arith.constant 0 : i32
    %c0_i32_1 = arith.constant 0 : i32
    return %c0_i32, %c0_i32_0 : i32, i32
  }
  func.func @transform_2(%arg0: i32) -> (i32, i32) {
    %c0_i32 = arith.constant 0 : i32
    %c0_i32_0 = arith.constant 0 : i32
    %c0_i32_1 = arith.constant 0 : i32
    return %c0_i32, %c0_i32_0 : i32, i32
  }
  func.func @transform_3(%arg0: i32) -> (i32, i32) {
    %c0_i32 = arith.constant 0 : i32
    %c0_i32_0 = arith.constant 0 : i32
    %c0_i32_1 = arith.constant 0 : i32
    return %c0_i32, %c0_i32_0 : i32, i32
  }
  func.func @transform_4(%arg0: i32) -> (i32, i32) {
    %c0_i32 = arith.constant 0 : i32
    %c0_i32_0 = arith.constant 0 : i32
    %c0_i32_1 = arith.constant 0 : i32
    return %c0_i32, %c0_i32_0 : i32, i32
  }
  func.func @transform_5(%arg0: i32) -> (i32, i32) {
    %c0_i32 = arith.constant 0 : i32
    %c0_i32_0 = arith.constant 0 : i32
    %c0_i32_1 = arith.constant 0 : i32
    return %c0_i32, %c0_i32_0 : i32, i32
  }
  func.func @transform_6(%arg0: i32) -> (i32, i32) {
    %c0_i32 = arith.constant 0 : i32
    %c0_i32_0 = arith.constant 0 : i32
    %c0_i32_1 = arith.constant 0 : i32
    return %c0_i32, %c0_i32_0 : i32, i32
  }
  func.func @transform_7(%arg0: i32) -> (i32, i32) {
    %c0_i32 = arith.constant 0 : i32
    %c0_i32_0 = arith.constant 0 : i32
    %c0_i32_1 = arith.constant 0 : i32
    return %c0_i32, %c0_i32_0 : i32, i32
  }
  func.func @transform_8(%arg0: i32) -> (i32, i32) {
    %c0_i32 = arith.constant 0 : i32
    %c0_i32_0 = arith.constant 0 : i32
    %c0_i32_1 = arith.constant 0 : i32
    return %c0_i32, %c0_i32_0 : i32, i32
  }
  func.func @transform_9(%arg0: i32) -> (i32, i32, i32) {
    %c0_i32 = arith.constant 0 : i32
    %c0_i32_0 = arith.constant 0 : i32
    %c0_i32_1 = arith.constant 0 : i32
    %c0_i32_2 = arith.constant 0 : i32
    return %c0_i32, %c0_i32_0, %c0_i32_1 : i32, i32, i32
  }
}

</mosaic_0001>

<llo_original>
// kernel: tpu_custom_call.1
$region0: #{tpu_custom_call.1}
  #allocation0 [shape = 'u32[]', space=smem, size = 0x4, offset = 0x4, fixed_abs, tag = 'smem constant byte address 0x4 - core index']
  #allocation1 [shape = 'u32[144,128]{1,0:T(1,128)}', space=vmem, size = 0x12000, scoped, tag = 'internal scratch']
  #allocation2 [shape = 'f32[2,8,32]{2,1,0:T(8,128)}', space=vmem, size = 0x2000, scoped, tag = 'scratch operand']
  %s0 = inlined_call_operand.hbm [shape: f32[2,8,16], index: 0, kind: input, shape index: {}]
  %s1 = inlined_call_operand.hbm [shape: f32[16,128], index: 1, kind: input, shape index: {}]
  %s2 = inlined_call_operand.hbm [shape: f32[32,128], index: 2, kind: input, shape index: {}]
  %s3 = inlined_call_operand.vmem [shape: f32[1,128], index: 3, kind: input, shape index: {}]
  %s4 = inlined_call_operand.hbm [shape: f32[32,128], index: 4, kind: input, shape index: {}]
  %s5 = inlined_call_operand.hbm [shape: f32[32,128], index: 5, kind: input, shape index: {}]
  %s6 = inlined_call_operand.vmem [shape: f32[1,128], index: 6, kind: input, shape index: {}]
  %s7 = inlined_call_operand.vmem [shape: f32[1,32], index: 7, kind: input, shape index: {}]
  %s8 = inlined_call_operand.vmem [shape: f32[1,32], index: 8, kind: input, shape index: {}]
  %s9 = inlined_call_operand.hbm [shape: f32[2,8,32], index: 9, kind: output, shape index: {}]
  %s10 = sld [smem:[#allocation0]]
  $region66: #{tpu_custom_call.1} parent=0
    _
  %s12 = ssub.s32 1, %s10
  %s13 = scalar_select 0, %s12, %s10
  $region1: #{tpu_custom_call.1} parent=0
    #allocation3 [shape = 'u8[8192]{0}', space=vmem, size = 0x2000, scoped, tag = 'input window, operand 0, single buffered']
    #allocation4 [shape = 's32[1]{0}', space=sflag, size = 0x4, scoped, tag = 'scoped memory for tpu_custom_call.1']
    #allocation5 [shape = 's32[1]{0}', space=sflag, size = 0x4, scoped, tag = 'scoped memory for tpu_custom_call.1']
    #allocation6 [shape = 'u8[8192]{0}', space=vmem, size = 0x2000, scoped, tag = 'input window, operand 1, single buffered']
    #allocation7 [shape = 's32[1]{0}', space=sflag, size = 0x4, scoped, tag = 'scoped memory for tpu_custom_call.1']
    #allocation8 [shape = 'u8[16384]{0}', space=vmem, size = 0x4000, scoped, tag = 'input window, operand 2, single buffered']
    #allocation9 [shape = 'u8[16384]{0}', space=vmem, size = 0x4000, scoped, tag = 'input window, operand 4, single buffered']
    #allocation10 [shape = 's32[1]{0}', space=sflag, size = 0x4, scoped, tag = 'scoped memory for tpu_custom_call.1']
    #allocation11 [shape = 'u8[16384]{0}', space=vmem, size = 0x4000, scoped, tag = 'input window, operand 5, single buffered']
    #allocation12 [shape = 'u8[8192]{0}', space=vmem, size = 0x2000, scoped, tag = 'output window, operand 0, single buffered']
    %14 = vsyncpa [#allocation4], 0
    %15 = vsyncpa [#allocation7], 0
    %16 = vsyncpa [#allocation10], 0
    %17 = vsyncpa [#allocation5], 0
    // Predicated region
    $region2: #{tpu_custom_call.1} parent=1 // pred_check
      _
    $region3: #{tpu_custom_call.1} parent=1 // pred_check_branch
      %19 = sbr.rel (0) target = $region5
    $region4: #{tpu_custom_call.1} parent=1 // pred_region
      %s21 = ssub.s32 256, 256
      %22 = vsyncadd [#allocation4], %s21
      %s23 = sshll.u32 [#allocation3], 4
      %s24 = int_to_ptr.vmem [resolvable:$true] %s23
      %29 = dma.hbm_to_vmem [thread:$0]  %s0, 256, %s24, [#allocation4], 128, 128, 8
    $region5: #{tpu_custom_call.1} parent=1 // pred_fallthru
      _
    // Predicated region
    $region6: #{tpu_custom_call.1} parent=1 // pred_check
      _
    $region7: #{tpu_custom_call.1} parent=1 // pred_check_branch
      %31 = sbr.rel (0) target = $region9
    $region8: #{tpu_custom_call.1} parent=1 // pred_region
      %s33 = ssub.s32 256, 256
      %34 = vsyncadd [#allocation7], %s33
      %s35 = sshll.u32 [#allocation6], 4
      %s36 = int_to_ptr.vmem [resolvable:$true] %s35
      %41 = dma.hbm_to_vmem [thread:$0]  %s1, 256, %s36, [#allocation7], 128, 128, 8
    $region9: #{tpu_custom_call.1} parent=1 // pred_fallthru
      _
    // Predicated region
    $region10: #{tpu_custom_call.1} parent=1 // pred_check
      _
    $region11: #{tpu_custom_call.1} parent=1 // pred_check_branch
      %43 = sbr.rel (0) target = $region13
    $region12: #{tpu_custom_call.1} parent=1 // pred_region
      %s45 = ssub.s32 512, 512
      %46 = vsyncadd [#allocation7], %s45
      %s47 = sshll.u32 [#allocation8], 4
      %s48 = int_to_ptr.vmem [resolvable:$true] %s47
      %53 = dma.hbm_to_vmem [thread:$0]  %s2, 512, %s48, [#allocation7], 128, 128, 8
    $region13: #{tpu_custom_call.1} parent=1 // pred_fallthru
      _
    // Predicated region
    $region14: #{tpu_custom_call.1} parent=1 // pred_check
      _
    $region15: #{tpu_custom_call.1} parent=1 // pred_check_branch
      %55 = sbr.rel (0) target = $region17
    $region16: #{tpu_custom_call.1} parent=1 // pred_region
      _
    $region17: #{tpu_custom_call.1} parent=1 // pred_fallthru
      _
    // Predicated region
    $region18: #{tpu_custom_call.1} parent=1 // pred_check
      _
    $region19: #{tpu_custom_call.1} parent=1 // pred_check_branch
      %57 = sbr.rel (0) target = $region21
    $region20: #{tpu_custom_call.1} parent=1 // pred_region
      %s59 = ssub.s32 512, 512
      %60 = vsyncadd [#allocation10], %s59
      %s61 = sshll.u32 [#allocation9], 4
      %s62 = int_to_ptr.vmem [resolvable:$true] %s61
      %67 = dma.hbm_to_vmem [thread:$0]  %s4, 512, %s62, [#allocation10], 128, 128, 8
    $region21: #{tpu_custom_call.1} parent=1 // pred_fallthru
      _
    // Predicated region
    $region22: #{tpu_custom_call.1} parent=1 // pred_check
      _
    $region23: #{tpu_custom_call.1} parent=1 // pred_check_branch
      %69 = sbr.rel (0) target = $region25
    $region24: #{tpu_custom_call.1} parent=1 // pred_region
      %s71 = ssub.s32 512, 512
      %72 = vsyncadd [#allocation10], %s71
      %s73 = sshll.u32 [#allocation11], 4
      %s74 = int_to_ptr.vmem [resolvable:$true] %s73
      %79 = dma.hbm_to_vmem [thread:$0]  %s5, 512, %s74, [#allocation10], 128, 128, 8
    $region25: #{tpu_custom_call.1} parent=1 // pred_fallthru
      _
    // Predicated region
    $region26: #{tpu_custom_call.1} parent=1 // pred_check
      _
    $region27: #{tpu_custom_call.1} parent=1 // pred_check_branch
      %81 = sbr.rel (0) target = $region29
    $region28: #{tpu_custom_call.1} parent=1 // pred_region
      _
    $region29: #{tpu_custom_call.1} parent=1 // pred_fallthru
      _
    // Predicated region
    $region30: #{tpu_custom_call.1} parent=1 // pred_check
      _
    $region31: #{tpu_custom_call.1} parent=1 // pred_check_branch
      %83 = sbr.rel (0) target = $region33
    $region32: #{tpu_custom_call.1} parent=1 // pred_region
      _
    $region33: #{tpu_custom_call.1} parent=1 // pred_fallthru
      _
    // Predicated region
    $region34: #{tpu_custom_call.1} parent=1 // pred_check
      _
    $region35: #{tpu_custom_call.1} parent=1 // pred_check_branch
      %85 = sbr.rel (0) target = $region37
    $region36: #{tpu_custom_call.1} parent=1 // pred_region
      _
    $region37: #{tpu_custom_call.1} parent=1 // pred_fallthru
      _
    // Predicated region
    $region38: #{tpu_custom_call.1} parent=1 // pred_check
      _
    $region39: #{tpu_custom_call.1} parent=1 // pred_check_branch
      %87 = sbr.rel (0) target = $region41
    $region40: #{tpu_custom_call.1} parent=1 // pred_region
      %88 = dma.done [#allocation4], 256
    $region41: #{tpu_custom_call.1} parent=1 // pred_fallthru
      _
    // Predicated region
    $region42: #{tpu_custom_call.1} parent=1 // pred_check
      _
    $region43: #{tpu_custom_call.1} parent=1 // pred_check_branch
      %90 = sbr.rel (0) target = $region45
    $region44: #{tpu_custom_call.1} parent=1 // pred_region
      %91 = dma.done [#allocation7], 256
    $region45: #{tpu_custom_call.1} parent=1 // pred_fallthru
      _
    // Predicated region
    $region46: #{tpu_custom_call.1} parent=1 // pred_check
      _
    $region47: #{tpu_custom_call.1} parent=1 // pred_check_branch
      %93 = sbr.rel (0) target = $region49
    $region48: #{tpu_custom_call.1} parent=1 // pred_region
      %94 = dma.done [#allocation7], 512
    $region49: #{tpu_custom_call.1} parent=1 // pred_fallthru
      _
    // Predicated region
    $region50: #{tpu_custom_call.1} parent=1 // pred_check
      _
    $region51: #{tpu_custom_call.1} parent=1 // pred_check_branch
      %96 = sbr.rel (0) target = $region53
    $region52: #{tpu_custom_call.1} parent=1 // pred_region
      %97 = dma.done [#allocation10], 512
    $region53: #{tpu_custom_call.1} parent=1 // pred_fallthru
      _
    // Predicated region
    $region54: #{tpu_custom_call.1} parent=1 // pred_check
      _
    $region55: #{tpu_custom_call.1} parent=1 // pred_check_branch
      %99 = sbr.rel (0) target = $region57
    $region56: #{tpu_custom_call.1} parent=1 // pred_region
      %100 = dma.done [#allocation10], 512
    $region57: #{tpu_custom_call.1} parent=1 // pred_fallthru
      _
    %v101 = vlaneseq
    %v102 = vand.u32 %v101, 127
    %vm103 = vcmp.ge.s32.totalorder %v102, 64
    %vm104 = vcmp.lt.s32.totalorder %v102, 96
    %vm105 = vmand %vm103, %vm104
    %v106 = vld [vmem:[#allocation3] sm:$0xff]
    %v107 = vld [vmem:[#allocation3 + $0x8] sm:$0xff]
    %v108 = vld [vmem:[#allocation6] sm:$0xff]
    %v109 = vld [vmem:[#allocation6 + $0x8] sm:$0xff]
    %v110 = vld [vmem:[%s3] sm:$0x1]
    %v112 = vlaneseq
    %v113 = vshrl.u32 %v112, 7
    %v114 = vsub.s32 0, %v113
    %v115 = vrot.slane %v110, %v114
    %vm117 = vcmask 130048
    %v119 = vsel %vm117, %v106, 0
    %v122 = vsel %vm117, %v107, 0
    %124 = vmatprep.subr.mxu0 0.0
    %125 = vmatpush1.msra.mxu0 0.0
    %126 = vmatprep.subr.mxu0 0.0
    %127 = vmatpush1.msra.mxu0 0.0
    %128 = vmatprep.subr.mxu0 0.0
    %129 = vmatpush1.msra.mxu0 0.0
    %130 = vmatprep.subr.mxu0 0.0
    %131 = vmatpush1.msra.mxu0 0.0
    %132 = vmatprep.subr.mxu0 0.0
    %133 = vmatpush1.msra.mxu0 0.0
    %134 = vmatprep.subr.mxu0 0.0
    %135 = vmatpush1.msra.mxu0 0.0
    %136 = vmatprep.subr.mxu0 0.0
    %137 = vmatpush1.msra.mxu0 0.0
    %138 = vmatprep.subr.mxu0 0.0
    %139 = vmatpush1.msra.mxu0 0.0
    %140 = vmatprep.subr.mxu0 0.0
    %141 = vmatpush1.msra.mxu0 0.0
    %142 = vmatprep.subr.mxu0 0.0
    %143 = vmatpush1.msra.mxu0 0.0
    %144 = vmatprep.subr.mxu0 0.0
    %145 = vmatpush1.msra.mxu0 0.0
    %146 = vmatprep.subr.mxu0 0.0
    %147 = vmatpush1.msra.mxu0 0.0
    %148 = vmatprep.subr.mxu0 0.0
    %149 = vmatpush1.msra.mxu0 0.0
    %150 = vmatprep.subr.mxu0 0.0
    %151 = vmatpush1.msra.mxu0 0.0
    %152 = vmatprep.subr.mxu0 0.0
    %153 = vmatpush1.msra.mxu0 %v109
    %154 = vmatprep.subr.mxu0 0.0
    %155 = vmatpush1.msra.mxu0 %v108
    %156 = vmatprep.subr.mxu0 0.0
    %157 = vmatpush2.msra.mxu0 0.0
    %158 = vmatprep.subr.mxu0 0.0
    %159 = vmatpush2.msra.mxu0 0.0
    %160 = vmatprep.subr.mxu0 0.0
    %161 = vmatpush2.msra.mxu0 0.0
    %162 = vmatprep.subr.mxu0 0.0
    %163 = vmatpush2.msra.mxu0 0.0
    %164 = vmatprep.subr.mxu0 0.0
    %165 = vmatpush2.msra.mxu0 0.0
    %166 = vmatprep.subr.mxu0 0.0
    %167 = vmatpush2.msra.mxu0 0.0
    %168 = vmatprep.subr.mxu0 0.0
    %169 = vmatpush2.msra.mxu0 0.0
    %170 = vmatprep.subr.mxu0 0.0
    %171 = vmatpush2.msra.mxu0 0.0
    %172 = vmatprep.subr.mxu0 0.0
    %173 = vmatpush2.msra.mxu0 0.0
    %174 = vmatprep.subr.mxu0 0.0
    %175 = vmatpush2.msra.mxu0 0.0
    %176 = vmatprep.subr.mxu0 0.0
    %177 = vmatpush2.msra.mxu0 0.0
    %178 = vmatprep.subr.mxu0 0.0
    %179 = vmatpush2.msra.mxu0 0.0
    %180 = vmatprep.subr.mxu0 0.0
    %181 = vmatpush2.msra.mxu0 0.0
    %182 = vmatprep.subr.mxu0 0.0
    %183 = vmatpush2.msra.mxu0 0.0
    %184 = vmatprep.subr.mxu0 0.0
    %185 = vmatpush2.msra.mxu0 0.0
    %186 = vmatprep.subr.mxu0 0.0
    %187 = vmatpush2.msra.mxu0 0.0
    %188 = vmatprep.mubr.f32.mxu0 0.0
    %189 = vmatmul.mubr.f32.gmra.mxu0 %v119
    %v190 = vpop.f32.mrf.mxu0
    %v191 = vadd.f32 %v115, %v190
    %v192 = vpop.f32.mrf.mxu0
    %193 = vmatprep.mubr.f32.mxu0 0.0
    %194 = vmatmul.mubr.f32.gmra.mxu0 %v122
    %v195 = vpop.f32.mrf.mxu0
    %v196 = vadd.f32 %v115, %v195
    %v197 = vpop.f32.mrf.mxu0
    %198 = vdwg.mxu0
    %v199 = vld [vmem:[#allocation8] sm:$0xff]
    %v200 = vld [vmem:[#allocation8 + $0x8] sm:$0xff]
    %v201 = vld [vmem:[#allocation8 + $0x10] sm:$0xff]
    %v202 = vld [vmem:[#allocation8 + $0x18] sm:$0xff]
    %vm203 = vcmask 261120
    %v205 = vsel %vm203, 0.0, 0
    %207 = vmatprep.subr.mxu0 0.0
    %208 = vmatpush1.msra.mxu0 0.0
    %209 = vmatprep.subr.mxu0 0.0
    %210 = vmatpush1.msra.mxu0 0.0
    %211 = vmatprep.subr.mxu0 0.0
    %212 = vmatpush1.msra.mxu0 0.0
    %213 = vmatprep.subr.mxu0 0.0
    %214 = vmatpush1.msra.mxu0 0.0
    %215 = vmatprep.subr.mxu0 0.0
    %216 = vmatpush1.msra.mxu0 0.0
    %217 = vmatprep.subr.mxu0 0.0
    %218 = vmatpush1.msra.mxu0 0.0
    %219 = vmatprep.subr.mxu0 0.0
    %220 = vmatpush1.msra.mxu0 0.0
    %221 = vmatprep.subr.mxu0 0.0
    %222 = vmatpush1.msra.mxu0 0.0
    %223 = vmatprep.subr.mxu0 0.0
    %224 = vmatpush1.msra.mxu0 0.0
    %225 = vmatprep.subr.mxu0 0.0
    %226 = vmatpush1.msra.mxu0 0.0
    %227 = vmatprep.subr.mxu0 0.0
    %228 = vmatpush1.msra.mxu0 0.0
    %229 = vmatprep.subr.mxu0 0.0
    %230 = vmatpush1.msra.mxu0 0.0
    %231 = vmatprep.subr.mxu0 0.0
    %232 = vmatpush1.msra.mxu0 %v202
    %233 = vmatprep.subr.mxu0 0.0
    %234 = vmatpush1.msra.mxu0 %v201
    %235 = vmatprep.subr.mxu0 0.0
    %236 = vmatpush1.msra.mxu0 %v200
    %237 = vmatprep.subr.mxu0 0.0
    %238 = vmatpush1.msra.mxu0 %v199
    %239 = vmatprep.subr.mxu0 0.0
    %240 = vmatpush2.msra.mxu0 0.0
    %241 = vmatprep.subr.mxu0 0.0
    %242 = vmatpush2.msra.mxu0 0.0
    %243 = vmatprep.subr.mxu0 0.0
    %244 = vmatpush2.msra.mxu0 0.0
    %245 = vmatprep.subr.mxu0 0.0
    %246 = vmatpush2.msra.mxu0 0.0
    %247 = vmatprep.subr.mxu0 0.0
    %248 = vmatpush2.msra.mxu0 0.0
    %249 = vmatprep.subr.mxu0 0.0
    %250 = vmatpush2.msra.mxu0 0.0
    %251 = vmatprep.subr.mxu0 0.0
    %252 = vmatpush2.msra.mxu0 0.0
    %253 = vmatprep.subr.mxu0 0.0
    %254 = vmatpush2.msra.mxu0 0.0
    %255 = vmatprep.subr.mxu0 0.0
    %256 = vmatpush2.msra.mxu0 0.0
    %257 = vmatprep.subr.mxu0 0.0
    %258 = vmatpush2.msra.mxu0 0.0
    %259 = vmatprep.subr.mxu0 0.0
    %260 = vmatpush2.msra.mxu0 0.0
    %261 = vmatprep.subr.mxu0 0.0
    %262 = vmatpush2.msra.mxu0 0.0
    %263 = vmatprep.subr.mxu0 0.0
    %264 = vmatpush2.msra.mxu0 0.0
    %265 = vmatprep.subr.mxu0 0.0
    %266 = vmatpush2.msra.mxu0 0.0
    %267 = vmatprep.subr.mxu0 0.0
    %268 = vmatpush2.msra.mxu0 0.0
    %269 = vmatprep.subr.mxu0 0.0
    %270 = vmatpush2.msra.mxu0 0.0
    %271 = vmatprep.mubr.f32.mxu0 0.0
    %272 = vmatmul.mubr.f32.gmra.mxu0 %v205
    %v273 = vpop.f32.mrf.mxu0
    %v274 = vadd.f32 0.0, %v273
    %v275 = vpop.f32.mrf.mxu0
    %276 = vdwg.mxu0
    %v278 = vrot.slane %v274, 1
    %v281 = vadd.f32 %v191, %v274
    %v282 = vadd.f32 %v196, %v278
    %v283 = vtanh.pop %v281
    %v284 = vtanh.pop %v282
    %v285 = vxor.u32 %v281, 2147483648
    %v286 = vxor.u32 %v282, 2147483648
    %v287 = vmul.f32 %v285, 1.442695
    %v288 = vpow.pop %v287
    %v289 = vmul.f32 %v286, 1.442695
    %v290 = vpow.pop %v289
    %v291 = vadd.f32 %v288, 1.0
    %v292 = vadd.f32 %v290, 1.0
    %v293 = vrcp.pop %v291
    %v294 = vmul.f32 1.0, %v293
    %v295 = vrcp.pop %v292
    %v296 = vmul.f32 1.0, %v295
    %v299 = vrot.slane %v284, 7
    %vm300 = vcmask 1041409
    %v301 = vsel %vm300, %v299, %v283
    %v305 = vrot.slane %v296, 7
    %v306 = vsel %vm300, %v305, %v294
    %v308 = vsel %vm105, %v301, %v306
    %v309 = vmul.f32 %v308, 0.0
    %311 = vrot.lane.b32.xlu0 %v308, 64
    %v312 = vpop.permute.xlu0 %311
    %v314 = vmul.f32 %v308, %v312
    %316 = vrot.lane.b32.xlu0 %v314, 32
    %v317 = vpop.permute.xlu0 %316
    %v319 = vadd.f32 %v309, %v317
    %v320 = vtanh.pop %v319
    %322 = vrot.lane.b32.xlu0 %v320, 64
    %v323 = vpop.permute.xlu0 %322
    %v325 = vmul.f32 %v308, %v323
    %v326 = vxor.u32 %v325, 2147483648
    %v327 = vmul.f32 %v326, 1.442695
    %v328 = vpow.pop %v327
    %v329 = vadd.f32 %v328, 1.0
    %v330 = vrcp.pop %v329
    %v331 = vmul.f32 1.0, %v330
    %v332 = vmul.f32 %v325, %v331
    %v335 = vunpack.c.l.s4 1966171168
    %v336 = vunpack.c.0.s8 %v335
    %v337 = vlaneseq
    %v338 = vshrl.u32 %v337, 7
    %v339 = vsub.s32 %v336, %v338
    %v340 = vrot.slane %v332, %v339
    %v341 = vcombine.high %v340, %v340
    %v343 = vunpack.c.l.s4 1966171168
    %v344 = vunpack.c.0.s8 %v343
    %v345 = vlaneseq
    %v346 = vshrl.u32 %v345, 7
    %v347 = vsub.s32 %v344, %v346
    %v348 = vrot.slane %v340, %v347
    %v350 = vunpack.c.l.s4 1966171168
    %v351 = vunpack.c.0.s8 %v350
    %v352 = vlaneseq
    %v353 = vshrl.u32 %v352, 7
    %v354 = vsub.s32 %v351, %v353
    %v355 = vrot.slane %v341, %v354
    %v356 = vlaneseq
    %v357 = vshrl.u32 %v356, 7
    %v358 = vsub.s32 0, %v357
    %v359 = vrot.slane %v348, %v358
    %v360 = vlaneseq
    %v361 = vshrl.u32 %v360, 7
    %v362 = vsub.s32 0, %v361
    %v363 = vrot.slane %v355, %v362
    %364 = vrot.lane.b32.xlu0 %v359, 32
    %v365 = vpop.permute.xlu0 %364
    %366 = vrot.lane.b32.xlu0 %v363, 32
    %v367 = vpop.permute.xlu0 %366
    %vm370 = vcmask 253952
    %371 = vst.msk [vmem:[#allocation2] sm:$0x1] %vm370, %v365
    %372 = vst.msk [vmem:[#allocation2 + $0x8] sm:$0x1] %vm370, %v367
    %374 = vrot.lane.b32.xlu0 %v325, 32
    %v375 = vpop.permute.xlu0 %374
    %v376 = vsel %vm203, %v375, 0
    %378 = vmatprep.subr.mxu0 0.0
    %379 = vmatpush1.msra.mxu0 0.0
    %380 = vmatprep.subr.mxu0 0.0
    %381 = vmatpush1.msra.mxu0 0.0
    %382 = vmatprep.subr.mxu0 0.0
    %383 = vmatpush1.msra.mxu0 0.0
    %384 = vmatprep.subr.mxu0 0.0
    %385 = vmatpush1.msra.mxu0 0.0
    %386 = vmatprep.subr.mxu0 0.0
    %387 = vmatpush1.msra.mxu0 0.0
    %388 = vmatprep.subr.mxu0 0.0
    %389 = vmatpush1.msra.mxu0 0.0
    %390 = vmatprep.subr.mxu0 0.0
    %391 = vmatpush1.msra.mxu0 0.0
    %392 = vmatprep.subr.mxu0 0.0
    %393 = vmatpush1.msra.mxu0 0.0
    %394 = vmatprep.subr.mxu0 0.0
    %395 = vmatpush1.msra.mxu0 0.0
    %396 = vmatprep.subr.mxu0 0.0
    %397 = vmatpush1.msra.mxu0 0.0
    %398 = vmatprep.subr.mxu0 0.0
    %399 = vmatpush1.msra.mxu0 0.0
    %400 = vmatprep.subr.mxu0 0.0
    %401 = vmatpush1.msra.mxu0 0.0
    %402 = vmatprep.subr.mxu0 0.0
    %403 = vmatpush1.msra.mxu0 %v202
    %404 = vmatprep.subr.mxu0 0.0
    %405 = vmatpush1.msra.mxu0 %v201
    %406 = vmatprep.subr.mxu0 0.0
    %407 = vmatpush1.msra.mxu0 %v200
    %408 = vmatprep.subr.mxu0 0.0
    %409 = vmatpush1.msra.mxu0 %v199
    %410 = vmatprep.subr.mxu0 0.0
    %411 = vmatpush2.msra.mxu0 0.0
    %412 = vmatprep.subr.mxu0 0.0
    %413 = vmatpush2.msra.mxu0 0.0
    %414 = vmatprep.subr.mxu0 0.0
    %415 = vmatpush2.msra.mxu0 0.0
    %416 = vmatprep.subr.mxu0 0.0
    %417 = vmatpush2.msra.mxu0 0.0
    %418 = vmatprep.subr.mxu0 0.0
    %419 = vmatpush2.msra.mxu0 0.0
    %420 = vmatprep.subr.mxu0 0.0
    %421 = vmatpush2.msra.mxu0 0.0
    %422 = vmatprep.subr.mxu0 0.0
    %423 = vmatpush2.msra.mxu0 0.0
    %424 = vmatprep.subr.mxu0 0.0
    %425 = vmatpush2.msra.mxu0 0.0
    %426 = vmatprep.subr.mxu0 0.0
    %427 = vmatpush2.msra.mxu0 0.0
    %428 = vmatprep.subr.mxu0 0.0
    %429 = vmatpush2.msra.mxu0 0.0
    %430 = vmatprep.subr.mxu0 0.0
    %431 = vmatpush2.msra.mxu0 0.0
    %432 = vmatprep.subr.mxu0 0.0
    %433 = vmatpush2.msra.mxu0 0.0
    %434 = vmatprep.subr.mxu0 0.0
    %435 = vmatpush2.msra.mxu0 0.0
    %436 = vmatprep.subr.mxu0 0.0
    %437 = vmatpush2.msra.mxu0 0.0
    %438 = vmatprep.subr.mxu0 0.0
    %439 = vmatpush2.msra.mxu0 0.0
    %440 = vmatprep.subr.mxu0 0.0
    %441 = vmatpush2.msra.mxu0 0.0
    %442 = vmatprep.mubr.f32.mxu0 0.0
    %443 = vmatmul.mubr.f32.gmra.mxu0 %v376
    %v444 = vpop.f32.mrf.mxu0
    %v445 = vadd.f32 0.0, %v444
    %v446 = vpop.f32.mrf.mxu0
    %447 = vdwg.mxu0
    %v449 = vrot.slane %v445, 7
    %v452 = vadd.f32 %v191, %v449
    %v453 = vadd.f32 %v196, %v445
    %v454 = vtanh.pop %v452
    %v455 = vtanh.pop %v453
    %v456 = vxor.u32 %v452, 2147483648
    %v457 = vxor.u32 %v453, 2147483648
    %v458 = vmul.f32 %v456, 1.442695
    %v459 = vpow.pop %v458
    %v460 = vmul.f32 %v457, 1.442695
    %v461 = vpow.pop %v460
    %v462 = vadd.f32 %v459, 1.0
    %v463 = vadd.f32 %v461, 1.0
    %v464 = vrcp.pop %v462
    %v465 = vmul.f32 1.0, %v464
    %v466 = vrcp.pop %v463
    %v467 = vmul.f32 1.0, %v466
    %v470 = vrot.slane %v454, 1
    %v471 = vsel %vm300, %v455, %v470
    %v475 = vrot.slane %v465, 1
    %v476 = vsel %vm300, %v467, %v475
    %v478 = vsel %vm105, %v471, %v476
    %v479 = vmul.f32 %v478, %v319
    %481 = vrot.lane.b32.xlu0 %v478, 64
    %v482 = vpop.permute.xlu0 %481
    %v484 = vmul.f32 %v478, %v482
    %486 = vrot.lane.b32.xlu0 %v484, 32
    %v487 = vpop.permute.xlu0 %486
    %v489 = vadd.f32 %v479, %v487
    %v490 = vtanh.pop %v489
    %492 = vrot.lane.b32.xlu0 %v490, 64
    %v493 = vpop.permute.xlu0 %492
    %v495 = vmul.f32 %v478, %v493
    %v496 = vxor.u32 %v495, 2147483648
    %v497 = vmul.f32 %v496, 1.442695
    %v498 = vpow.pop %v497
    %v499 = vadd.f32 %v498, 1.0
    %v500 = vrcp.pop %v499
    %v501 = vmul.f32 1.0, %v500
    %v502 = vmul.f32 %v495, %v501
    %v505 = vunpack.c.l.s4 1966171168
    %v506 = vunpack.c.0.s8 %v505
    %v507 = vlaneseq
    %v508 = vshrl.u32 %v507, 7
    %v509 = vsub.s32 %v506, %v508
    %v510 = vrot.slane %v502, %v509
    %v511 = vcombine.high %v510, %v510
    %v513 = vunpack.c.l.s4 1966171168
    %v514 = vunpack.c.0.s8 %v513
    %v515 = vlaneseq
    %v516 = vshrl.u32 %v515, 7
    %v517 = vsub.s32 %v514, %v516
    %v518 = vrot.slane %v510, %v517
    %v520 = vunpack.c.l.s4 1966171168
    %v521 = vunpack.c.0.s8 %v520
    %v522 = vlaneseq
    %v523 = vshrl.u32 %v522, 7
    %v524 = vsub.s32 %v521, %v523
    %v525 = vrot.slane %v511, %v524
    %v526 = vlaneseq
    %v527 = vshrl.u32 %v526, 7
    %v528 = vsub.s32 0, %v527
    %v529 = vrot.slane %v518, %v528
    %v530 = vlaneseq
    %v531 = vshrl.u32 %v530, 7
    %v532 = vsub.s32 0, %v531
    %v533 = vrot.slane %v525, %v532
    %534 = vrot.lane.b32.xlu0 %v529, 32
    %v535 = vpop.permute.xlu0 %534
    %536 = vrot.lane.b32.xlu0 %v533, 32
    %v537 = vpop.permute.xlu0 %536
    %540 = vst.msk [vmem:[#allocation2 + $0x1] sm:$0x1] %vm370, %v535
    %541 = vst.msk [vmem:[#allocation2 + $0x9] sm:$0x1] %vm370, %v537
    %543 = vrot.lane.b32.xlu0 %v495, 32
    %v544 = vpop.permute.xlu0 %543
    %v545 = vsel %vm203, %v544, 0
    %547 = vmatprep.subr.mxu0 0.0
    %548 = vmatpush1.msra.mxu0 0.0
    %549 = vmatprep.subr.mxu0 0.0
    %550 = vmatpush1.msra.mxu0 0.0
    %551 = vmatprep.subr.mxu0 0.0
    %552 = vmatpush1.msra.mxu0 0.0
    %553 = vmatprep.subr.mxu0 0.0
    %554 = vmatpush1.msra.mxu0 0.0
    %555 = vmatprep.subr.mxu0 0.0
    %556 = vmatpush1.msra.mxu0 0.0
    %557 = vmatprep.subr.mxu0 0.0
    %558 = vmatpush1.msra.mxu0 0.0
    %559 = vmatprep.subr.mxu0 0.0
    %560 = vmatpush1.msra.mxu0 0.0
    %561 = vmatprep.subr.mxu0 0.0
    %562 = vmatpush1.msra.mxu0 0.0
    %563 = vmatprep.subr.mxu0 0.0
    %564 = vmatpush1.msra.mxu0 0.0
    %565 = vmatprep.subr.mxu0 0.0
    %566 = vmatpush1.msra.mxu0 0.0
    %567 = vmatprep.subr.mxu0 0.0
    %568 = vmatpush1.msra.mxu0 0.0
    %569 = vmatprep.subr.mxu0 0.0
    %570 = vmatpush1.msra.mxu0 0.0
    %571 = vmatprep.subr.mxu0 0.0
    %572 = vmatpush1.msra.mxu0 %v202
    %573 = vmatprep.subr.mxu0 0.0
    %574 = vmatpush1.msra.mxu0 %v201
    %575 = vmatprep.subr.mxu0 0.0
    %576 = vmatpush1.msra.mxu0 %v200
    %577 = vmatprep.subr.mxu0 0.0
    %578 = vmatpush1.msra.mxu0 %v199
    %579 = vmatprep.subr.mxu0 0.0
    %580 = vmatpush2.msra.mxu0 0.0
    %581 = vmatprep.subr.mxu0 0.0
    %582 = vmatpush2.msra.mxu0 0.0
    %583 = vmatprep.subr.mxu0 0.0
    %584 = vmatpush2.msra.mxu0 0.0
    %585 = vmatprep.subr.mxu0 0.0
    %586 = vmatpush2.msra.mxu0 0.0
    %587 = vmatprep.subr.mxu0 0.0
    %588 = vmatpush2.msra.mxu0 0.0
    %589 = vmatprep.subr.mxu0 0.0
    %590 = vmatpush2.msra.mxu0 0.0
    %591 = vmatprep.subr.mxu0 0.0
    %592 = vmatpush2.msra.mxu0 0.0
    %593 = vmatprep.subr.mxu0 0.0
    %594 = vmatpush2.msra.mxu0 0.0
    %595 = vmatprep.subr.mxu0 0.0
    %596 = vmatpush2.msra.mxu0 0.0
    %597 = vmatprep.subr.mxu0 0.0
    %598 = vmatpush2.msra.mxu0 0.0
    %599 = vmatprep.subr.mxu0 0.0
    %600 = vmatpush2.msra.mxu0 0.0
    %601 = vmatprep.subr.mxu0 0.0
    %602 = vmatpush2.msra.mxu0 0.0
    %603 = vmatprep.subr.mxu0 0.0
    %604 = vmatpush2.msra.mxu0 0.0
    %605 = vmatprep.subr.mxu0 0.0
    %606 = vmatpush2.msra.mxu0 0.0
    %607 = vmatprep.subr.mxu0 0.0
    %608 = vmatpush2.msra.mxu0 0.0
    %609 = vmatprep.subr.mxu0 0.0
    %610 = vmatpush2.msra.mxu0 0.0
    %611 = vmatprep.mubr.f32.mxu0 0.0
    %612 = vmatmul.mubr.f32.gmra.mxu0 %v545
    %v613 = vpop.f32.mrf.mxu0
    %v614 = vadd.f32 0.0, %v613
    %v615 = vpop.f32.mrf.mxu0
    %616 = vdwg.mxu0
    %v618 = vrot.slane %v614, 6
    %v619 = vrot.slane %v614, 7
    %v622 = vadd.f32 %v191, %v618
    %v623 = vadd.f32 %v196, %v619
    %v624 = vtanh.pop %v622
    %v625 = vtanh.pop %v623
    %v626 = vxor.u32 %v622, 2147483648
    %v627 = vxor.u32 %v623, 2147483648
    %v628 = vmul.f32 %v626, 1.442695
    %v629 = vpow.pop %v628
    %v630 = vmul.f32 %v627, 1.442695
    %v631 = vpow.pop %v630
    %v632 = vadd.f32 %v629, 1.0
    %v633 = vadd.f32 %v631, 1.0
    %v634 = vrcp.pop %v632
    %v635 = vmul.f32 1.0, %v634
    %v636 = vrcp.pop %v633
    %v637 = vmul.f32 1.0, %v636
    %v640 = vrot.slane %v624, 2
    %v641 = vrot.slane %v625, 1
    %v642 = vsel %vm300, %v641, %v640
    %v646 = vrot.slane %v635, 2
    %v647 = vrot.slane %v637, 1
    %v648 = vsel %vm300, %v647, %v646
    %v650 = vsel %vm105, %v642, %v648
    %v651 = vmul.f32 %v650, %v489
    %653 = vrot.lane.b32.xlu0 %v650, 64
    %v654 = vpop.permute.xlu0 %653
    %v656 = vmul.f32 %v650, %v654
    %658 = vrot.lane.b32.xlu0 %v656, 32
    %v659 = vpop.permute.xlu0 %658
    %v661 = vadd.f32 %v651, %v659
    %v662 = vtanh.pop %v661
    %664 = vrot.lane.b32.xlu0 %v662, 64
    %v665 = vpop.permute.xlu0 %664
    %v667 = vmul.f32 %v650, %v665
    %v668 = vxor.u32 %v667, 2147483648
    %v669 = vmul.f32 %v668, 1.442695
    %v670 = vpow.pop %v669
    %v671 = vadd.f32 %v670, 1.0
    %v672 = vrcp.pop %v671
    %v673 = vmul.f32 1.0, %v672
    %v674 = vmul.f32 %v667, %v673
    %v677 = vunpack.c.l.s4 1966171168
    %v678 = vunpack.c.0.s8 %v677
    %v679 = vlaneseq
    %v680 = vshrl.u32 %v679, 7
    %v681 = vsub.s32 %v678, %v680
    %v682 = vrot.slane %v674, %v681
    %v683 = vcombine.high %v682, %v682
    %v685 = vunpack.c.l.s4 1966171168
    %v686 = vunpack.c.0.s8 %v685
    %v687 = vlaneseq
    %v688 = vshrl.u32 %v687, 7
    %v689 = vsub.s32 %v686, %v688
    %v690 = vrot.slane %v682, %v689
    %v692 = vunpack.c.l.s4 1966171168
    %v693 = vunpack.c.0.s8 %v692
    %v694 = vlaneseq
    %v695 = vshrl.u32 %v694, 7
    %v696 = vsub.s32 %v693, %v695
    %v697 = vrot.slane %v683, %v696
    %v698 = vlaneseq
    %v699 = vshrl.u32 %v698, 7
    %v700 = vsub.s32 0, %v699
    %v701 = vrot.slane %v690, %v700
    %v702 = vlaneseq
    %v703 = vshrl.u32 %v702, 7
    %v704 = vsub.s32 0, %v703
    %v705 = vrot.slane %v697, %v704
    %706 = vrot.lane.b32.xlu0 %v701, 32
    %v707 = vpop.permute.xlu0 %706
    %708 = vrot.lane.b32.xlu0 %v705, 32
    %v709 = vpop.permute.xlu0 %708
    %712 = vst.msk [vmem:[#allocation2 + $0x2] sm:$0x1] %vm370, %v707
    %713 = vst.msk [vmem:[#allocation2 + $0xa] sm:$0x1] %vm370, %v709
    %715 = vrot.lane.b32.xlu0 %v667, 32
    %v716 = vpop.permute.xlu0 %715
    %v717 = vsel %vm203, %v716, 0
    %719 = vmatprep.subr.mxu0 0.0
    %720 = vmatpush1.msra.mxu0 0.0
    %721 = vmatprep.subr.mxu0 0.0
    %722 = vmatpush1.msra.mxu0 0.0
    %723 = vmatprep.subr.mxu0 0.0
    %724 = vmatpush1.msra.mxu0 0.0
    %725 = vmatprep.subr.mxu0 0.0
    %726 = vmatpush1.msra.mxu0 0.0
    %727 = vmatprep.subr.mxu0 0.0
    %728 = vmatpush1.msra.mxu0 0.0
    %729 = vmatprep.subr.mxu0 0.0
    %730 = vmatpush1.msra.mxu0 0.0
    %731 = vmatprep.subr.mxu0 0.0
    %732 = vmatpush1.msra.mxu0 0.0
    %733 = vmatprep.subr.mxu0 0.0
    %734 = vmatpush1.msra.mxu0 0.0
    %735 = vmatprep.subr.mxu0 0.0
    %736 = vmatpush1.msra.mxu0 0.0
    %737 = vmatprep.subr.mxu0 0.0
    %738 = vmatpush1.msra.mxu0 0.0
    %739 = vmatprep.subr.mxu0 0.0
    %740 = vmatpush1.msra.mxu0 0.0
    %741 = vmatprep.subr.mxu0 0.0
    %742 = vmatpush1.msra.mxu0 0.0
    %743 = vmatprep.subr.mxu0 0.0
    %744 = vmatpush1.msra.mxu0 %v202
    %745 = vmatprep.subr.mxu0 0.0
    %746 = vmatpush1.msra.mxu0 %v201
    %747 = vmatprep.subr.mxu0 0.0
    %748 = vmatpush1.msra.mxu0 %v200
    %749 = vmatprep.subr.mxu0 0.0
    %750 = vmatpush1.msra.mxu0 %v199
    %751 = vmatprep.subr.mxu0 0.0
    %752 = vmatpush2.msra.mxu0 0.0
    %753 = vmatprep.subr.mxu0 0.0
    %754 = vmatpush2.msra.mxu0 0.0
    %755 = vmatprep.subr.mxu0 0.0
    %756 = vmatpush2.msra.mxu0 0.0
    %757 = vmatprep.subr.mxu0 0.0
    %758 = vmatpush2.msra.mxu0 0.0
    %759 = vmatprep.subr.mxu0 0.0
    %760 = vmatpush2.msra.mxu0 0.0
    %761 = vmatprep.subr.mxu0 0.0
    %762 = vmatpush2.msra.mxu0 0.0
    %763 = vmatprep.subr.mxu0 0.0
    %764 = vmatpush2.msra.mxu0 0.0
    %765 = vmatprep.subr.mxu0 0.0
    %766 = vmatpush2.msra.mxu0 0.0
    %767 = vmatprep.subr.mxu0 0.0
    %768 = vmatpush2.msra.mxu0 0.0
    %769 = vmatprep.subr.mxu0 0.0
    %770 = vmatpush2.msra.mxu0 0.0
    %771 = vmatprep.subr.mxu0 0.0
    %772 = vmatpush2.msra.mxu0 0.0
    %773 = vmatprep.subr.mxu0 0.0
    %774 = vmatpush2.msra.mxu0 0.0
    %775 = vmatprep.subr.mxu0 0.0
    %776 = vmatpush2.msra.mxu0 0.0
    %777 = vmatprep.subr.mxu0 0.0
    %778 = vmatpush2.msra.mxu0 0.0
    %779 = vmatprep.subr.mxu0 0.0
    %780 = vmatpush2.msra.mxu0 0.0
    %781 = vmatprep.subr.mxu0 0.0
    %782 = vmatpush2.msra.mxu0 0.0
    %783 = vmatprep.mubr.f32.mxu0 0.0
    %784 = vmatmul.mubr.f32.gmra.mxu0 %v717
    %v785 = vpop.f32.mrf.mxu0
    %v786 = vadd.f32 0.0, %v785
    %v787 = vpop.f32.mrf.mxu0
    %788 = vdwg.mxu0
    %v790 = vrot.slane %v786, 5
    %v791 = vrot.slane %v786, 6
    %v794 = vadd.f32 %v191, %v790
    %v795 = vadd.f32 %v196, %v791
    %v796 = vtanh.pop %v794
    %v797 = vtanh.pop %v795
    %v798 = vxor.u32 %v794, 2147483648
    %v799 = vxor.u32 %v795, 2147483648
    %v800 = vmul.f32 %v798, 1.442695
    %v801 = vpow.pop %v800
    %v802 = vmul.f32 %v799, 1.442695
    %v803 = vpow.pop %v802
    %v804 = vadd.f32 %v801, 1.0
    %v805 = vadd.f32 %v803, 1.0
    %v806 = vrcp.pop %v804
    %v807 = vmul.f32 1.0, %v806
    %v808 = vrcp.pop %v805
    %v809 = vmul.f32 1.0, %v808
    %v812 = vrot.slane %v796, 3
    %v813 = vrot.slane %v797, 2
    %v814 = vsel %vm300, %v813, %v812
    %v818 = vrot.slane %v807, 3
    %v819 = vrot.slane %v809, 2
    %v820 = vsel %vm300, %v819, %v818
    %v822 = vsel %vm105, %v814, %v820
    %v823 = vmul.f32 %v822, %v661
    %825 = vrot.lane.b32.xlu0 %v822, 64
    %v826 = vpop.permute.xlu0 %825
    %v828 = vmul.f32 %v822, %v826
    %830 = vrot.lane.b32.xlu0 %v828, 32
    %v831 = vpop.permute.xlu0 %830
    %v833 = vadd.f32 %v823, %v831
    %v834 = vtanh.pop %v833
    %836 = vrot.lane.b32.xlu0 %v834, 64
    %v837 = vpop.permute.xlu0 %836
    %v839 = vmul.f32 %v822, %v837
    %v840 = vxor.u32 %v839, 2147483648
    %v841 = vmul.f32 %v840, 1.442695
    %v842 = vpow.pop %v841
    %v843 = vadd.f32 %v842, 1.0
    %v844 = vrcp.pop %v843
    %v845 = vmul.f32 1.0, %v844
    %v846 = vmul.f32 %v839, %v845
    %v849 = vunpack.c.l.s4 1966171168
    %v850 = vunpack.c.0.s8 %v849
    %v851 = vlaneseq
    %v852 = vshrl.u32 %v851, 7
    %v853 = vsub.s32 %v850, %v852
    %v854 = vrot.slane %v846, %v853
    %v855 = vcombine.high %v854, %v854
    %v857 = vunpack.c.l.s4 1966171168
    %v858 = vunpack.c.0.s8 %v857
    %v859 = vlaneseq
    %v860 = vshrl.u32 %v859, 7
    %v861 = vsub.s32 %v858, %v860
    %v862 = vrot.slane %v854, %v861
    %v864 = vunpack.c.l.s4 1966171168
    %v865 = vunpack.c.0.s8 %v864
    %v866 = vlaneseq
    %v867 = vshrl.u32 %v866, 7
    %v868 = vsub.s32 %v865, %v867
    %v869 = vrot.slane %v855, %v868
    %v870 = vlaneseq
    %v871 = vshrl.u32 %v870, 7
    %v872 = vsub.s32 0, %v871
    %v873 = vrot.slane %v862, %v872
    %v874 = vlaneseq
    %v875 = vshrl.u32 %v874, 7
    %v876 = vsub.s32 0, %v875
    %v877 = vrot.slane %v869, %v876
    %878 = vrot.lane.b32.xlu0 %v873, 32
    %v879 = vpop.permute.xlu0 %878
    %880 = vrot.lane.b32.xlu0 %v877, 32
    %v881 = vpop.permute.xlu0 %880
    %884 = vst.msk [vmem:[#allocation2 + $0x3] sm:$0x1] %vm370, %v879
    %885 = vst.msk [vmem:[#allocation2 + $0xb] sm:$0x1] %vm370, %v881
    %887 = vrot.lane.b32.xlu0 %v839, 32
    %v888 = vpop.permute.xlu0 %887
    %v889 = vsel %vm203, %v888, 0
    %891 = vmatprep.subr.mxu0 0.0
    %892 = vmatpush1.msra.mxu0 0.0
    %893 = vmatprep.subr.mxu0 0.0
    %894 = vmatpush1.msra.mxu0 0.0
    %895 = vmatprep.subr.mxu0 0.0
    %896 = vmatpush1.msra.mxu0 0.0
    %897 = vmatprep.subr.mxu0 0.0
    %898 = vmatpush1.msra.mxu0 0.0
    %899 = vmatprep.subr.mxu0 0.0
    %900 = vmatpush1.msra.mxu0 0.0
    %901 = vmatprep.subr.mxu0 0.0
    %902 = vmatpush1.msra.mxu0 0.0
    %903 = vmatprep.subr.mxu0 0.0
    %904 = vmatpush1.msra.mxu0 0.0
    %905 = vmatprep.subr.mxu0 0.0
    %906 = vmatpush1.msra.mxu0 0.0
    %907 = vmatprep.subr.mxu0 0.0
    %908 = vmatpush1.msra.mxu0 0.0
    %909 = vmatprep.subr.mxu0 0.0
    %910 = vmatpush1.msra.mxu0 0.0
    %911 = vmatprep.subr.mxu0 0.0
    %912 = vmatpush1.msra.mxu0 0.0
    %913 = vmatprep.subr.mxu0 0.0
    %914 = vmatpush1.msra.mxu0 0.0
    %915 = vmatprep.subr.mxu0 0.0
    %916 = vmatpush1.msra.mxu0 %v202
    %917 = vmatprep.subr.mxu0 0.0
    %918 = vmatpush1.msra.mxu0 %v201
    %919 = vmatprep.subr.mxu0 0.0
    %920 = vmatpush1.msra.mxu0 %v200
    %921 = vmatprep.subr.mxu0 0.0
    %922 = vmatpush1.msra.mxu0 %v199
    %923 = vmatprep.subr.mxu0 0.0
    %924 = vmatpush2.msra.mxu0 0.0
    %925 = vmatprep.subr.mxu0 0.0
    %926 = vmatpush2.msra.mxu0 0.0
    %927 = vmatprep.subr.mxu0 0.0
    %928 = vmatpush2.msra.mxu0 0.0
    %929 = vmatprep.subr.mxu0 0.0
    %930 = vmatpush2.msra.mxu0 0.0
    %931 = vmatprep.subr.mxu0 0.0
    %932 = vmatpush2.msra.mxu0 0.0
    %933 = vmatprep.subr.mxu0 0.0
    %934 = vmatpush2.msra.mxu0 0.0
    %935 = vmatprep.subr.mxu0 0.0
    %936 = vmatpush2.msra.mxu0 0.0
    %937 = vmatprep.subr.mxu0 0.0
    %938 = vmatpush2.msra.mxu0 0.0
    %939 = vmatprep.subr.mxu0 0.0
    %940 = vmatpush2.msra.mxu0 0.0
    %941 = vmatprep.subr.mxu0 0.0
    %942 = vmatpush2.msra.mxu0 0.0
    %943 = vmatprep.subr.mxu0 0.0
    %944 = vmatpush2.msra.mxu0 0.0
    %945 = vmatprep.subr.mxu0 0.0
    %946 = vmatpush2.msra.mxu0 0.0
    %947 = vmatprep.subr.mxu0 0.0
    %948 = vmatpush2.msra.mxu0 0.0
    %949 = vmatprep.subr.mxu0 0.0
    %950 = vmatpush2.msra.mxu0 0.0
    %951 = vmatprep.subr.mxu0 0.0
    %952 = vmatpush2.msra.mxu0 0.0
    %953 = vmatprep.subr.mxu0 0.0
    %954 = vmatpush2.msra.mxu0 0.0
    %955 = vmatprep.mubr.f32.mxu0 0.0
    %956 = vmatmul.mubr.f32.gmra.mxu0 %v889
    %v957 = vpop.f32.mrf.mxu0
    %v958 = vadd.f32 0.0, %v957
    %v959 = vpop.f32.mrf.mxu0
    %960 = vdwg.mxu0
    %v962 = vrot.slane %v958, 4
    %v963 = vrot.slane %v958, 5
    %v966 = vadd.f32 %v191, %v962
    %v967 = vadd.f32 %v196, %v963
    %v968 = vtanh.pop %v966
    %v969 = vtanh.pop %v967
    %v970 = vxor.u32 %v966, 2147483648
    %v971 = vxor.u32 %v967, 2147483648
    %v972 = vmul.f32 %v970, 1.442695
    %v973 = vpow.pop %v972
    %v974 = vmul.f32 %v971, 1.442695
    %v975 = vpow.pop %v974
    %v976 = vadd.f32 %v973, 1.0
    %v977 = vadd.f32 %v975, 1.0
    %v978 = vrcp.pop %v976
    %v979 = vmul.f32 1.0, %v978
    %v980 = vrcp.pop %v977
    %v981 = vmul.f32 1.0, %v980
    %v984 = vrot.slane %v968, 4
    %v985 = vrot.slane %v969, 3
    %v986 = vsel %vm300, %v985, %v984
    %v990 = vrot.slane %v979, 4
    %v991 = vrot.slane %v981, 3
    %v992 = vsel %vm300, %v991, %v990
    %v994 = vsel %vm105, %v986, %v992
    %v995 = vmul.f32 %v994, %v833
    %997 = vrot.lane.b32.xlu0 %v994, 64
    %v998 = vpop.permute.xlu0 %997
    %v1000 = vmul.f32 %v994, %v998
    %1002 = vrot.lane.b32.xlu0 %v1000, 32
    %v1003 = vpop.permute.xlu0 %1002
    %v1005 = vadd.f32 %v995, %v1003
    %v1006 = vtanh.pop %v1005
    %1008 = vrot.lane.b32.xlu0 %v1006, 64
    %v1009 = vpop.permute.xlu0 %1008
    %v1011 = vmul.f32 %v994, %v1009
    %v1012 = vxor.u32 %v1011, 2147483648
    %v1013 = vmul.f32 %v1012, 1.442695
    %v1014 = vpow.pop %v1013
    %v1015 = vadd.f32 %v1014, 1.0
    %v1016 = vrcp.pop %v1015
    %v1017 = vmul.f32 1.0, %v1016
    %v1018 = vmul.f32 %v1011, %v1017
    %v1021 = vunpack.c.l.s4 1966171168
    %v1022 = vunpack.c.0.s8 %v1021
    %v1023 = vlaneseq
    %v1024 = vshrl.u32 %v1023, 7
    %v1025 = vsub.s32 %v1022, %v1024
    %v1026 = vrot.slane %v1018, %v1025
    %v1027 = vcombine.high %v1026, %v1026
    %v1029 = vunpack.c.l.s4 1966171168
    %v1030 = vunpack.c.0.s8 %v1029
    %v1031 = vlaneseq
    %v1032 = vshrl.u32 %v1031, 7
    %v1033 = vsub.s32 %v1030, %v1032
    %v1034 = vrot.slane %v1026, %v1033
    %v1036 = vunpack.c.l.s4 1966171168
    %v1037 = vunpack.c.0.s8 %v1036
    %v1038 = vlaneseq
    %v1039 = vshrl.u32 %v1038, 7
    %v1040 = vsub.s32 %v1037, %v1039
    %v1041 = vrot.slane %v1027, %v1040
    %v1042 = vlaneseq
    %v1043 = vshrl.u32 %v1042, 7
    %v1044 = vsub.s32 0, %v1043
    %v1045 = vrot.slane %v1034, %v1044
    %v1046 = vlaneseq
    %v1047 = vshrl.u32 %v1046, 7
    %v1048 = vsub.s32 0, %v1047
    %v1049 = vrot.slane %v1041, %v1048
    %1050 = vrot.lane.b32.xlu0 %v1045, 32
    %v1051 = vpop.permute.xlu0 %1050
    %1052 = vrot.lane.b32.xlu0 %v1049, 32
    %v1053 = vpop.permute.xlu0 %1052
    %1056 = vst.msk [vmem:[#allocation2 + $0x4] sm:$0x1] %vm370, %v1051
    %1057 = vst.msk [vmem:[#allocation2 + $0xc] sm:$0x1] %vm370, %v1053
    %1059 = vrot.lane.b32.xlu0 %v1011, 32
    %v1060 = vpop.permute.xlu0 %1059
    %v1061 = vsel %vm203, %v1060, 0
    %1063 = vmatprep.subr.mxu0 0.0
    %1064 = vmatpush1.msra.mxu0 0.0
    %1065 = vmatprep.subr.mxu0 0.0
    %1066 = vmatpush1.msra.mxu0 0.0
    %1067 = vmatprep.subr.mxu0 0.0
    %1068 = vmatpush1.msra.mxu0 0.0
    %1069 = vmatprep.subr.mxu0 0.0
    %1070 = vmatpush1.msra.mxu0 0.0
    %1071 = vmatprep.subr.mxu0 0.0
    %1072 = vmatpush1.msra.mxu0 0.0
    %1073 = vmatprep.subr.mxu0 0.0
    %1074 = vmatpush1.msra.mxu0 0.0
    %1075 = vmatprep.subr.mxu0 0.0
    %1076 = vmatpush1.msra.mxu0 0.0
    %1077 = vmatprep.subr.mxu0 0.0
    %1078 = vmatpush1.msra.mxu0 0.0
    %1079 = vmatprep.subr.mxu0 0.0
    %1080 = vmatpush1.msra.mxu0 0.0
    %1081 = vmatprep.subr.mxu0 0.0
    %1082 = vmatpush1.msra.mxu0 0.0
    %1083 = vmatprep.subr.mxu0 0.0
    %1084 = vmatpush1.msra.mxu0 0.0
    %1085 = vmatprep.subr.mxu0 0.0
    %1086 = vmatpush1.msra.mxu0 0.0
    %1087 = vmatprep.subr.mxu0 0.0
    %1088 = vmatpush1.msra.mxu0 %v202
    %1089 = vmatprep.subr.mxu0 0.0
    %1090 = vmatpush1.msra.mxu0 %v201
    %1091 = vmatprep.subr.mxu0 0.0
    %1092 = vmatpush1.msra.mxu0 %v200
    %1093 = vmatprep.subr.mxu0 0.0
    %1094 = vmatpush1.msra.mxu0 %v199
    %1095 = vmatprep.subr.mxu0 0.0
    %1096 = vmatpush2.msra.mxu0 0.0
    %1097 = vmatprep.subr.mxu0 0.0
    %1098 = vmatpush2.msra.mxu0 0.0
    %1099 = vmatprep.subr.mxu0 0.0
    %1100 = vmatpush2.msra.mxu0 0.0
    %1101 = vmatprep.subr.mxu0 0.0
    %1102 = vmatpush2.msra.mxu0 0.0
    %1103 = vmatprep.subr.mxu0 0.0
    %1104 = vmatpush2.msra.mxu0 0.0
    %1105 = vmatprep.subr.mxu0 0.0
    %1106 = vmatpush2.msra.mxu0 0.0
    %1107 = vmatprep.subr.mxu0 0.0
    %1108 = vmatpush2.msra.mxu0 0.0
    %1109 = vmatprep.subr.mxu0 0.0
    %1110 = vmatpush2.msra.mxu0 0.0
    %1111 = vmatprep.subr.mxu0 0.0
    %1112 = vmatpush2.msra.mxu0 0.0
    %1113 = vmatprep.subr.mxu0 0.0
    %1114 = vmatpush2.msra.mxu0 0.0
    %1115 = vmatprep.subr.mxu0 0.0
    %1116 = vmatpush2.msra.mxu0 0.0
    %1117 = vmatprep.subr.mxu0 0.0
    %1118 = vmatpush2.msra.mxu0 0.0
    %1119 = vmatprep.subr.mxu0 0.0
    %1120 = vmatpush2.msra.mxu0 0.0
    %1121 = vmatprep.subr.mxu0 0.0
    %1122 = vmatpush2.msra.mxu0 0.0
    %1123 = vmatprep.subr.mxu0 0.0
    %1124 = vmatpush2.msra.mxu0 0.0
    %1125 = vmatprep.subr.mxu0 0.0
    %1126 = vmatpush2.msra.mxu0 0.0
    %1127 = vmatprep.mubr.f32.mxu0 0.0
    %1128 = vmatmul.mubr.f32.gmra.mxu0 %v1061
    %v1129 = vpop.f32.mrf.mxu0
    %v1130 = vadd.f32 0.0, %v1129
    %v1131 = vpop.f32.mrf.mxu0
    %1132 = vdwg.mxu0
    %v1134 = vrot.slane %v1130, 3
    %v1135 = vrot.slane %v1130, 4
    %v1138 = vadd.f32 %v191, %v1134
    %v1139 = vadd.f32 %v196, %v1135
    %v1140 = vtanh.pop %v1138
    %v1141 = vtanh.pop %v1139
    %v1142 = vxor.u32 %v1138, 2147483648
    %v1143 = vxor.u32 %v1139, 2147483648
    %v1144 = vmul.f32 %v1142, 1.442695
    %v1145 = vpow.pop %v1144
    %v1146 = vmul.f32 %v1143, 1.442695
    %v1147 = vpow.pop %v1146
    %v1148 = vadd.f32 %v1145, 1.0
    %v1149 = vadd.f32 %v1147, 1.0
    %v1150 = vrcp.pop %v1148
    %v1151 = vmul.f32 1.0, %v1150
    %v1152 = vrcp.pop %v1149
    %v1153 = vmul.f32 1.0, %v1152
    %v1156 = vrot.slane %v1140, 5
    %v1157 = vrot.slane %v1141, 4
    %v1158 = vsel %vm300, %v1157, %v1156
    %v1162 = vrot.slane %v1151, 5
    %v1163 = vrot.slane %v1153, 4
    %v1164 = vsel %vm300, %v1163, %v1162
    %v1166 = vsel %vm105, %v1158, %v1164
    %v1167 = vmul.f32 %v1166, %v1005
    %1169 = vrot.lane.b32.xlu0 %v1166, 64
    %v1170 = vpop.permute.xlu0 %1169
    %v1172 = vmul.f32 %v1166, %v1170
    %1174 = vrot.lane.b32.xlu0 %v1172, 32
    %v1175 = vpop.permute.xlu0 %1174
    %v1177 = vadd.f32 %v1167, %v1175
    %v1178 = vtanh.pop %v1177
    %1180 = vrot.lane.b32.xlu0 %v1178, 64
    %v1181 = vpop.permute.xlu0 %1180
    %v1183 = vmul.f32 %v1166, %v1181
    %v1184 = vxor.u32 %v1183, 2147483648
    %v1185 = vmul.f32 %v1184, 1.442695
    %v1186 = vpow.pop %v1185
    %v1187 = vadd.f32 %v1186, 1.0
    %v1188 = vrcp.pop %v1187
    %v1189 = vmul.f32 1.0, %v1188
    %v1190 = vmul.f32 %v1183, %v1189
    %v1193 = vunpack.c.l.s4 1966171168
    %v1194 = vunpack.c.0.s8 %v1193
    %v1195 = vlaneseq
    %v1196 = vshrl.u32 %v1195, 7
    %v1197 = vsub.s32 %v1194, %v1196
    %v1198 = vrot.slane %v1190, %v1197
    %v1199 = vcombine.high %v1198, %v1198
    %v1201 = vunpack.c.l.s4 1966171168
    %v1202 = vunpack.c.0.s8 %v1201
    %v1203 = vlaneseq
    %v1204 = vshrl.u32 %v1203, 7
    %v1205 = vsub.s32 %v1202, %v1204
    %v1206 = vrot.slane %v1198, %v1205
    %v1208 = vunpack.c.l.s4 1966171168
    %v1209 = vunpack.c.0.s8 %v1208
    %v1210 = vlaneseq
    %v1211 = vshrl.u32 %v1210, 7
    %v1212 = vsub.s32 %v1209, %v1211
    %v1213 = vrot.slane %v1199, %v1212
    %v1214 = vlaneseq
    %v1215 = vshrl.u32 %v1214, 7
    %v1216 = vsub.s32 0, %v1215
    %v1217 = vrot.slane %v1206, %v1216
    %v1218 = vlaneseq
    %v1219 = vshrl.u32 %v1218, 7
    %v1220 = vsub.s32 0, %v1219
    %v1221 = vrot.slane %v1213, %v1220
    %1222 = vrot.lane.b32.xlu0 %v1217, 32
    %v1223 = vpop.permute.xlu0 %1222
    %1224 = vrot.lane.b32.xlu0 %v1221, 32
    %v1225 = vpop.permute.xlu0 %1224
    %1228 = vst.msk [vmem:[#allocation2 + $0x5] sm:$0x1] %vm370, %v1223
    %1229 = vst.msk [vmem:[#allocation2 + $0xd] sm:$0x1] %vm370, %v1225
    %1231 = vrot.lane.b32.xlu0 %v1183, 32
    %v1232 = vpop.permute.xlu0 %1231
    %v1233 = vsel %vm203, %v1232, 0
    %1235 = vmatprep.subr.mxu0 0.0
    %1236 = vmatpush1.msra.mxu0 0.0
    %1237 = vmatprep.subr.mxu0 0.0
    %1238 = vmatpush1.msra.mxu0 0.0
    %1239 = vmatprep.subr.mxu0 0.0
    %1240 = vmatpush1.msra.mxu0 0.0
    %1241 = vmatprep.subr.mxu0 0.0
    %1242 = vmatpush1.msra.mxu0 0.0
    %1243 = vmatprep.subr.mxu0 0.0
    %1244 = vmatpush1.msra.mxu0 0.0
    %1245 = vmatprep.subr.mxu0 0.0
    %1246 = vmatpush1.msra.mxu0 0.0
    %1247 = vmatprep.subr.mxu0 0.0
    %1248 = vmatpush1.msra.mxu0 0.0
    %1249 = vmatprep.subr.mxu0 0.0
    %1250 = vmatpush1.msra.mxu0 0.0
    %1251 = vmatprep.subr.mxu0 0.0
    %1252 = vmatpush1.msra.mxu0 0.0
    %1253 = vmatprep.subr.mxu0 0.0
    %1254 = vmatpush1.msra.mxu0 0.0
    %1255 = vmatprep.subr.mxu0 0.0
    %1256 = vmatpush1.msra.mxu0 0.0
    %1257 = vmatprep.subr.mxu0 0.0
    %1258 = vmatpush1.msra.mxu0 0.0
    %1259 = vmatprep.subr.mxu0 0.0
    %1260 = vmatpush1.msra.mxu0 %v202
    %1261 = vmatprep.subr.mxu0 0.0
    %1262 = vmatpush1.msra.mxu0 %v201
    %1263 = vmatprep.subr.mxu0 0.0
    %1264 = vmatpush1.msra.mxu0 %v200
    %1265 = vmatprep.subr.mxu0 0.0
    %1266 = vmatpush1.msra.mxu0 %v199
    %1267 = vmatprep.subr.mxu0 0.0
    %1268 = vmatpush2.msra.mxu0 0.0
    %1269 = vmatprep.subr.mxu0 0.0
    %1270 = vmatpush2.msra.mxu0 0.0
    %1271 = vmatprep.subr.mxu0 0.0
    %1272 = vmatpush2.msra.mxu0 0.0
    %1273 = vmatprep.subr.mxu0 0.0
    %1274 = vmatpush2.msra.mxu0 0.0
    %1275 = vmatprep.subr.mxu0 0.0
    %1276 = vmatpush2.msra.mxu0 0.0
    %1277 = vmatprep.subr.mxu0 0.0
    %1278 = vmatpush2.msra.mxu0 0.0
    %1279 = vmatprep.subr.mxu0 0.0
    %1280 = vmatpush2.msra.mxu0 0.0
    %1281 = vmatprep.subr.mxu0 0.0
    %1282 = vmatpush2.msra.mxu0 0.0
    %1283 = vmatprep.subr.mxu0 0.0
    %1284 = vmatpush2.msra.mxu0 0.0
    %1285 = vmatprep.subr.mxu0 0.0
    %1286 = vmatpush2.msra.mxu0 0.0
    %1287 = vmatprep.subr.mxu0 0.0
    %1288 = vmatpush2.msra.mxu0 0.0
    %1289 = vmatprep.subr.mxu0 0.0
    %1290 = vmatpush2.msra.mxu0 0.0
    %1291 = vmatprep.subr.mxu0 0.0
    %1292 = vmatpush2.msra.mxu0 0.0
    %1293 = vmatprep.subr.mxu0 0.0
    %1294 = vmatpush2.msra.mxu0 0.0
    %1295 = vmatprep.subr.mxu0 0.0
    %1296 = vmatpush2.msra.mxu0 0.0
    %1297 = vmatprep.subr.mxu0 0.0
    %1298 = vmatpush2.msra.mxu0 0.0
    %1299 = vmatprep.mubr.f32.mxu0 0.0
    %1300 = vmatmul.mubr.f32.gmra.mxu0 %v1233
    %v1301 = vpop.f32.mrf.mxu0
    %v1302 = vadd.f32 0.0, %v1301
    %v1303 = vpop.f32.mrf.mxu0
    %1304 = vdwg.mxu0
    %v1306 = vrot.slane %v1302, 2
    %v1307 = vrot.slane %v1302, 3
    %v1310 = vadd.f32 %v191, %v1306
    %v1311 = vadd.f32 %v196, %v1307
    %v1312 = vtanh.pop %v1310
    %v1313 = vtanh.pop %v1311
    %v1314 = vxor.u32 %v1310, 2147483648
    %v1315 = vxor.u32 %v1311, 2147483648
    %v1316 = vmul.f32 %v1314, 1.442695
    %v1317 = vpow.pop %v1316
    %v1318 = vmul.f32 %v1315, 1.442695
    %v1319 = vpow.pop %v1318
    %v1320 = vadd.f32 %v1317, 1.0
    %v1321 = vadd.f32 %v1319, 1.0
    %v1322 = vrcp.pop %v1320
    %v1323 = vmul.f32 1.0, %v1322
    %v1324 = vrcp.pop %v1321
    %v1325 = vmul.f32 1.0, %v1324
    %v1328 = vrot.slane %v1312, 6
    %v1329 = vrot.slane %v1313, 5
    %v1330 = vsel %vm300, %v1329, %v1328
    %v1334 = vrot.slane %v1323, 6
    %v1335 = vrot.slane %v1325, 5
    %v1336 = vsel %vm300, %v1335, %v1334
    %v1338 = vsel %vm105, %v1330, %v1336
    %v1339 = vmul.f32 %v1338, %v1177
    %1341 = vrot.lane.b32.xlu0 %v1338, 64
    %v1342 = vpop.permute.xlu0 %1341
    %v1344 = vmul.f32 %v1338, %v1342
    %1346 = vrot.lane.b32.xlu0 %v1344, 32
    %v1347 = vpop.permute.xlu0 %1346
    %v1349 = vadd.f32 %v1339, %v1347
    %v1350 = vtanh.pop %v1349
    %1352 = vrot.lane.b32.xlu0 %v1350, 64
    %v1353 = vpop.permute.xlu0 %1352
    %v1355 = vmul.f32 %v1338, %v1353
    %v1356 = vxor.u32 %v1355, 2147483648
    %v1357 = vmul.f32 %v1356, 1.442695
    %v1358 = vpow.pop %v1357
    %v1359 = vadd.f32 %v1358, 1.0
    %v1360 = vrcp.pop %v1359
    %v1361 = vmul.f32 1.0, %v1360
    %v1362 = vmul.f32 %v1355, %v1361
    %v1365 = vunpack.c.l.s4 1966171168
    %v1366 = vunpack.c.0.s8 %v1365
    %v1367 = vlaneseq
    %v1368 = vshrl.u32 %v1367, 7
    %v1369 = vsub.s32 %v1366, %v1368
    %v1370 = vrot.slane %v1362, %v1369
    %v1371 = vcombine.high %v1370, %v1370
    %v1373 = vunpack.c.l.s4 1966171168
    %v1374 = vunpack.c.0.s8 %v1373
    %v1375 = vlaneseq
    %v1376 = vshrl.u32 %v1375, 7
    %v1377 = vsub.s32 %v1374, %v1376
    %v1378 = vrot.slane %v1370, %v1377
    %v1380 = vunpack.c.l.s4 1966171168
    %v1381 = vunpack.c.0.s8 %v1380
    %v1382 = vlaneseq
    %v1383 = vshrl.u32 %v1382, 7
    %v1384 = vsub.s32 %v1381, %v1383
    %v1385 = vrot.slane %v1371, %v1384
    %v1386 = vlaneseq
    %v1387 = vshrl.u32 %v1386, 7
    %v1388 = vsub.s32 0, %v1387
    %v1389 = vrot.slane %v1378, %v1388
    %v1390 = vlaneseq
    %v1391 = vshrl.u32 %v1390, 7
    %v1392 = vsub.s32 0, %v1391
    %v1393 = vrot.slane %v1385, %v1392
    %1394 = vrot.lane.b32.xlu0 %v1389, 32
    %v1395 = vpop.permute.xlu0 %1394
    %1396 = vrot.lane.b32.xlu0 %v1393, 32
    %v1397 = vpop.permute.xlu0 %1396
    %1400 = vst.msk [vmem:[#allocation2 + $0x6] sm:$0x1] %vm370, %v1395
    %1401 = vst.msk [vmem:[#allocation2 + $0xe] sm:$0x1] %vm370, %v1397
    %1403 = vrot.lane.b32.xlu0 %v1355, 32
    %v1404 = vpop.permute.xlu0 %1403
    %v1405 = vsel %vm203, %v1404, 0
    %1407 = vmatprep.subr.mxu0 0.0
    %1408 = vmatpush1.msra.mxu0 0.0
    %1409 = vmatprep.subr.mxu0 0.0
    %1410 = vmatpush1.msra.mxu0 0.0
    %1411 = vmatprep.subr.mxu0 0.0
    %1412 = vmatpush1.msra.mxu0 0.0
    %1413 = vmatprep.subr.mxu0 0.0
    %1414 = vmatpush1.msra.mxu0 0.0
    %1415 = vmatprep.subr.mxu0 0.0
    %1416 = vmatpush1.msra.mxu0 0.0
    %1417 = vmatprep.subr.mxu0 0.0
    %1418 = vmatpush1.msra.mxu0 0.0
    %1419 = vmatprep.subr.mxu0 0.0
    %1420 = vmatpush1.msra.mxu0 0.0
    %1421 = vmatprep.subr.mxu0 0.0
    %1422 = vmatpush1.msra.mxu0 0.0
    %1423 = vmatprep.subr.mxu0 0.0
    %1424 = vmatpush1.msra.mxu0 0.0
    %1425 = vmatprep.subr.mxu0 0.0
    %1426 = vmatpush1.msra.mxu0 0.0
    %1427 = vmatprep.subr.mxu0 0.0
    %1428 = vmatpush1.msra.mxu0 0.0
    %1429 = vmatprep.subr.mxu0 0.0
    %1430 = vmatpush1.msra.mxu0 0.0
    %1431 = vmatprep.subr.mxu0 0.0
    %1432 = vmatpush1.msra.mxu0 %v202
    %1433 = vmatprep.subr.mxu0 0.0
    %1434 = vmatpush1.msra.mxu0 %v201
    %1435 = vmatprep.subr.mxu0 0.0
    %1436 = vmatpush1.msra.mxu0 %v200
    %1437 = vmatprep.subr.mxu0 0.0
    %1438 = vmatpush1.msra.mxu0 %v199
    %1439 = vmatprep.subr.mxu0 0.0
    %1440 = vmatpush2.msra.mxu0 0.0
    %1441 = vmatprep.subr.mxu0 0.0
    %1442 = vmatpush2.msra.mxu0 0.0
    %1443 = vmatprep.subr.mxu0 0.0
    %1444 = vmatpush2.msra.mxu0 0.0
    %1445 = vmatprep.subr.mxu0 0.0
    %1446 = vmatpush2.msra.mxu0 0.0
    %1447 = vmatprep.subr.mxu0 0.0
    %1448 = vmatpush2.msra.mxu0 0.0
    %1449 = vmatprep.subr.mxu0 0.0
    %1450 = vmatpush2.msra.mxu0 0.0
    %1451 = vmatprep.subr.mxu0 0.0
    %1452 = vmatpush2.msra.mxu0 0.0
    %1453 = vmatprep.subr.mxu0 0.0
    %1454 = vmatpush2.msra.mxu0 0.0
    %1455 = vmatprep.subr.mxu0 0.0
    %1456 = vmatpush2.msra.mxu0 0.0
    %1457 = vmatprep.subr.mxu0 0.0
    %1458 = vmatpush2.msra.mxu0 0.0
    %1459 = vmatprep.subr.mxu0 0.0
    %1460 = vmatpush2.msra.mxu0 0.0
    %1461 = vmatprep.subr.mxu0 0.0
    %1462 = vmatpush2.msra.mxu0 0.0
    %1463 = vmatprep.subr.mxu0 0.0
    %1464 = vmatpush2.msra.mxu0 0.0
    %1465 = vmatprep.subr.mxu0 0.0
    %1466 = vmatpush2.msra.mxu0 0.0
    %1467 = vmatprep.subr.mxu0 0.0
    %1468 = vmatpush2.msra.mxu0 0.0
    %1469 = vmatprep.subr.mxu0 0.0
    %1470 = vmatpush2.msra.mxu0 0.0
    %1471 = vmatprep.mubr.f32.mxu0 0.0
    %1472 = vmatmul.mubr.f32.gmra.mxu0 %v1405
    %v1473 = vpop.f32.mrf.mxu0
    %v1474 = vadd.f32 0.0, %v1473
    %v1475 = vpop.f32.mrf.mxu0
    %1476 = vdwg.mxu0
    %v1478 = vrot.slane %v1474, 1
    %v1479 = vrot.slane %v1474, 2
    %v1482 = vadd.f32 %v191, %v1478
    %v1483 = vadd.f32 %v196, %v1479
    %v1484 = vtanh.pop %v1482
    %v1485 = vtanh.pop %v1483
    %v1486 = vxor.u32 %v1482, 2147483648
    %v1487 = vxor.u32 %v1483, 2147483648
    %v1488 = vmul.f32 %v1486, 1.442695
    %v1489 = vpow.pop %v1488
    %v1490 = vmul.f32 %v1487, 1.442695
    %v1491 = vpow.pop %v1490
    %v1492 = vadd.f32 %v1489, 1.0
    %v1493 = vadd.f32 %v1491, 1.0
    %v1494 = vrcp.pop %v1492
    %v1495 = vmul.f32 1.0, %v1494
    %v1496 = vrcp.pop %v1493
    %v1497 = vmul.f32 1.0, %v1496
    %v1500 = vrot.slane %v1484, 7
    %v1501 = vrot.slane %v1485, 6
    %v1502 = vsel %vm300, %v1501, %v1500
    %v1506 = vrot.slane %v1495, 7
    %v1507 = vrot.slane %v1497, 6
    %v1508 = vsel %vm300, %v1507, %v1506
    %v1510 = vsel %vm105, %v1502, %v1508
    %v1511 = vmul.f32 %v1510, %v1349
    %1513 = vrot.lane.b32.xlu0 %v1510, 64
    %v1514 = vpop.permute.xlu0 %1513
    %v1516 = vmul.f32 %v1510, %v1514
    %1518 = vrot.lane.b32.xlu0 %v1516, 32
    %v1519 = vpop.permute.xlu0 %1518
    %v1521 = vadd.f32 %v1511, %v1519
    %v1522 = vtanh.pop %v1521
    %1524 = vrot.lane.b32.xlu0 %v1522, 64
    %v1525 = vpop.permute.xlu0 %1524
    %v1527 = vmul.f32 %v1510, %v1525
    %v1528 = vxor.u32 %v1527, 2147483648
    %v1529 = vmul.f32 %v1528, 1.442695
    %v1530 = vpow.pop %v1529
    %v1531 = vadd.f32 %v1530, 1.0
    %v1532 = vrcp.pop %v1531
    %v1533 = vmul.f32 1.0, %v1532
    %v1534 = vmul.f32 %v1527, %v1533
    %v1537 = vunpack.c.l.s4 1966171168
    %v1538 = vunpack.c.0.s8 %v1537
    %v1539 = vlaneseq
    %v1540 = vshrl.u32 %v1539, 7
    %v1541 = vsub.s32 %v1538, %v1540
    %v1542 = vrot.slane %v1534, %v1541
    %v1543 = vcombine.high %v1542, %v1542
    %v1545 = vunpack.c.l.s4 1966171168
    %v1546 = vunpack.c.0.s8 %v1545
    %v1547 = vlaneseq
    %v1548 = vshrl.u32 %v1547, 7
    %v1549 = vsub.s32 %v1546, %v1548
    %v1550 = vrot.slane %v1542, %v1549
    %v1552 = vunpack.c.l.s4 1966171168
    %v1553 = vunpack.c.0.s8 %v1552
    %v1554 = vlaneseq
    %v1555 = vshrl.u32 %v1554, 7
    %v1556 = vsub.s32 %v1553, %v1555
    %v1557 = vrot.slane %v1543, %v1556
    %v1558 = vlaneseq
    %v1559 = vshrl.u32 %v1558, 7
    %v1560 = vsub.s32 0, %v1559
    %v1561 = vrot.slane %v1550, %v1560
    %v1562 = vlaneseq
    %v1563 = vshrl.u32 %v1562, 7
    %v1564 = vsub.s32 0, %v1563
    %v1565 = vrot.slane %v1557, %v1564
    %1566 = vrot.lane.b32.xlu0 %v1561, 32
    %v1567 = vpop.permute.xlu0 %1566
    %1568 = vrot.lane.b32.xlu0 %v1565, 32
    %v1569 = vpop.permute.xlu0 %1568
    %1572 = vst.msk [vmem:[#allocation2 + $0x7] sm:$0x1] %vm370, %v1567
    %1573 = vst.msk [vmem:[#allocation2 + $0xf] sm:$0x1] %vm370, %v1569
    %v1574 = vld [vmem:[#allocation2] sm:$0xff]
    %v1575 = vld [vmem:[#allocation2 + $0x8] sm:$0xff]
    %v1576 = vld [vmem:[#allocation9] sm:$0xff]
    %v1577 = vld [vmem:[#allocation9 + $0x8] sm:$0xff]
    %v1578 = vld [vmem:[#allocation9 + $0x10] sm:$0xff]
    %v1579 = vld [vmem:[#allocation9 + $0x18] sm:$0xff]
    %v1580 = vld [vmem:[%s6] sm:$0x1]
    %v1582 = vlaneseq
    %v1583 = vshrl.u32 %v1582, 7
    %v1584 = vsub.s32 0, %v1583
    %v1585 = vrot.slane %v1580, %v1584
    %v1588 = vsel %vm203, %v1574, 0
    %v1591 = vsel %vm203, %v1575, 0
    %1593 = vmatprep.subr.mxu0 0.0
    %1594 = vmatpush1.msra.mxu0 0.0
    %1595 = vmatprep.subr.mxu0 0.0
    %1596 = vmatpush1.msra.mxu0 0.0
    %1597 = vmatprep.subr.mxu0 0.0
    %1598 = vmatpush1.msra.mxu0 0.0
    %1599 = vmatprep.subr.mxu0 0.0
    %1600 = vmatpush1.msra.mxu0 0.0
    %1601 = vmatprep.subr.mxu0 0.0
    %1602 = vmatpush1.msra.mxu0 0.0
    %1603 = vmatprep.subr.mxu0 0.0
    %1604 = vmatpush1.msra.mxu0 0.0
    %1605 = vmatprep.subr.mxu0 0.0
    %1606 = vmatpush1.msra.mxu0 0.0
    %1607 = vmatprep.subr.mxu0 0.0
    %1608 = vmatpush1.msra.mxu0 0.0
    %1609 = vmatprep.subr.mxu0 0.0
    %1610 = vmatpush1.msra.mxu0 0.0
    %1611 = vmatprep.subr.mxu0 0.0
    %1612 = vmatpush1.msra.mxu0 0.0
    %1613 = vmatprep.subr.mxu0 0.0
    %1614 = vmatpush1.msra.mxu0 0.0
    %1615 = vmatprep.subr.mxu0 0.0
    %1616 = vmatpush1.msra.mxu0 0.0
    %1617 = vmatprep.subr.mxu0 0.0
    %1618 = vmatpush1.msra.mxu0 %v1579
    %1619 = vmatprep.subr.mxu0 0.0
    %1620 = vmatpush1.msra.mxu0 %v1578
    %1621 = vmatprep.subr.mxu0 0.0
    %1622 = vmatpush1.msra.mxu0 %v1577
    %1623 = vmatprep.subr.mxu0 0.0
    %1624 = vmatpush1.msra.mxu0 %v1576
    %1625 = vmatprep.subr.mxu0 0.0
    %1626 = vmatpush2.msra.mxu0 0.0
    %1627 = vmatprep.subr.mxu0 0.0
    %1628 = vmatpush2.msra.mxu0 0.0
    %1629 = vmatprep.subr.mxu0 0.0
    %1630 = vmatpush2.msra.mxu0 0.0
    %1631 = vmatprep.subr.mxu0 0.0
    %1632 = vmatpush2.msra.mxu0 0.0
    %1633 = vmatprep.subr.mxu0 0.0
    %1634 = vmatpush2.msra.mxu0 0.0
    %1635 = vmatprep.subr.mxu0 0.0
    %1636 = vmatpush2.msra.mxu0 0.0
    %1637 = vmatprep.subr.mxu0 0.0
    %1638 = vmatpush2.msra.mxu0 0.0
    %1639 = vmatprep.subr.mxu0 0.0
    %1640 = vmatpush2.msra.mxu0 0.0
    %1641 = vmatprep.subr.mxu0 0.0
    %1642 = vmatpush2.msra.mxu0 0.0
    %1643 = vmatprep.subr.mxu0 0.0
    %1644 = vmatpush2.msra.mxu0 0.0
    %1645 = vmatprep.subr.mxu0 0.0
    %1646 = vmatpush2.msra.mxu0 0.0
    %1647 = vmatprep.subr.mxu0 0.0
    %1648 = vmatpush2.msra.mxu0 0.0
    %1649 = vmatprep.subr.mxu0 0.0
    %1650 = vmatpush2.msra.mxu0 0.0
    %1651 = vmatprep.subr.mxu0 0.0
    %1652 = vmatpush2.msra.mxu0 0.0
    %1653 = vmatprep.subr.mxu0 0.0
    %1654 = vmatpush2.msra.mxu0 0.0
    %1655 = vmatprep.subr.mxu0 0.0
    %1656 = vmatpush2.msra.mxu0 0.0
    %1657 = vmatprep.mubr.f32.mxu0 0.0
    %1658 = vmatmul.mubr.f32.gmra.mxu0 %v1588
    %v1659 = vpop.f32.mrf.mxu0
    %v1660 = vadd.f32 %v1585, %v1659
    %v1661 = vpop.f32.mrf.mxu0
    %1662 = vmatprep.mubr.f32.mxu0 0.0
    %1663 = vmatmul.mubr.f32.gmra.mxu0 %v1591
    %v1664 = vpop.f32.mrf.mxu0
    %v1665 = vadd.f32 %v1585, %v1664
    %v1666 = vpop.f32.mrf.mxu0
    %1667 = vdwg.mxu0
    %v1668 = vld [vmem:[#allocation11] sm:$0xff]
    %v1669 = vld [vmem:[#allocation11 + $0x8] sm:$0xff]
    %v1670 = vld [vmem:[#allocation11 + $0x10] sm:$0xff]
    %v1671 = vld [vmem:[#allocation11 + $0x18] sm:$0xff]
    %1672 = vmatprep.subr.mxu0 0.0
    %1673 = vmatpush1.msra.mxu0 0.0
    %1674 = vmatprep.subr.mxu0 0.0
    %1675 = vmatpush1.msra.mxu0 0.0
    %1676 = vmatprep.subr.mxu0 0.0
    %1677 = vmatpush1.msra.mxu0 0.0
    %1678 = vmatprep.subr.mxu0 0.0
    %1679 = vmatpush1.msra.mxu0 0.0
    %1680 = vmatprep.subr.mxu0 0.0
    %1681 = vmatpush1.msra.mxu0 0.0
    %1682 = vmatprep.subr.mxu0 0.0
    %1683 = vmatpush1.msra.mxu0 0.0
    %1684 = vmatprep.subr.mxu0 0.0
    %1685 = vmatpush1.msra.mxu0 0.0
    %1686 = vmatprep.subr.mxu0 0.0
    %1687 = vmatpush1.msra.mxu0 0.0
    %1688 = vmatprep.subr.mxu0 0.0
    %1689 = vmatpush1.msra.mxu0 0.0
    %1690 = vmatprep.subr.mxu0 0.0
    %1691 = vmatpush1.msra.mxu0 0.0
    %1692 = vmatprep.subr.mxu0 0.0
    %1693 = vmatpush1.msra.mxu0 0.0
    %1694 = vmatprep.subr.mxu0 0.0
    %1695 = vmatpush1.msra.mxu0 0.0
    %1696 = vmatprep.subr.mxu0 0.0
    %1697 = vmatpush1.msra.mxu0 %v1671
    %1698 = vmatprep.subr.mxu0 0.0
    %1699 = vmatpush1.msra.mxu0 %v1670
    %1700 = vmatprep.subr.mxu0 0.0
    %1701 = vmatpush1.msra.mxu0 %v1669
    %1702 = vmatprep.subr.mxu0 0.0
    %1703 = vmatpush1.msra.mxu0 %v1668
    %1704 = vmatprep.subr.mxu0 0.0
    %1705 = vmatpush2.msra.mxu0 0.0
    %1706 = vmatprep.subr.mxu0 0.0
    %1707 = vmatpush2.msra.mxu0 0.0
    %1708 = vmatprep.subr.mxu0 0.0
    %1709 = vmatpush2.msra.mxu0 0.0
    %1710 = vmatprep.subr.mxu0 0.0
    %1711 = vmatpush2.msra.mxu0 0.0
    %1712 = vmatprep.subr.mxu0 0.0
    %1713 = vmatpush2.msra.mxu0 0.0
    %1714 = vmatprep.subr.mxu0 0.0
    %1715 = vmatpush2.msra.mxu0 0.0
    %1716 = vmatprep.subr.mxu0 0.0
    %1717 = vmatpush2.msra.mxu0 0.0
    %1718 = vmatprep.subr.mxu0 0.0
    %1719 = vmatpush2.msra.mxu0 0.0
    %1720 = vmatprep.subr.mxu0 0.0
    %1721 = vmatpush2.msra.mxu0 0.0
    %1722 = vmatprep.subr.mxu0 0.0
    %1723 = vmatpush2.msra.mxu0 0.0
    %1724 = vmatprep.subr.mxu0 0.0
    %1725 = vmatpush2.msra.mxu0 0.0
    %1726 = vmatprep.subr.mxu0 0.0
    %1727 = vmatpush2.msra.mxu0 0.0
    %1728 = vmatprep.subr.mxu0 0.0
    %1729 = vmatpush2.msra.mxu0 0.0
    %1730 = vmatprep.subr.mxu0 0.0
    %1731 = vmatpush2.msra.mxu0 0.0
    %1732 = vmatprep.subr.mxu0 0.0
    %1733 = vmatpush2.msra.mxu0 0.0
    %1734 = vmatprep.subr.mxu0 0.0
    %1735 = vmatpush2.msra.mxu0 0.0
    %1736 = vmatprep.mubr.f32.mxu0 0.0
    %1737 = vmatmul.mubr.f32.gmra.mxu0 %v205
    %v1738 = vpop.f32.mrf.mxu0
    %v1739 = vadd.f32 0.0, %v1738
    %v1740 = vpop.f32.mrf.mxu0
    %1741 = vdwg.mxu0
    %v1743 = vrot.slane %v1739, 1
    %v1746 = vadd.f32 %v1660, %v1739
    %v1747 = vadd.f32 %v1665, %v1743
    %v1748 = vtanh.pop %v1746
    %v1749 = vtanh.pop %v1747
    %v1750 = vxor.u32 %v1746, 2147483648
    %v1751 = vxor.u32 %v1747, 2147483648
    %v1752 = vmul.f32 %v1750, 1.442695
    %v1753 = vpow.pop %v1752
    %v1754 = vmul.f32 %v1751, 1.442695
    %v1755 = vpow.pop %v1754
    %v1756 = vadd.f32 %v1753, 1.0
    %v1757 = vadd.f32 %v1755, 1.0
    %v1758 = vrcp.pop %v1756
    %v1759 = vmul.f32 1.0, %v1758
    %v1760 = vrcp.pop %v1757
    %v1761 = vmul.f32 1.0, %v1760
    %v1764 = vrot.slane %v1749, 7
    %v1765 = vsel %vm300, %v1764, %v1748
    %v1769 = vrot.slane %v1761, 7
    %v1770 = vsel %vm300, %v1769, %v1759
    %v1772 = vsel %vm105, %v1765, %v1770
    %v1773 = vmul.f32 %v1772, 0.0
    %1775 = vrot.lane.b32.xlu0 %v1772, 64
    %v1776 = vpop.permute.xlu0 %1775
    %v1778 = vmul.f32 %v1772, %v1776
    %1780 = vrot.lane.b32.xlu0 %v1778, 32
    %v1781 = vpop.permute.xlu0 %1780
    %v1783 = vadd.f32 %v1773, %v1781
    %v1784 = vtanh.pop %v1783
    %1786 = vrot.lane.b32.xlu0 %v1784, 64
    %v1787 = vpop.permute.xlu0 %1786
    %v1789 = vmul.f32 %v1772, %v1787
    %v1792 = vunpack.c.l.s4 1966171168
    %v1793 = vunpack.c.0.s8 %v1792
    %v1794 = vlaneseq
    %v1795 = vshrl.u32 %v1794, 7
    %v1796 = vsub.s32 %v1793, %v1795
    %v1797 = vrot.slane %v1789, %v1796
    %v1798 = vcombine.high %v1797, %v1797
    %v1800 = vunpack.c.l.s4 1966171168
    %v1801 = vunpack.c.0.s8 %v1800
    %v1802 = vlaneseq
    %v1803 = vshrl.u32 %v1802, 7
    %v1804 = vsub.s32 %v1801, %v1803
    %v1805 = vrot.slane %v1797, %v1804
    %v1807 = vunpack.c.l.s4 1966171168
    %v1808 = vunpack.c.0.s8 %v1807
    %v1809 = vlaneseq
    %v1810 = vshrl.u32 %v1809, 7
    %v1811 = vsub.s32 %v1808, %v1810
    %v1812 = vrot.slane %v1798, %v1811
    %v1813 = vlaneseq
    %v1814 = vshrl.u32 %v1813, 7
    %v1815 = vsub.s32 0, %v1814
    %v1816 = vrot.slane %v1805, %v1815
    %v1817 = vlaneseq
    %v1818 = vshrl.u32 %v1817, 7
    %v1819 = vsub.s32 0, %v1818
    %v1820 = vrot.slane %v1812, %v1819
    %1821 = vrot.lane.b32.xlu0 %v1816, 32
    %v1822 = vpop.permute.xlu0 %1821
    %1823 = vrot.lane.b32.xlu0 %v1820, 32
    %v1824 = vpop.permute.xlu0 %1823
    %1827 = vst.msk [vmem:[#allocation2] sm:$0x1] %vm370, %v1822
    %1828 = vst.msk [vmem:[#allocation2 + $0x8] sm:$0x1] %vm370, %v1824
    %1829 = vrot.lane.b32.xlu0 %v1789, 32
    %v1830 = vpop.permute.xlu0 %1829
    %v1831 = vsel %vm203, %v1830, 0
    %1833 = vmatprep.subr.mxu0 0.0
    %1834 = vmatpush1.msra.mxu0 0.0
    %1835 = vmatprep.subr.mxu0 0.0
    %1836 = vmatpush1.msra.mxu0 0.0
    %1837 = vmatprep.subr.mxu0 0.0
    %1838 = vmatpush1.msra.mxu0 0.0
    %1839 = vmatprep.subr.mxu0 0.0
    %1840 = vmatpush1.msra.mxu0 0.0
    %1841 = vmatprep.subr.mxu0 0.0
    %1842 = vmatpush1.msra.mxu0 0.0
    %1843 = vmatprep.subr.mxu0 0.0
    %1844 = vmatpush1.msra.mxu0 0.0
    %1845 = vmatprep.subr.mxu0 0.0
    %1846 = vmatpush1.msra.mxu0 0.0
    %1847 = vmatprep.subr.mxu0 0.0
    %1848 = vmatpush1.msra.mxu0 0.0
    %1849 = vmatprep.subr.mxu0 0.0
    %1850 = vmatpush1.msra.mxu0 0.0
    %1851 = vmatprep.subr.mxu0 0.0
    %1852 = vmatpush1.msra.mxu0 0.0
    %1853 = vmatprep.subr.mxu0 0.0
    %1854 = vmatpush1.msra.mxu0 0.0
    %1855 = vmatprep.subr.mxu0 0.0
    %1856 = vmatpush1.msra.mxu0 0.0
    %1857 = vmatprep.subr.mxu0 0.0
    %1858 = vmatpush1.msra.mxu0 %v1671
    %1859 = vmatprep.subr.mxu0 0.0
    %1860 = vmatpush1.msra.mxu0 %v1670
    %1861 = vmatprep.subr.mxu0 0.0
    %1862 = vmatpush1.msra.mxu0 %v1669
    %1863 = vmatprep.subr.mxu0 0.0
    %1864 = vmatpush1.msra.mxu0 %v1668
    %1865 = vmatprep.subr.mxu0 0.0
    %1866 = vmatpush2.msra.mxu0 0.0
    %1867 = vmatprep.subr.mxu0 0.0
    %1868 = vmatpush2.msra.mxu0 0.0
    %1869 = vmatprep.subr.mxu0 0.0
    %1870 = vmatpush2.msra.mxu0 0.0
    %1871 = vmatprep.subr.mxu0 0.0
    %1872 = vmatpush2.msra.mxu0 0.0
    %1873 = vmatprep.subr.mxu0 0.0
    %1874 = vmatpush2.msra.mxu0 0.0
    %1875 = vmatprep.subr.mxu0 0.0
    %1876 = vmatpush2.msra.mxu0 0.0
    %1877 = vmatprep.subr.mxu0 0.0
    %1878 = vmatpush2.msra.mxu0 0.0
    %1879 = vmatprep.subr.mxu0 0.0
    %1880 = vmatpush2.msra.mxu0 0.0
    %1881 = vmatprep.subr.mxu0 0.0
    %1882 = vmatpush2.msra.mxu0 0.0
    %1883 = vmatprep.subr.mxu0 0.0
    %1884 = vmatpush2.msra.mxu0 0.0
    %1885 = vmatprep.subr.mxu0 0.0
    %1886 = vmatpush2.msra.mxu0 0.0
    %1887 = vmatprep.subr.mxu0 0.0
    %1888 = vmatpush2.msra.mxu0 0.0
    %1889 = vmatprep.subr.mxu0 0.0
    %1890 = vmatpush2.msra.mxu0 0.0
    %1891 = vmatprep.subr.mxu0 0.0
    %1892 = vmatpush2.msra.mxu0 0.0
    %1893 = vmatprep.subr.mxu0 0.0
    %1894 = vmatpush2.msra.mxu0 0.0
    %1895 = vmatprep.subr.mxu0 0.0
    %1896 = vmatpush2.msra.mxu0 0.0
    %1897 = vmatprep.mubr.f32.mxu0 0.0
    %1898 = vmatmul.mubr.f32.gmra.mxu0 %v1831
    %v1899 = vpop.f32.mrf.mxu0
    %v1900 = vadd.f32 0.0, %v1899
    %v1901 = vpop.f32.mrf.mxu0
    %1902 = vdwg.mxu0
    %v1904 = vrot.slane %v1900, 7
    %v1907 = vadd.f32 %v1660, %v1904
    %v1908 = vadd.f32 %v1665, %v1900
    %v1909 = vtanh.pop %v1907
    %v1910 = vtanh.pop %v1908
    %v1911 = vxor.u32 %v1907, 2147483648
    %v1912 = vxor.u32 %v1908, 2147483648
    %v1913 = vmul.f32 %v1911, 1.442695
    %v1914 = vpow.pop %v1913
    %v1915 = vmul.f32 %v1912, 1.442695
    %v1916 = vpow.pop %v1915
    %v1917 = vadd.f32 %v1914, 1.0
    %v1918 = vadd.f32 %v1916, 1.0
    %v1919 = vrcp.pop %v1917
    %v1920 = vmul.f32 1.0, %v1919
    %v1921 = vrcp.pop %v1918
    %v1922 = vmul.f32 1.0, %v1921
    %v1925 = vrot.slane %v1909, 1
    %v1926 = vsel %vm300, %v1910, %v1925
    %v1930 = vrot.slane %v1920, 1
    %v1931 = vsel %vm300, %v1922, %v1930
    %v1933 = vsel %vm105, %v1926, %v1931
    %v1934 = vmul.f32 %v1933, %v1783
    %1936 = vrot.lane.b32.xlu0 %v1933, 64
    %v1937 = vpop.permute.xlu0 %1936
    %v1939 = vmul.f32 %v1933, %v1937
    %1941 = vrot.lane.b32.xlu0 %v1939, 32
    %v1942 = vpop.permute.xlu0 %1941
    %v1944 = vadd.f32 %v1934, %v1942
    %v1945 = vtanh.pop %v1944
    %1947 = vrot.lane.b32.xlu0 %v1945, 64
    %v1948 = vpop.permute.xlu0 %1947
    %v1950 = vmul.f32 %v1933, %v1948
    %v1953 = vunpack.c.l.s4 1966171168
    %v1954 = vunpack.c.0.s8 %v1953
    %v1955 = vlaneseq
    %v1956 = vshrl.u32 %v1955, 7
    %v1957 = vsub.s32 %v1954, %v1956
    %v1958 = vrot.slane %v1950, %v1957
    %v1959 = vcombine.high %v1958, %v1958
    %v1961 = vunpack.c.l.s4 1966171168
    %v1962 = vunpack.c.0.s8 %v1961
    %v1963 = vlaneseq
    %v1964 = vshrl.u32 %v1963, 7
    %v1965 = vsub.s32 %v1962, %v1964
    %v1966 = vrot.slane %v1958, %v1965
    %v1968 = vunpack.c.l.s4 1966171168
    %v1969 = vunpack.c.0.s8 %v1968
    %v1970 = vlaneseq
    %v1971 = vshrl.u32 %v1970, 7
    %v1972 = vsub.s32 %v1969, %v1971
    %v1973 = vrot.slane %v1959, %v1972
    %v1974 = vlaneseq
    %v1975 = vshrl.u32 %v1974, 7
    %v1976 = vsub.s32 0, %v1975
    %v1977 = vrot.slane %v1966, %v1976
    %v1978 = vlaneseq
    %v1979 = vshrl.u32 %v1978, 7
    %v1980 = vsub.s32 0, %v1979
    %v1981 = vrot.slane %v1973, %v1980
    %1982 = vrot.lane.b32.xlu0 %v1977, 32
    %v1983 = vpop.permute.xlu0 %1982
    %1984 = vrot.lane.b32.xlu0 %v1981, 32
    %v1985 = vpop.permute.xlu0 %1984
    %1988 = vst.msk [vmem:[#allocation2 + $0x1] sm:$0x1] %vm370, %v1983
    %1989 = vst.msk [vmem:[#allocation2 + $0x9] sm:$0x1] %vm370, %v1985
    %1990 = vrot.lane.b32.xlu0 %v1950, 32
    %v1991 = vpop.permute.xlu0 %1990
    %v1992 = vsel %vm203, %v1991, 0
    %1994 = vmatprep.subr.mxu0 0.0
    %1995 = vmatpush1.msra.mxu0 0.0
    %1996 = vmatprep.subr.mxu0 0.0
    %1997 = vmatpush1.msra.mxu0 0.0
    %1998 = vmatprep.subr.mxu0 0.0
    %1999 = vmatpush1.msra.mxu0 0.0
    %2000 = vmatprep.subr.mxu0 0.0
    %2001 = vmatpush1.msra.mxu0 0.0
    %2002 = vmatprep.subr.mxu0 0.0
    %2003 = vmatpush1.msra.mxu0 0.0
    %2004 = vmatprep.subr.mxu0 0.0
    %2005 = vmatpush1.msra.mxu0 0.0
    %2006 = vmatprep.subr.mxu0 0.0
    %2007 = vmatpush1.msra.mxu0 0.0
    %2008 = vmatprep.subr.mxu0 0.0
    %2009 = vmatpush1.msra.mxu0 0.0
    %2010 = vmatprep.subr.mxu0 0.0
    %2011 = vmatpush1.msra.mxu0 0.0
    %2012 = vmatprep.subr.mxu0 0.0
    %2013 = vmatpush1.msra.mxu0 0.0
    %2014 = vmatprep.subr.mxu0 0.0
    %2015 = vmatpush1.msra.mxu0 0.0
    %2016 = vmatprep.subr.mxu0 0.0
    %2017 = vmatpush1.msra.mxu0 0.0
    %2018 = vmatprep.subr.mxu0 0.0
    %2019 = vmatpush1.msra.mxu0 %v1671
    %2020 = vmatprep.subr.mxu0 0.0
    %2021 = vmatpush1.msra.mxu0 %v1670
    %2022 = vmatprep.subr.mxu0 0.0
    %2023 = vmatpush1.msra.mxu0 %v1669
    %2024 = vmatprep.subr.mxu0 0.0
    %2025 = vmatpush1.msra.mxu0 %v1668
    %2026 = vmatprep.subr.mxu0 0.0
    %2027 = vmatpush2.msra.mxu0 0.0
    %2028 = vmatprep.subr.mxu0 0.0
    %2029 = vmatpush2.msra.mxu0 0.0
    %2030 = vmatprep.subr.mxu0 0.0
    %2031 = vmatpush2.msra.mxu0 0.0
    %2032 = vmatprep.subr.mxu0 0.0
    %2033 = vmatpush2.msra.mxu0 0.0
    %2034 = vmatprep.subr.mxu0 0.0
    %2035 = vmatpush2.msra.mxu0 0.0
    %2036 = vmatprep.subr.mxu0 0.0
    %2037 = vmatpush2.msra.mxu0 0.0
    %2038 = vmatprep.subr.mxu0 0.0
    %2039 = vmatpush2.msra.mxu0 0.0
    %2040 = vmatprep.subr.mxu0 0.0
    %2041 = vmatpush2.msra.mxu0 0.0
    %2042 = vmatprep.subr.mxu0 0.0
    %2043 = vmatpush2.msra.mxu0 0.0
    %2044 = vmatprep.subr.mxu0 0.0
    %2045 = vmatpush2.msra.mxu0 0.0
    %2046 = vmatprep.subr.mxu0 0.0
    %2047 = vmatpush2.msra.mxu0 0.0
    %2048 = vmatprep.subr.mxu0 0.0
    %2049 = vmatpush2.msra.mxu0 0.0
    %2050 = vmatprep.subr.mxu0 0.0
    %2051 = vmatpush2.msra.mxu0 0.0
    %2052 = vmatprep.subr.mxu0 0.0
    %2053 = vmatpush2.msra.mxu0 0.0
    %2054 = vmatprep.subr.mxu0 0.0
    %2055 = vmatpush2.msra.mxu0 0.0
    %2056 = vmatprep.subr.mxu0 0.0
    %2057 = vmatpush2.msra.mxu0 0.0
    %2058 = vmatprep.mubr.f32.mxu0 0.0
    %2059 = vmatmul.mubr.f32.gmra.mxu0 %v1992
    %v2060 = vpop.f32.mrf.mxu0
    %v2061 = vadd.f32 0.0, %v2060
    %v2062 = vpop.f32.mrf.mxu0
    %2063 = vdwg.mxu0
    %v2065 = vrot.slane %v2061, 6
    %v2066 = vrot.slane %v2061, 7
    %v2069 = vadd.f32 %v1660, %v2065
    %v2070 = vadd.f32 %v1665, %v2066
    %v2071 = vtanh.pop %v2069
    %v2072 = vtanh.pop %v2070
    %v2073 = vxor.u32 %v2069, 2147483648
    %v2074 = vxor.u32 %v2070, 2147483648
    %v2075 = vmul.f32 %v2073, 1.442695
    %v2076 = vpow.pop %v2075
    %v2077 = vmul.f32 %v2074, 1.442695
    %v2078 = vpow.pop %v2077
    %v2079 = vadd.f32 %v2076, 1.0
    %v2080 = vadd.f32 %v2078, 1.0
    %v2081 = vrcp.pop %v2079
    %v2082 = vmul.f32 1.0, %v2081
    %v2083 = vrcp.pop %v2080
    %v2084 = vmul.f32 1.0, %v2083
    %v2087 = vrot.slane %v2071, 2
    %v2088 = vrot.slane %v2072, 1
    %v2089 = vsel %vm300, %v2088, %v2087
    %v2093 = vrot.slane %v2082, 2
    %v2094 = vrot.slane %v2084, 1
    %v2095 = vsel %vm300, %v2094, %v2093
    %v2097 = vsel %vm105, %v2089, %v2095
    %v2098 = vmul.f32 %v2097, %v1944
    %2100 = vrot.lane.b32.xlu0 %v2097, 64
    %v2101 = vpop.permute.xlu0 %2100
    %v2103 = vmul.f32 %v2097, %v2101
    %2105 = vrot.lane.b32.xlu0 %v2103, 32
    %v2106 = vpop.permute.xlu0 %2105
    %v2108 = vadd.f32 %v2098, %v2106
    %v2109 = vtanh.pop %v2108
    %2111 = vrot.lane.b32.xlu0 %v2109, 64
    %v2112 = vpop.permute.xlu0 %2111
    %v2114 = vmul.f32 %v2097, %v2112
    %v2117 = vunpack.c.l.s4 1966171168
    %v2118 = vunpack.c.0.s8 %v2117
    %v2119 = vlaneseq
    %v2120 = vshrl.u32 %v2119, 7
    %v2121 = vsub.s32 %v2118, %v2120
    %v2122 = vrot.slane %v2114, %v2121
    %v2123 = vcombine.high %v2122, %v2122
    %v2125 = vunpack.c.l.s4 1966171168
    %v2126 = vunpack.c.0.s8 %v2125
    %v2127 = vlaneseq
    %v2128 = vshrl.u32 %v2127, 7
    %v2129 = vsub.s32 %v2126, %v2128
    %v2130 = vrot.slane %v2122, %v2129
    %v2132 = vunpack.c.l.s4 1966171168
    %v2133 = vunpack.c.0.s8 %v2132
    %v2134 = vlaneseq
    %v2135 = vshrl.u32 %v2134, 7
    %v2136 = vsub.s32 %v2133, %v2135
    %v2137 = vrot.slane %v2123, %v2136
    %v2138 = vlaneseq
    %v2139 = vshrl.u32 %v2138, 7
    %v2140 = vsub.s32 0, %v2139
    %v2141 = vrot.slane %v2130, %v2140
    %v2142 = vlaneseq
    %v2143 = vshrl.u32 %v2142, 7
    %v2144 = vsub.s32 0, %v2143
    %v2145 = vrot.slane %v2137, %v2144
    %2146 = vrot.lane.b32.xlu0 %v2141, 32
    %v2147 = vpop.permute.xlu0 %2146
    %2148 = vrot.lane.b32.xlu0 %v2145, 32
    %v2149 = vpop.permute.xlu0 %2148
    %2152 = vst.msk [vmem:[#allocation2 + $0x2] sm:$0x1] %vm370, %v2147
    %2153 = vst.msk [vmem:[#allocation2 + $0xa] sm:$0x1] %vm370, %v2149
    %2154 = vrot.lane.b32.xlu0 %v2114, 32
    %v2155 = vpop.permute.xlu0 %2154
    %v2156 = vsel %vm203, %v2155, 0
    %2158 = vmatprep.subr.mxu0 0.0
    %2159 = vmatpush1.msra.mxu0 0.0
    %2160 = vmatprep.subr.mxu0 0.0
    %2161 = vmatpush1.msra.mxu0 0.0
    %2162 = vmatprep.subr.mxu0 0.0
    %2163 = vmatpush1.msra.mxu0 0.0
    %2164 = vmatprep.subr.mxu0 0.0
    %2165 = vmatpush1.msra.mxu0 0.0
    %2166 = vmatprep.subr.mxu0 0.0
    %2167 = vmatpush1.msra.mxu0 0.0
    %2168 = vmatprep.subr.mxu0 0.0
    %2169 = vmatpush1.msra.mxu0 0.0
    %2170 = vmatprep.subr.mxu0 0.0
    %2171 = vmatpush1.msra.mxu0 0.0
    %2172 = vmatprep.subr.mxu0 0.0
    %2173 = vmatpush1.msra.mxu0 0.0
    %2174 = vmatprep.subr.mxu0 0.0
    %2175 = vmatpush1.msra.mxu0 0.0
    %2176 = vmatprep.subr.mxu0 0.0
    %2177 = vmatpush1.msra.mxu0 0.0
    %2178 = vmatprep.subr.mxu0 0.0
    %2179 = vmatpush1.msra.mxu0 0.0
    %2180 = vmatprep.subr.mxu0 0.0
    %2181 = vmatpush1.msra.mxu0 0.0
    %2182 = vmatprep.subr.mxu0 0.0
    %2183 = vmatpush1.msra.mxu0 %v1671
    %2184 = vmatprep.subr.mxu0 0.0
    %2185 = vmatpush1.msra.mxu0 %v1670
    %2186 = vmatprep.subr.mxu0 0.0
    %2187 = vmatpush1.msra.mxu0 %v1669
    %2188 = vmatprep.subr.mxu0 0.0
    %2189 = vmatpush1.msra.mxu0 %v1668
    %2190 = vmatprep.subr.mxu0 0.0
    %2191 = vmatpush2.msra.mxu0 0.0
    %2192 = vmatprep.subr.mxu0 0.0
    %2193 = vmatpush2.msra.mxu0 0.0
    %2194 = vmatprep.subr.mxu0 0.0
    %2195 = vmatpush2.msra.mxu0 0.0
    %2196 = vmatprep.subr.mxu0 0.0
    %2197 = vmatpush2.msra.mxu0 0.0
    %2198 = vmatprep.subr.mxu0 0.0
    %2199 = vmatpush2.msra.mxu0 0.0
    %2200 = vmatprep.subr.mxu0 0.0
    %2201 = vmatpush2.msra.mxu0 0.0
    %2202 = vmatprep.subr.mxu0 0.0
    %2203 = vmatpush2.msra.mxu0 0.0
    %2204 = vmatprep.subr.mxu0 0.0
    %2205 = vmatpush2.msra.mxu0 0.0
    %2206 = vmatprep.subr.mxu0 0.0
    %2207 = vmatpush2.msra.mxu0 0.0
    %2208 = vmatprep.subr.mxu0 0.0
    %2209 = vmatpush2.msra.mxu0 0.0
    %2210 = vmatprep.subr.mxu0 0.0
    %2211 = vmatpush2.msra.mxu0 0.0
    %2212 = vmatprep.subr.mxu0 0.0
    %2213 = vmatpush2.msra.mxu0 0.0
    %2214 = vmatprep.subr.mxu0 0.0
    %2215 = vmatpush2.msra.mxu0 0.0
    %2216 = vmatprep.subr.mxu0 0.0
    %2217 = vmatpush2.msra.mxu0 0.0
    %2218 = vmatprep.subr.mxu0 0.0
    %2219 = vmatpush2.msra.mxu0 0.0
    %2220 = vmatprep.subr.mxu0 0.0
    %2221 = vmatpush2.msra.mxu0 0.0
    %2222 = vmatprep.mubr.f32.mxu0 0.0
    %2223 = vmatmul.mubr.f32.gmra.mxu0 %v2156
    %v2224 = vpop.f32.mrf.mxu0
    %v2225 = vadd.f32 0.0, %v2224
    %v2226 = vpop.f32.mrf.mxu0
    %2227 = vdwg.mxu0
    %v2229 = vrot.slane %v2225, 5
    %v2230 = vrot.slane %v2225, 6
    %v2233 = vadd.f32 %v1660, %v2229
    %v2234 = vadd.f32 %v1665, %v2230
    %v2235 = vtanh.pop %v2233
    %v2236 = vtanh.pop %v2234
    %v2237 = vxor.u32 %v2233, 2147483648
    %v2238 = vxor.u32 %v2234, 2147483648
    %v2239 = vmul.f32 %v2237, 1.442695
    %v2240 = vpow.pop %v2239
    %v2241 = vmul.f32 %v2238, 1.442695
    %v2242 = vpow.pop %v2241
    %v2243 = vadd.f32 %v2240, 1.0
    %v2244 = vadd.f32 %v2242, 1.0
    %v2245 = vrcp.pop %v2243
    %v2246 = vmul.f32 1.0, %v2245
    %v2247 = vrcp.pop %v2244
    %v2248 = vmul.f32 1.0, %v2247
    %v2251 = vrot.slane %v2235, 3
    %v2252 = vrot.slane %v2236, 2
    %v2253 = vsel %vm300, %v2252, %v2251
    %v2257 = vrot.slane %v2246, 3
    %v2258 = vrot.slane %v2248, 2
    %v2259 = vsel %vm300, %v2258, %v2257
    %v2261 = vsel %vm105, %v2253, %v2259
    %v2262 = vmul.f32 %v2261, %v2108
    %2264 = vrot.lane.b32.xlu0 %v2261, 64
    %v2265 = vpop.permute.xlu0 %2264
    %v2267 = vmul.f32 %v2261, %v2265
    %2269 = vrot.lane.b32.xlu0 %v2267, 32
    %v2270 = vpop.permute.xlu0 %2269
    %v2272 = vadd.f32 %v2262, %v2270
    %v2273 = vtanh.pop %v2272
    %2275 = vrot.lane.b32.xlu0 %v2273, 64
    %v2276 = vpop.permute.xlu0 %2275
    %v2278 = vmul.f32 %v2261, %v2276
    %v2281 = vunpack.c.l.s4 1966171168
    %v2282 = vunpack.c.0.s8 %v2281
    %v2283 = vlaneseq
    %v2284 = vshrl.u32 %v2283, 7
    %v2285 = vsub.s32 %v2282, %v2284
    %v2286 = vrot.slane %v2278, %v2285
    %v2287 = vcombine.high %v2286, %v2286
    %v2289 = vunpack.c.l.s4 1966171168
    %v2290 = vunpack.c.0.s8 %v2289
    %v2291 = vlaneseq
    %v2292 = vshrl.u32 %v2291, 7
    %v2293 = vsub.s32 %v2290, %v2292
    %v2294 = vrot.slane %v2286, %v2293
    %v2296 = vunpack.c.l.s4 1966171168
    %v2297 = vunpack.c.0.s8 %v2296
    %v2298 = vlaneseq
    %v2299 = vshrl.u32 %v2298, 7
    %v2300 = vsub.s32 %v2297, %v2299
    %v2301 = vrot.slane %v2287, %v2300
    %v2302 = vlaneseq
    %v2303 = vshrl.u32 %v2302, 7
    %v2304 = vsub.s32 0, %v2303
    %v2305 = vrot.slane %v2294, %v2304
    %v2306 = vlaneseq
    %v2307 = vshrl.u32 %v2306, 7
    %v2308 = vsub.s32 0, %v2307
    %v2309 = vrot.slane %v2301, %v2308
    %2310 = vrot.lane.b32.xlu0 %v2305, 32
    %v2311 = vpop.permute.xlu0 %2310
    %2312 = vrot.lane.b32.xlu0 %v2309, 32
    %v2313 = vpop.permute.xlu0 %2312
    %2316 = vst.msk [vmem:[#allocation2 + $0x3] sm:$0x1] %vm370, %v2311
    %2317 = vst.msk [vmem:[#allocation2 + $0xb] sm:$0x1] %vm370, %v2313
    %2318 = vrot.lane.b32.xlu0 %v2278, 32
    %v2319 = vpop.permute.xlu0 %2318
    %v2320 = vsel %vm203, %v2319, 0
    %2322 = vmatprep.subr.mxu0 0.0
    %2323 = vmatpush1.msra.mxu0 0.0
    %2324 = vmatprep.subr.mxu0 0.0
    %2325 = vmatpush1.msra.mxu0 0.0
    %2326 = vmatprep.subr.mxu0 0.0
    %2327 = vmatpush1.msra.mxu0 0.0
    %2328 = vmatprep.subr.mxu0 0.0
    %2329 = vmatpush1.msra.mxu0 0.0
    %2330 = vmatprep.subr.mxu0 0.0
    %2331 = vmatpush1.msra.mxu0 0.0
    %2332 = vmatprep.subr.mxu0 0.0
    %2333 = vmatpush1.msra.mxu0 0.0
    %2334 = vmatprep.subr.mxu0 0.0
    %2335 = vmatpush1.msra.mxu0 0.0
    %2336 = vmatprep.subr.mxu0 0.0
    %2337 = vmatpush1.msra.mxu0 0.0
    %2338 = vmatprep.subr.mxu0 0.0
    %2339 = vmatpush1.msra.mxu0 0.0
    %2340 = vmatprep.subr.mxu0 0.0
    %2341 = vmatpush1.msra.mxu0 0.0
    %2342 = vmatprep.subr.mxu0 0.0
    %2343 = vmatpush1.msra.mxu0 0.0
    %2344 = vmatprep.subr.mxu0 0.0
    %2345 = vmatpush1.msra.mxu0 0.0
    %2346 = vmatprep.subr.mxu0 0.0
    %2347 = vmatpush1.msra.mxu0 %v1671
    %2348 = vmatprep.subr.mxu0 0.0
    %2349 = vmatpush1.msra.mxu0 %v1670
    %2350 = vmatprep.subr.mxu0 0.0
    %2351 = vmatpush1.msra.mxu0 %v1669
    %2352 = vmatprep.subr.mxu0 0.0
    %2353 = vmatpush1.msra.mxu0 %v1668
    %2354 = vmatprep.subr.mxu0 0.0
    %2355 = vmatpush2.msra.mxu0 0.0
    %2356 = vmatprep.subr.mxu0 0.0
    %2357 = vmatpush2.msra.mxu0 0.0
    %2358 = vmatprep.subr.mxu0 0.0
    %2359 = vmatpush2.msra.mxu0 0.0
    %2360 = vmatprep.subr.mxu0 0.0
    %2361 = vmatpush2.msra.mxu0 0.0
    %2362 = vmatprep.subr.mxu0 0.0
    %2363 = vmatpush2.msra.mxu0 0.0
    %2364 = vmatprep.subr.mxu0 0.0
    %2365 = vmatpush2.msra.mxu0 0.0
    %2366 = vmatprep.subr.mxu0 0.0
    %2367 = vmatpush2.msra.mxu0 0.0
    %2368 = vmatprep.subr.mxu0 0.0
    %2369 = vmatpush2.msra.mxu0 0.0
    %2370 = vmatprep.subr.mxu0 0.0
    %2371 = vmatpush2.msra.mxu0 0.0
    %2372 = vmatprep.subr.mxu0 0.0
    %2373 = vmatpush2.msra.mxu0 0.0
    %2374 = vmatprep.subr.mxu0 0.0
    %2375 = vmatpush2.msra.mxu0 0.0
    %2376 = vmatprep.subr.mxu0 0.0
    %2377 = vmatpush2.msra.mxu0 0.0
    %2378 = vmatprep.subr.mxu0 0.0
    %2379 = vmatpush2.msra.mxu0 0.0
    %2380 = vmatprep.subr.mxu0 0.0
    %2381 = vmatpush2.msra.mxu0 0.0
    %2382 = vmatprep.subr.mxu0 0.0
    %2383 = vmatpush2.msra.mxu0 0.0
    %2384 = vmatprep.subr.mxu0 0.0
    %2385 = vmatpush2.msra.mxu0 0.0
    %2386 = vmatprep.mubr.f32.mxu0 0.0
    %2387 = vmatmul.mubr.f32.gmra.mxu0 %v2320
    %v2388 = vpop.f32.mrf.mxu0
    %v2389 = vadd.f32 0.0, %v2388
    %v2390 = vpop.f32.mrf.mxu0
    %2391 = vdwg.mxu0
    %v2393 = vrot.slane %v2389, 4
    %v2394 = vrot.slane %v2389, 5
    %v2397 = vadd.f32 %v1660, %v2393
    %v2398 = vadd.f32 %v1665, %v2394
    %v2399 = vtanh.pop %v2397
    %v2400 = vtanh.pop %v2398
    %v2401 = vxor.u32 %v2397, 2147483648
    %v2402 = vxor.u32 %v2398, 2147483648
    %v2403 = vmul.f32 %v2401, 1.442695
    %v2404 = vpow.pop %v2403
    %v2405 = vmul.f32 %v2402, 1.442695
    %v2406 = vpow.pop %v2405
    %v2407 = vadd.f32 %v2404, 1.0
    %v2408 = vadd.f32 %v2406, 1.0
    %v2409 = vrcp.pop %v2407
    %v2410 = vmul.f32 1.0, %v2409
    %v2411 = vrcp.pop %v2408
    %v2412 = vmul.f32 1.0, %v2411
    %v2415 = vrot.slane %v2399, 4
    %v2416 = vrot.slane %v2400, 3
    %v2417 = vsel %vm300, %v2416, %v2415
    %v2421 = vrot.slane %v2410, 4
    %v2422 = vrot.slane %v2412, 3
    %v2423 = vsel %vm300, %v2422, %v2421
    %v2425 = vsel %vm105, %v2417, %v2423
    %v2426 = vmul.f32 %v2425, %v2272
    %2428 = vrot.lane.b32.xlu0 %v2425, 64
    %v2429 = vpop.permute.xlu0 %2428
    %v2431 = vmul.f32 %v2425, %v2429
    %2433 = vrot.lane.b32.xlu0 %v2431, 32
    %v2434 = vpop.permute.xlu0 %2433
    %v2436 = vadd.f32 %v2426, %v2434
    %v2437 = vtanh.pop %v2436
    %2439 = vrot.lane.b32.xlu0 %v2437, 64
    %v2440 = vpop.permute.xlu0 %2439
    %v2442 = vmul.f32 %v2425, %v2440
    %v2445 = vunpack.c.l.s4 1966171168
    %v2446 = vunpack.c.0.s8 %v2445
    %v2447 = vlaneseq
    %v2448 = vshrl.u32 %v2447, 7
    %v2449 = vsub.s32 %v2446, %v2448
    %v2450 = vrot.slane %v2442, %v2449
    %v2451 = vcombine.high %v2450, %v2450
    %v2453 = vunpack.c.l.s4 1966171168
    %v2454 = vunpack.c.0.s8 %v2453
    %v2455 = vlaneseq
    %v2456 = vshrl.u32 %v2455, 7
    %v2457 = vsub.s32 %v2454, %v2456
    %v2458 = vrot.slane %v2450, %v2457
    %v2460 = vunpack.c.l.s4 1966171168
    %v2461 = vunpack.c.0.s8 %v2460
    %v2462 = vlaneseq
    %v2463 = vshrl.u32 %v2462, 7
    %v2464 = vsub.s32 %v2461, %v2463
    %v2465 = vrot.slane %v2451, %v2464
    %v2466 = vlaneseq
    %v2467 = vshrl.u32 %v2466, 7
    %v2468 = vsub.s32 0, %v2467
    %v2469 = vrot.slane %v2458, %v2468
    %v2470 = vlaneseq
    %v2471 = vshrl.u32 %v2470, 7
    %v2472 = vsub.s32 0, %v2471
    %v2473 = vrot.slane %v2465, %v2472
    %2474 = vrot.lane.b32.xlu0 %v2469, 32
    %v2475 = vpop.permute.xlu0 %2474
    %2476 = vrot.lane.b32.xlu0 %v2473, 32
    %v2477 = vpop.permute.xlu0 %2476
    %2480 = vst.msk [vmem:[#allocation2 + $0x4] sm:$0x1] %vm370, %v2475
    %2481 = vst.msk [vmem:[#allocation2 + $0xc] sm:$0x1] %vm370, %v2477
    %2482 = vrot.lane.b32.xlu0 %v2442, 32
    %v2483 = vpop.permute.xlu0 %2482
    %v2484 = vsel %vm203, %v2483, 0
    %2486 = vmatprep.subr.mxu0 0.0
    %2487 = vmatpush1.msra.mxu0 0.0
    %2488 = vmatprep.subr.mxu0 0.0
    %2489 = vmatpush1.msra.mxu0 0.0
    %2490 = vmatprep.subr.mxu0 0.0
    %2491 = vmatpush1.msra.mxu0 0.0
    %2492 = vmatprep.subr.mxu0 0.0
    %2493 = vmatpush1.msra.mxu0 0.0
    %2494 = vmatprep.subr.mxu0 0.0
    %2495 = vmatpush1.msra.mxu0 0.0
    %2496 = vmatprep.subr.mxu0 0.0
    %2497 = vmatpush1.msra.mxu0 0.0
    %2498 = vmatprep.subr.mxu0 0.0
    %2499 = vmatpush1.msra.mxu0 0.0
    %2500 = vmatprep.subr.mxu0 0.0
    %2501 = vmatpush1.msra.mxu0 0.0
    %2502 = vmatprep.subr.mxu0 0.0
    %2503 = vmatpush1.msra.mxu0 0.0
    %2504 = vmatprep.subr.mxu0 0.0
    %2505 = vmatpush1.msra.mxu0 0.0
    %2506 = vmatprep.subr.mxu0 0.0
    %2507 = vmatpush1.msra.mxu0 0.0
    %2508 = vmatprep.subr.mxu0 0.0
    %2509 = vmatpush1.msra.mxu0 0.0
    %2510 = vmatprep.subr.mxu0 0.0
    %2511 = vmatpush1.msra.mxu0 %v1671
    %2512 = vmatprep.subr.mxu0 0.0
    %2513 = vmatpush1.msra.mxu0 %v1670
    %2514 = vmatprep.subr.mxu0 0.0
    %2515 = vmatpush1.msra.mxu0 %v1669
    %2516 = vmatprep.subr.mxu0 0.0
    %2517 = vmatpush1.msra.mxu0 %v1668
    %2518 = vmatprep.subr.mxu0 0.0
    %2519 = vmatpush2.msra.mxu0 0.0
    %2520 = vmatprep.subr.mxu0 0.0
    %2521 = vmatpush2.msra.mxu0 0.0
    %2522 = vmatprep.subr.mxu0 0.0
    %2523 = vmatpush2.msra.mxu0 0.0
    %2524 = vmatprep.subr.mxu0 0.0
    %2525 = vmatpush2.msra.mxu0 0.0
    %2526 = vmatprep.subr.mxu0 0.0
    %2527 = vmatpush2.msra.mxu0 0.0
    %2528 = vmatprep.subr.mxu0 0.0
    %2529 = vmatpush2.msra.mxu0 0.0
    %2530 = vmatprep.subr.mxu0 0.0
    %2531 = vmatpush2.msra.mxu0 0.0
    %2532 = vmatprep.subr.mxu0 0.0
    %2533 = vmatpush2.msra.mxu0 0.0
    %2534 = vmatprep.subr.mxu0 0.0
    %2535 = vmatpush2.msra.mxu0 0.0
    %2536 = vmatprep.subr.mxu0 0.0
    %2537 = vmatpush2.msra.mxu0 0.0
    %2538 = vmatprep.subr.mxu0 0.0
    %2539 = vmatpush2.msra.mxu0 0.0
    %2540 = vmatprep.subr.mxu0 0.0
    %2541 = vmatpush2.msra.mxu0 0.0
    %2542 = vmatprep.subr.mxu0 0.0
    %2543 = vmatpush2.msra.mxu0 0.0
    %2544 = vmatprep.subr.mxu0 0.0
    %2545 = vmatpush2.msra.mxu0 0.0
    %2546 = vmatprep.subr.mxu0 0.0
    %2547 = vmatpush2.msra.mxu0 0.0
    %2548 = vmatprep.subr.mxu0 0.0
    %2549 = vmatpush2.msra.mxu0 0.0
    %2550 = vmatprep.mubr.f32.mxu0 0.0
    %2551 = vmatmul.mubr.f32.gmra.mxu0 %v2484
    %v2552 = vpop.f32.mrf.mxu0
    %v2553 = vadd.f32 0.0, %v2552
    %v2554 = vpop.f32.mrf.mxu0
    %2555 = vdwg.mxu0
    %v2557 = vrot.slane %v2553, 3
    %v2558 = vrot.slane %v2553, 4
    %v2561 = vadd.f32 %v1660, %v2557
    %v2562 = vadd.f32 %v1665, %v2558
    %v2563 = vtanh.pop %v2561
    %v2564 = vtanh.pop %v2562
    %v2565 = vxor.u32 %v2561, 2147483648
    %v2566 = vxor.u32 %v2562, 2147483648
    %v2567 = vmul.f32 %v2565, 1.442695
    %v2568 = vpow.pop %v2567
    %v2569 = vmul.f32 %v2566, 1.442695
    %v2570 = vpow.pop %v2569
    %v2571 = vadd.f32 %v2568, 1.0
    %v2572 = vadd.f32 %v2570, 1.0
    %v2573 = vrcp.pop %v2571
    %v2574 = vmul.f32 1.0, %v2573
    %v2575 = vrcp.pop %v2572
    %v2576 = vmul.f32 1.0, %v2575
    %v2579 = vrot.slane %v2563, 5
    %v2580 = vrot.slane %v2564, 4
    %v2581 = vsel %vm300, %v2580, %v2579
    %v2585 = vrot.slane %v2574, 5
    %v2586 = vrot.slane %v2576, 4
    %v2587 = vsel %vm300, %v2586, %v2585
    %v2589 = vsel %vm105, %v2581, %v2587
    %v2590 = vmul.f32 %v2589, %v2436
    %2592 = vrot.lane.b32.xlu0 %v2589, 64
    %v2593 = vpop.permute.xlu0 %2592
    %v2595 = vmul.f32 %v2589, %v2593
    %2597 = vrot.lane.b32.xlu0 %v2595, 32
    %v2598 = vpop.permute.xlu0 %2597
    %v2600 = vadd.f32 %v2590, %v2598
    %v2601 = vtanh.pop %v2600
    %2603 = vrot.lane.b32.xlu0 %v2601, 64
    %v2604 = vpop.permute.xlu0 %2603
    %v2606 = vmul.f32 %v2589, %v2604
    %v2609 = vunpack.c.l.s4 1966171168
    %v2610 = vunpack.c.0.s8 %v2609
    %v2611 = vlaneseq
    %v2612 = vshrl.u32 %v2611, 7
    %v2613 = vsub.s32 %v2610, %v2612
    %v2614 = vrot.slane %v2606, %v2613
    %v2615 = vcombine.high %v2614, %v2614
    %v2617 = vunpack.c.l.s4 1966171168
    %v2618 = vunpack.c.0.s8 %v2617
    %v2619 = vlaneseq
    %v2620 = vshrl.u32 %v2619, 7
    %v2621 = vsub.s32 %v2618, %v2620
    %v2622 = vrot.slane %v2614, %v2621
    %v2624 = vunpack.c.l.s4 1966171168
    %v2625 = vunpack.c.0.s8 %v2624
    %v2626 = vlaneseq
    %v2627 = vshrl.u32 %v2626, 7
    %v2628 = vsub.s32 %v2625, %v2627
    %v2629 = vrot.slane %v2615, %v2628
    %v2630 = vlaneseq
    %v2631 = vshrl.u32 %v2630, 7
    %v2632 = vsub.s32 0, %v2631
    %v2633 = vrot.slane %v2622, %v2632
    %v2634 = vlaneseq
    %v2635 = vshrl.u32 %v2634, 7
    %v2636 = vsub.s32 0, %v2635
    %v2637 = vrot.slane %v2629, %v2636
    %2638 = vrot.lane.b32.xlu0 %v2633, 32
    %v2639 = vpop.permute.xlu0 %2638
    %2640 = vrot.lane.b32.xlu0 %v2637, 32
    %v2641 = vpop.permute.xlu0 %2640
    %2644 = vst.msk [vmem:[#allocation2 + $0x5] sm:$0x1] %vm370, %v2639
    %2645 = vst.msk [vmem:[#allocation2 + $0xd] sm:$0x1] %vm370, %v2641
    %2646 = vrot.lane.b32.xlu0 %v2606, 32
    %v2647 = vpop.permute.xlu0 %2646
    %v2648 = vsel %vm203, %v2647, 0
    %2650 = vmatprep.subr.mxu0 0.0
    %2651 = vmatpush1.msra.mxu0 0.0
    %2652 = vmatprep.subr.mxu0 0.0
    %2653 = vmatpush1.msra.mxu0 0.0
    %2654 = vmatprep.subr.mxu0 0.0
    %2655 = vmatpush1.msra.mxu0 0.0
    %2656 = vmatprep.subr.mxu0 0.0
    %2657 = vmatpush1.msra.mxu0 0.0
    %2658 = vmatprep.subr.mxu0 0.0
    %2659 = vmatpush1.msra.mxu0 0.0
    %2660 = vmatprep.subr.mxu0 0.0
    %2661 = vmatpush1.msra.mxu0 0.0
    %2662 = vmatprep.subr.mxu0 0.0
    %2663 = vmatpush1.msra.mxu0 0.0
    %2664 = vmatprep.subr.mxu0 0.0
    %2665 = vmatpush1.msra.mxu0 0.0
    %2666 = vmatprep.subr.mxu0 0.0
    %2667 = vmatpush1.msra.mxu0 0.0
    %2668 = vmatprep.subr.mxu0 0.0
    %2669 = vmatpush1.msra.mxu0 0.0
    %2670 = vmatprep.subr.mxu0 0.0
    %2671 = vmatpush1.msra.mxu0 0.0
    %2672 = vmatprep.subr.mxu0 0.0
    %2673 = vmatpush1.msra.mxu0 0.0
    %2674 = vmatprep.subr.mxu0 0.0
    %2675 = vmatpush1.msra.mxu0 %v1671
    %2676 = vmatprep.subr.mxu0 0.0
    %2677 = vmatpush1.msra.mxu0 %v1670
    %2678 = vmatprep.subr.mxu0 0.0
    %2679 = vmatpush1.msra.mxu0 %v1669
    %2680 = vmatprep.subr.mxu0 0.0
    %2681 = vmatpush1.msra.mxu0 %v1668
    %2682 = vmatprep.subr.mxu0 0.0
    %2683 = vmatpush2.msra.mxu0 0.0
    %2684 = vmatprep.subr.mxu0 0.0
    %2685 = vmatpush2.msra.mxu0 0.0
    %2686 = vmatprep.subr.mxu0 0.0
    %2687 = vmatpush2.msra.mxu0 0.0
    %2688 = vmatprep.subr.mxu0 0.0
    %2689 = vmatpush2.msra.mxu0 0.0
    %2690 = vmatprep.subr.mxu0 0.0
    %2691 = vmatpush2.msra.mxu0 0.0
    %2692 = vmatprep.subr.mxu0 0.0
    %2693 = vmatpush2.msra.mxu0 0.0
    %2694 = vmatprep.subr.mxu0 0.0
    %2695 = vmatpush2.msra.mxu0 0.0
    %2696 = vmatprep.subr.mxu0 0.0
    %2697 = vmatpush2.msra.mxu0 0.0
    %2698 = vmatprep.subr.mxu0 0.0
    %2699 = vmatpush2.msra.mxu0 0.0
    %2700 = vmatprep.subr.mxu0 0.0
    %2701 = vmatpush2.msra.mxu0 0.0
    %2702 = vmatprep.subr.mxu0 0.0
    %2703 = vmatpush2.msra.mxu0 0.0
    %2704 = vmatprep.subr.mxu0 0.0
    %2705 = vmatpush2.msra.mxu0 0.0
    %2706 = vmatprep.subr.mxu0 0.0
    %2707 = vmatpush2.msra.mxu0 0.0
    %2708 = vmatprep.subr.mxu0 0.0
    %2709 = vmatpush2.msra.mxu0 0.0
    %2710 = vmatprep.subr.mxu0 0.0
    %2711 = vmatpush2.msra.mxu0 0.0
    %2712 = vmatprep.subr.mxu0 0.0
    %2713 = vmatpush2.msra.mxu0 0.0
    %2714 = vmatprep.mubr.f32.mxu0 0.0
    %2715 = vmatmul.mubr.f32.gmra.mxu0 %v2648
    %v2716 = vpop.f32.mrf.mxu0
    %v2717 = vadd.f32 0.0, %v2716
    %v2718 = vpop.f32.mrf.mxu0
    %2719 = vdwg.mxu0
    %v2721 = vrot.slane %v2717, 2
    %v2722 = vrot.slane %v2717, 3
    %v2725 = vadd.f32 %v1660, %v2721
    %v2726 = vadd.f32 %v1665, %v2722
    %v2727 = vtanh.pop %v2725
    %v2728 = vtanh.pop %v2726
    %v2729 = vxor.u32 %v2725, 2147483648
    %v2730 = vxor.u32 %v2726, 2147483648
    %v2731 = vmul.f32 %v2729, 1.442695
    %v2732 = vpow.pop %v2731
    %v2733 = vmul.f32 %v2730, 1.442695
    %v2734 = vpow.pop %v2733
    %v2735 = vadd.f32 %v2732, 1.0
    %v2736 = vadd.f32 %v2734, 1.0
    %v2737 = vrcp.pop %v2735
    %v2738 = vmul.f32 1.0, %v2737
    %v2739 = vrcp.pop %v2736
    %v2740 = vmul.f32 1.0, %v2739
    %v2743 = vrot.slane %v2727, 6
    %v2744 = vrot.slane %v2728, 5
    %v2745 = vsel %vm300, %v2744, %v2743
    %v2749 = vrot.slane %v2738, 6
    %v2750 = vrot.slane %v2740, 5
    %v2751 = vsel %vm300, %v2750, %v2749
    %v2753 = vsel %vm105, %v2745, %v2751
    %v2754 = vmul.f32 %v2753, %v2600
    %2756 = vrot.lane.b32.xlu0 %v2753, 64
    %v2757 = vpop.permute.xlu0 %2756
    %v2759 = vmul.f32 %v2753, %v2757
    %2761 = vrot.lane.b32.xlu0 %v2759, 32
    %v2762 = vpop.permute.xlu0 %2761
    %v2764 = vadd.f32 %v2754, %v2762
    %v2765 = vtanh.pop %v2764
    %2767 = vrot.lane.b32.xlu0 %v2765, 64
    %v2768 = vpop.permute.xlu0 %2767
    %v2770 = vmul.f32 %v2753, %v2768
    %v2773 = vunpack.c.l.s4 1966171168
    %v2774 = vunpack.c.0.s8 %v2773
    %v2775 = vlaneseq
    %v2776 = vshrl.u32 %v2775, 7
    %v2777 = vsub.s32 %v2774, %v2776
    %v2778 = vrot.slane %v2770, %v2777
    %v2779 = vcombine.high %v2778, %v2778
    %v2781 = vunpack.c.l.s4 1966171168
    %v2782 = vunpack.c.0.s8 %v2781
    %v2783 = vlaneseq
    %v2784 = vshrl.u32 %v2783, 7
    %v2785 = vsub.s32 %v2782, %v2784
    %v2786 = vrot.slane %v2778, %v2785
    %v2788 = vunpack.c.l.s4 1966171168
    %v2789 = vunpack.c.0.s8 %v2788
    %v2790 = vlaneseq
    %v2791 = vshrl.u32 %v2790, 7
    %v2792 = vsub.s32 %v2789, %v2791
    %v2793 = vrot.slane %v2779, %v2792
    %v2794 = vlaneseq
    %v2795 = vshrl.u32 %v2794, 7
    %v2796 = vsub.s32 0, %v2795
    %v2797 = vrot.slane %v2786, %v2796
    %v2798 = vlaneseq
    %v2799 = vshrl.u32 %v2798, 7
    %v2800 = vsub.s32 0, %v2799
    %v2801 = vrot.slane %v2793, %v2800
    %2802 = vrot.lane.b32.xlu0 %v2797, 32
    %v2803 = vpop.permute.xlu0 %2802
    %2804 = vrot.lane.b32.xlu0 %v2801, 32
    %v2805 = vpop.permute.xlu0 %2804
    %2808 = vst.msk [vmem:[#allocation2 + $0x6] sm:$0x1] %vm370, %v2803
    %2809 = vst.msk [vmem:[#allocation2 + $0xe] sm:$0x1] %vm370, %v2805
    %2810 = vrot.lane.b32.xlu0 %v2770, 32
    %v2811 = vpop.permute.xlu0 %2810
    %v2812 = vsel %vm203, %v2811, 0
    %2814 = vmatprep.subr.mxu0 0.0
    %2815 = vmatpush1.msra.mxu0 0.0
    %2816 = vmatprep.subr.mxu0 0.0
    %2817 = vmatpush1.msra.mxu0 0.0
    %2818 = vmatprep.subr.mxu0 0.0
    %2819 = vmatpush1.msra.mxu0 0.0
    %2820 = vmatprep.subr.mxu0 0.0
    %2821 = vmatpush1.msra.mxu0 0.0
    %2822 = vmatprep.subr.mxu0 0.0
    %2823 = vmatpush1.msra.mxu0 0.0
    %2824 = vmatprep.subr.mxu0 0.0
    %2825 = vmatpush1.msra.mxu0 0.0
    %2826 = vmatprep.subr.mxu0 0.0
    %2827 = vmatpush1.msra.mxu0 0.0
    %2828 = vmatprep.subr.mxu0 0.0
    %2829 = vmatpush1.msra.mxu0 0.0
    %2830 = vmatprep.subr.mxu0 0.0
    %2831 = vmatpush1.msra.mxu0 0.0
    %2832 = vmatprep.subr.mxu0 0.0
    %2833 = vmatpush1.msra.mxu0 0.0
    %2834 = vmatprep.subr.mxu0 0.0
    %2835 = vmatpush1.msra.mxu0 0.0
    %2836 = vmatprep.subr.mxu0 0.0
    %2837 = vmatpush1.msra.mxu0 0.0
    %2838 = vmatprep.subr.mxu0 0.0
    %2839 = vmatpush1.msra.mxu0 %v1671
    %2840 = vmatprep.subr.mxu0 0.0
    %2841 = vmatpush1.msra.mxu0 %v1670
    %2842 = vmatprep.subr.mxu0 0.0
    %2843 = vmatpush1.msra.mxu0 %v1669
    %2844 = vmatprep.subr.mxu0 0.0
    %2845 = vmatpush1.msra.mxu0 %v1668
    %2846 = vmatprep.subr.mxu0 0.0
    %2847 = vmatpush2.msra.mxu0 0.0
    %2848 = vmatprep.subr.mxu0 0.0
    %2849 = vmatpush2.msra.mxu0 0.0
    %2850 = vmatprep.subr.mxu0 0.0
    %2851 = vmatpush2.msra.mxu0 0.0
    %2852 = vmatprep.subr.mxu0 0.0
    %2853 = vmatpush2.msra.mxu0 0.0
    %2854 = vmatprep.subr.mxu0 0.0
    %2855 = vmatpush2.msra.mxu0 0.0
    %2856 = vmatprep.subr.mxu0 0.0
    %2857 = vmatpush2.msra.mxu0 0.0
    %2858 = vmatprep.subr.mxu0 0.0
    %2859 = vmatpush2.msra.mxu0 0.0
    %2860 = vmatprep.subr.mxu0 0.0
    %2861 = vmatpush2.msra.mxu0 0.0
    %2862 = vmatprep.subr.mxu0 0.0
    %2863 = vmatpush2.msra.mxu0 0.0
    %2864 = vmatprep.subr.mxu0 0.0
    %2865 = vmatpush2.msra.mxu0 0.0
    %2866 = vmatprep.subr.mxu0 0.0
    %2867 = vmatpush2.msra.mxu0 0.0
    %2868 = vmatprep.subr.mxu0 0.0
    %2869 = vmatpush2.msra.mxu0 0.0
    %2870 = vmatprep.subr.mxu0 0.0
    %2871 = vmatpush2.msra.mxu0 0.0
    %2872 = vmatprep.subr.mxu0 0.0
    %2873 = vmatpush2.msra.mxu0 0.0
    %2874 = vmatprep.subr.mxu0 0.0
    %2875 = vmatpush2.msra.mxu0 0.0
    %2876 = vmatprep.subr.mxu0 0.0
    %2877 = vmatpush2.msra.mxu0 0.0
    %2878 = vmatprep.mubr.f32.mxu0 0.0
    %2879 = vmatmul.mubr.f32.gmra.mxu0 %v2812
    %v2880 = vpop.f32.mrf.mxu0
    %v2881 = vadd.f32 0.0, %v2880
    %v2882 = vpop.f32.mrf.mxu0
    %2883 = vdwg.mxu0
    %v2885 = vrot.slane %v2881, 1
    %v2886 = vrot.slane %v2881, 2
    %v2889 = vadd.f32 %v1660, %v2885
    %v2890 = vadd.f32 %v1665, %v2886
    %v2891 = vtanh.pop %v2889
    %v2892 = vtanh.pop %v2890
    %v2893 = vxor.u32 %v2889, 2147483648
    %v2894 = vxor.u32 %v2890, 2147483648
    %v2895 = vmul.f32 %v2893, 1.442695
    %v2896 = vpow.pop %v2895
    %v2897 = vmul.f32 %v2894, 1.442695
    %v2898 = vpow.pop %v2897
    %v2899 = vadd.f32 %v2896, 1.0
    %v2900 = vadd.f32 %v2898, 1.0
    %v2901 = vrcp.pop %v2899
    %v2902 = vmul.f32 1.0, %v2901
    %v2903 = vrcp.pop %v2900
    %v2904 = vmul.f32 1.0, %v2903
    %v2907 = vrot.slane %v2891, 7
    %v2908 = vrot.slane %v2892, 6
    %v2909 = vsel %vm300, %v2908, %v2907
    %v2913 = vrot.slane %v2902, 7
    %v2914 = vrot.slane %v2904, 6
    %v2915 = vsel %vm300, %v2914, %v2913
    %v2917 = vsel %vm105, %v2909, %v2915
    %v2918 = vmul.f32 %v2917, %v2764
    %2920 = vrot.lane.b32.xlu0 %v2917, 64
    %v2921 = vpop.permute.xlu0 %2920
    %v2923 = vmul.f32 %v2917, %v2921
    %2925 = vrot.lane.b32.xlu0 %v2923, 32
    %v2926 = vpop.permute.xlu0 %2925
    %v2928 = vadd.f32 %v2918, %v2926
    %v2929 = vtanh.pop %v2928
    %2931 = vrot.lane.b32.xlu0 %v2929, 64
    %v2932 = vpop.permute.xlu0 %2931
    %v2934 = vmul.f32 %v2917, %v2932
    %v2937 = vunpack.c.l.s4 1966171168
    %v2938 = vunpack.c.0.s8 %v2937
    %v2939 = vlaneseq
    %v2940 = vshrl.u32 %v2939, 7
    %v2941 = vsub.s32 %v2938, %v2940
    %v2942 = vrot.slane %v2934, %v2941
    %v2943 = vcombine.high %v2942, %v2942
    %v2945 = vunpack.c.l.s4 1966171168
    %v2946 = vunpack.c.0.s8 %v2945
    %v2947 = vlaneseq
    %v2948 = vshrl.u32 %v2947, 7
    %v2949 = vsub.s32 %v2946, %v2948
    %v2950 = vrot.slane %v2942, %v2949
    %v2952 = vunpack.c.l.s4 1966171168
    %v2953 = vunpack.c.0.s8 %v2952
    %v2954 = vlaneseq
    %v2955 = vshrl.u32 %v2954, 7
    %v2956 = vsub.s32 %v2953, %v2955
    %v2957 = vrot.slane %v2943, %v2956
    %v2958 = vlaneseq
    %v2959 = vshrl.u32 %v2958, 7
    %v2960 = vsub.s32 0, %v2959
    %v2961 = vrot.slane %v2950, %v2960
    %v2962 = vlaneseq
    %v2963 = vshrl.u32 %v2962, 7
    %v2964 = vsub.s32 0, %v2963
    %v2965 = vrot.slane %v2957, %v2964
    %2966 = vrot.lane.b32.xlu0 %v2961, 32
    %v2967 = vpop.permute.xlu0 %2966
    %2968 = vrot.lane.b32.xlu0 %v2965, 32
    %v2969 = vpop.permute.xlu0 %2968
    %2972 = vst.msk [vmem:[#allocation2 + $0x7] sm:$0x1] %vm370, %v2967
    %2973 = vst.msk [vmem:[#allocation2 + $0xf] sm:$0x1] %vm370, %v2969
    %v2974 = vld [vmem:[#allocation2] sm:$0xff]
    %v2975 = vld [vmem:[#allocation2 + $0x8] sm:$0xff]
    %v2976 = vsel %vm203, %v2974, 0.0
    %2977 = vadd.xlane.f32.xlu0 %v2976
    %v2978 = vpop.xlane.xlu0 %2977
    %v2979 = vsel %vm203, %v2975, 0.0
    %2980 = vadd.xlane.f32.xlu0 %v2979
    %v2981 = vpop.xlane.xlu0 %2980
    %v2982 = vrcp.pop 32.0
    %v2983 = vmul.f32 %v2978, %v2982
    %v2984 = vmul.f32 %v2981, %v2982
    %v2985 = vsub.f32 %v2974, %v2983
    %v2986 = vsub.f32 %v2975, %v2984
    %v2987 = vmul.f32 %v2985, %v2985
    %v2988 = vmul.f32 %v2986, %v2986
    %v2989 = vsel %vm203, %v2987, 0.0
    %2990 = vadd.xlane.f32.xlu0 %v2989
    %v2991 = vpop.xlane.xlu0 %2990
    %v2992 = vsel %vm203, %v2988, 0.0
    %2993 = vadd.xlane.f32.xlu0 %v2992
    %v2994 = vpop.xlane.xlu0 %2993
    %v2995 = vmul.f32 %v2991, %v2982
    %v2996 = vmul.f32 %v2994, %v2982
    %v2997 = vadd.f32 %v2995, 1e-05
    %v2998 = vadd.f32 %v2996, 1e-05
    %v2999 = vrsqrt.pop %v2997
    %v3000 = vrsqrt.pop %v2998
    %v3001 = vmul.f32 %v2985, %v2999
    %v3002 = vmul.f32 %v2986, %v3000
    %v3003 = vld [vmem:[%s7] sm:$0x1]
    %v3005 = vlaneseq
    %v3006 = vshrl.u32 %v3005, 7
    %v3007 = vsub.s32 0, %v3006
    %v3008 = vrot.slane %v3003, %v3007
    %v3010 = vmul.f32 %v3001, %v3008
    %v3011 = vmul.f32 %v3002, %v3008
    %v3012 = vld [vmem:[%s8] sm:$0x1]
    %v3014 = vlaneseq
    %v3015 = vshrl.u32 %v3014, 7
    %v3016 = vsub.s32 0, %v3015
    %v3017 = vrot.slane %v3012, %v3016
    %v3019 = vadd.f32 %v3010, %v3017
    %v3020 = vadd.f32 %v3011, %v3017
    %3021 = vst.msk [vmem:[#allocation12] sm:$0xff] %vm203, %v3019
    %3022 = vst.msk [vmem:[#allocation12 + $0x8] sm:$0xff] %vm203, %v3020
    // Predicated region
    $region58: #{tpu_custom_call.1} parent=1 // pred_check
      _
    $region59: #{tpu_custom_call.1} parent=1 // pred_check_branch
      %3024 = sbr.rel (0) target = $region61
    $region60: #{tpu_custom_call.1} parent=1 // pred_region
      %s3026 = ssub.s32 256, 256
      %3027 = vsyncadd [#allocation5], %s3026
      %s3028 = sshll.u32 [#allocation12], 4
      %s3029 = int_to_ptr.vmem [resolvable:$true] %s3028
      %3034 = dma.vmem_to_hbm [thread:$0]  %s3029, 256, %s9, [#allocation5], 128, 128, 8
    $region61: #{tpu_custom_call.1} parent=1 // pred_fallthru
      _
    // Predicated region
    $region62: #{tpu_custom_call.1} parent=1 // pred_check
      _
    $region63: #{tpu_custom_call.1} parent=1 // pred_check_branch
      %3036 = sbr.rel (0) target = $region65
    $region64: #{tpu_custom_call.1} parent=1 // pred_region
      %3037 = dma.done [#allocation5], 256
    $region65: #{tpu_custom_call.1} parent=1 // pred_fallthru
      _
    %3038 = vsyncpa [#allocation4], 1
    %3039 = vsyncpa [#allocation7], 1
    %3040 = vsyncpa [#allocation10], 1
    %3041 = vsyncpa [#allocation5], 1

</llo_original>
